<compile_context>
chip_gen: v6e
topology: v6e:2x2x1
jax: 0.10.0
libtpu: 0.0.40
codegen_flags: <defaults>
</compile_context>

<pallas_src>
import functools

import numpy as np
import jax
import jax.numpy as jnp
from jax.experimental import pallas as pl
from jax.experimental.pallas import tpu as pltpu

WIDTH = 32            # module default
TM_MAX = 2048         # largest token tile (weights ~130 KB + few MiB temps)


# --------------------------------------------------------------------------
# Kernel
# --------------------------------------------------------------------------
def _iphi_kernel(xd_ref, p2_ref, phase_ref,
                 w0nc_ref, wsc_ref, bnc_ref,
                 w1_ref, b1_ref, w2_ref, b2_ref, w3_ref, b3_ref,
                 w4_ref, b4_ref, out_ref, *, act_dtype):
    bf = jnp.bfloat16

    xd = xd_ref[...]                 # (TM, 4) f32 = [x0, x1, angle, radius]
    x = xd[:, 0:2]                   # residual source == original x

    # Fourier arguments on the VPU, true f32.  P2 = [P | P] is block-diagonal
    # (row d feeds columns d*8:(d+1)*8 and 32+d*8:32+(d+1)*8); the pi/2 phase
    # row turns the second half of sin() into cos(), so one sin stream and one
    # merged matmul cover both Fourier branches.
    p2 = p2_ref[...]                 # (4, 64) f32
    arg = phase_ref[...] + xd[:, 0:1] * p2[0:1, :]
    arg = arg + xd[:, 1:2] * p2[1:2, :]
    arg = arg + xd[:, 2:3] * p2[2:3, :]
    arg = arg + xd[:, 3:4] * p2[3:4, :]
    x_sc = jnp.sin(arg)              # (TM, 64) == [sin(arg) | cos(arg)]

    # fc0 folded into fc_no_code + merged sin/cos matmul.  bf16 MXU operands,
    # f32 accumulation; sequential accumulation keeps the (TM, 128) temp count
    # low.
    h = jnp.dot(xd.astype(bf), w0nc_ref[...], preferred_element_type=jnp.float32)
    h = h + jnp.dot(x_sc.astype(bf), wsc_ref[...],
                    preferred_element_type=jnp.float32)
    h = h + bnc_ref[...]             # (TM, 128) f32

    # MLP: bf16 MXU operands, f32 accumulation.  tanh runs in act_dtype
    # (bf16 on v6e/v7x -> native bf16 EUP; f32 on v5e).
    h = jnp.tanh((jnp.dot(h.astype(bf), w1_ref[...],
                          preferred_element_type=jnp.float32)
                  + b1_ref[...]).astype(act_dtype))
    h = jnp.tanh((jnp.dot(h.astype(bf), w2_ref[...],
                          preferred_element_type=jnp.float32)
                  + b2_ref[...]).astype(act_dtype))
    h = jnp.tanh((jnp.dot(h.astype(bf), w3_ref[...],
                          preferred_element_type=jnp.float32)
                  + b3_ref[...]).astype(act_dtype))
    h = jnp.dot(h.astype(bf), w4_ref[...],
                preferred_element_type=jnp.float32) + b4_ref[...]   # (TM, 2) f32

    # TODO(synk): last-dim-2 output lowers to masked 2-lane partial stores; a
    # lane-dense (2, TM) layout would trim the writeback tail, but output bytes
    # are tiny here — measure before changing.
    out_ref[...] = (x + x * h).astype(out_ref.dtype)


# --------------------------------------------------------------------------
# Parameters
# --------------------------------------------------------------------------
def init_params(key, width=WIDTH):
    """Deterministic nn.Linear-style init; weights stored as (in, out), f32."""
    def linear(k, fan_in, fan_out):
        kw, kb = jax.random.split(k)
        bound = 1.0 / np.sqrt(fan_in)
        w = jax.random.uniform(kw, (fan_in, fan_out), jnp.float32, -bound, bound)
        b = jax.random.uniform(kb, (1, fan_out), jnp.float32, -bound, bound)
        return w, b

    keys = jax.random.split(key, 6)
    w0, b0 = linear(keys[0], 4, width)
    wnc, bnc = linear(keys[1], 3 * width, 4 * width)
    w1, b1 = linear(keys[2], 4 * width, 4 * width)
    w2, b2 = linear(keys[3], 4 * width, 4 * width)
    w3, b3 = linear(keys[4], 4 * width, 4 * width)
    w4, b4 = linear(keys[5], 4 * width, 2)
    return (w0, b0, wnc, bnc, w1, b1, w2, b2, w3, b3, w4, b4)


def prepare_kernel_params(params, width=WIDTH):
    """Fold fc0 into fc_no_code, merge sin/cos weights, pre-cast MXU weights
    to bf16, and build the doubled block-diagonal projection + pi/2 phase."""
    (w0, b0, wnc, bnc, w1, b1, w2, b2, w3, b3, w4, b4) = params

    wnc0 = wnc[0:width, :]
    w0nc = w0 @ wnc0                 # (4, 4*width) — exact algebraic fold
    b_fold = bnc + b0 @ wnc0         # (1, 4*width)
    # Merged sin|cos weight: one (2*width, 4*width) matmul instead of two.
    w_sc = jnp.concatenate([wnc[width:2 * width, :],
                            wnc[2 * width:3 * width, :]], axis=0)

    nb = width // 4
    B = np.pi * np.power(2.0, np.arange(nb, dtype=np.float32))
    P = np.zeros((4, width), dtype=np.float32)
    for d in range(4):
        P[d, d * nb:(d + 1) * nb] = B
    P2 = np.concatenate([P, P], axis=1)                              # (4, 2*width)
    phase = np.concatenate([np.zeros((1, width), np.float32),
                            np.full((1, width), np.pi / 2, np.float32)], axis=1)

    bf = jnp.bfloat16
    return (jnp.asarray(P2), jnp.asarray(phase),      # f32: phase-sensitive
            w0nc.astype(bf), w_sc.astype(bf), b_fold,
            w1.astype(bf), b1, w2.astype(bf), b2, w3.astype(bf), b3,
            w4.astype(bf), b4)


# --------------------------------------------------------------------------
# Wrapper
# --------------------------------------------------------------------------
def _prep_features(x):
    # TODO(synk): atan2 has no clean Mosaic lowering; angle/radius are prepared
    # in plain JAX (fused into the same jitted program) and fed to the kernel
    # as the 4-feature xd.
    center = jnp.array([1e-4, 1e-4], dtype=x.dtype)
    xc = x - center
    angle = jnp.arctan2(xc[..., 1], xc[..., 0])
    radius = jnp.sqrt(jnp.sum(xc * xc, axis=-1))
    return jnp.stack([x[..., 0], x[..., 1], angle, radius], axis=-1)   # (b, n, 4)


def _device_kind():
    try:
        return jax.devices()[0].device_kind.lower()
    except Exception:
        return ""


def _supports_bf16_eup(kind):
    # v6e / v7x have native bf16 VPU/EUP paths; v5e (and older) do not.
    return ("v6" in kind) or ("v7" in kind)


def _is_dual_tensorcore(kind):
    # v7x has 2 TensorCores per chip; keep >= 2 grid steps there.
    return "v7" in kind


def _choose_tm(m, dual_core):
    m8 = max(8, ((m + 7) // 8) * 8)
    tm = min(TM_MAX, m8)
    if dual_core and m8 > 8:
        # >= 2 grid steps so both v7x TensorCores receive work.
        half = max(8, (((m + 1) // 2 + 7) // 8) * 8)
        tm = min(tm, half)
    return tm


@functools.partial(jax.jit, static_argnums=(2, 3))
def _iphi_forward_jit(x, params, tm, use_bf16_act):
    b, n, _ = x.shape
    m = b * n

    xd_flat = _prep_features(x).reshape(m, 4)
    m_pad = pl.cdiv(m, tm) * tm
    if m_pad != m:
        xd_flat = jnp.pad(xd_flat, ((0, m_pad - m), (0, 0)))

    weights = prepare_kernel_params(params)

    tok_spec = lambda width: pl.BlockSpec((tm, width), lambda i: (i, 0))
    full_spec = lambda a: pl.BlockSpec(a.shape, lambda i: (0,) * a.ndim)

    kernel = functools.partial(
        _iphi_kernel,
        act_dtype=jnp.bfloat16 if use_bf16_act else jnp.float32)

    out = pl.pallas_call(
        kernel,
        out_shape=jax.ShapeDtypeStruct((m_pad, 2), x.dtype),
        grid_spec=pltpu.PrefetchScalarGridSpec(
            num_scalar_prefetch=0,
            grid=(m_pad // tm,),
            in_specs=[tok_spec(4)] + [full_spec(a) for a in weights],
            out_specs=tok_spec(2),
        ),
        compiler_params=pltpu.CompilerParams(
            dimension_semantics=("parallel",),
            vmem_limit_bytes=48 * 1024 * 1024),
    )(xd_flat, *weights)

    return out[:m].reshape(b, n, 2)


def iphi_forward(x, params, *, tm=None):
    b, n, _ = x.shape
    m = b * n
    kind = _device_kind()
    if tm is None:
        tm = _choose_tm(m, _is_dual_tensorcore(kind))
    return _iphi_forward_jit(x, params, tm, _supports_bf16_eup(kind))


# --------------------------------------------------------------------------
# Pure-JAX reference (mirrors PyTorch forward, code=None branch)
# --------------------------------------------------------------------------
def iphi_reference(x, params, width=WIDTH):
    (w0, b0, wnc, bnc, w1, b1, w2, b2, w3, b3, w4, b4) = params
    xd = _prep_features(x)
    b_, n_, d = xd.shape
    B = jnp.pi * (2.0 ** jnp.arange(width // 4, dtype=jnp.float32))
    arg = xd[..., None] * B                                  # (b, n, 4, width//4)
    x_sin = jnp.sin(arg).reshape(b_, n_, d * width // 4)
    x_cos = jnp.cos(arg).reshape(b_, n_, d * width // 4)
    h0 = xd @ w0 + b0
    h = jnp.concatenate([h0, x_sin, x_cos], axis=-1)
    h = h @ wnc + bnc
    h = jnp.tanh(h @ w1 + b1)
    h = jnp.tanh(h @ w2 + b2)
    h = jnp.tanh(h @ w3 + b3)
    h = h @ w4 + b4
    return x + x * h


if __name__ == "__main__":
    key = jax.random.PRNGKey(0)
    kp, kx = jax.random.split(key)

    params = init_params(kp)

    b, n = 2, 64                                   # x: (batch, num_points, 2)
    x = jax.random.uniform(kx, (b, n, 2), jnp.float32)

    out = jax.block_until_ready(iphi_forward(x, params))
    ref = jax.block_until_ready(iphi_reference(x, params))
    np.testing.assert_allclose(np.asarray(out), np.asarray(ref), atol=5e-2, rtol=5e-2)

    print("KERNEL_OK")
</pallas_src>

<mosaic_0001>
module attributes {stable_mosaic.version = 11 : i64} {
  func.func @_iphi_kernel(%arg0: i32, %arg1: memref<128x4xf32, #tpu.memory_space<vmem>>, %arg2: memref<4x64xf32, #tpu.memory_space<vmem>>, %arg3: memref<1x64xf32, #tpu.memory_space<vmem>>, %arg4: memref<4x128xbf16, #tpu.memory_space<vmem>>, %arg5: memref<64x128xbf16, #tpu.memory_space<vmem>>, %arg6: memref<1x128xf32, #tpu.memory_space<vmem>>, %arg7: memref<128x128xbf16, #tpu.memory_space<vmem>>, %arg8: memref<1x128xf32, #tpu.memory_space<vmem>>, %arg9: memref<128x128xbf16, #tpu.memory_space<vmem>>, %arg10: memref<1x128xf32, #tpu.memory_space<vmem>>, %arg11: memref<128x128xbf16, #tpu.memory_space<vmem>>, %arg12: memref<1x128xf32, #tpu.memory_space<vmem>>, %arg13: memref<128x2xbf16, #tpu.memory_space<vmem>>, %arg14: memref<1x2xf32, #tpu.memory_space<vmem>>, %arg15: memref<128x2xf32, #tpu.memory_space<vmem>>) attributes {dimension_semantics = [#tpu.dimension_semantics<parallel>], iteration_bounds = array<i64: 1>, scalar_prefetch = 0 : i64, scratch_operands = 0 : i64, tpu.core_type = #tpu.core_type<tc>, window_params = [{transform_indices = @transform_0, window_bounds = array<i64: 128, 4>}, {pipeline_mode = #tpu.pipeline_mode<synchronous>, transform_indices = @transform_1, window_bounds = array<i64: 4, 64>}, {pipeline_mode = #tpu.pipeline_mode<synchronous>, transform_indices = @transform_2, window_bounds = array<i64: 1, 64>}, {pipeline_mode = #tpu.pipeline_mode<synchronous>, transform_indices = @transform_3, window_bounds = array<i64: 4, 128>}, {pipeline_mode = #tpu.pipeline_mode<synchronous>, transform_indices = @transform_4, window_bounds = array<i64: 64, 128>}, {pipeline_mode = #tpu.pipeline_mode<synchronous>, transform_indices = @transform_5, window_bounds = array<i64: 1, 128>}, {pipeline_mode = #tpu.pipeline_mode<synchronous>, transform_indices = @transform_6, window_bounds = array<i64: 128, 128>}, {pipeline_mode = #tpu.pipeline_mode<synchronous>, transform_indices = @transform_7, window_bounds = array<i64: 1, 128>}, {pipeline_mode = #tpu.pipeline_mode<synchronous>, transform_indices = @transform_8, window_bounds = array<i64: 128, 128>}, {pipeline_mode = #tpu.pipeline_mode<synchronous>, transform_indices = @transform_9, window_bounds = array<i64: 1, 128>}, {pipeline_mode = #tpu.pipeline_mode<synchronous>, transform_indices = @transform_10, window_bounds = array<i64: 128, 128>}, {pipeline_mode = #tpu.pipeline_mode<synchronous>, transform_indices = @transform_11, window_bounds = array<i64: 1, 128>}, {pipeline_mode = #tpu.pipeline_mode<synchronous>, transform_indices = @transform_12, window_bounds = array<i64: 128, 2>}, {pipeline_mode = #tpu.pipeline_mode<synchronous>, transform_indices = @transform_13, window_bounds = array<i64: 1, 2>}, {transform_indices = @transform_14, window_bounds = array<i64: 128, 2>}]} {
    %c0 = arith.constant 0 : index
    %c0_0 = arith.constant 0 : index
    %0 = vector.load %arg1[%c0, %c0_0] : memref<128x4xf32, #tpu.memory_space<vmem>>, vector<128x4xf32>
    %1 = vector.extract_strided_slice %0 {offsets = [0, 0], sizes = [128, 2], strides = [1, 1]} : vector<128x4xf32> to vector<128x2xf32>
    %c0_1 = arith.constant 0 : index
    %c0_2 = arith.constant 0 : index
    %2 = vector.load %arg2[%c0_1, %c0_2] : memref<4x64xf32, #tpu.memory_space<vmem>>, vector<4x64xf32>
    %c0_3 = arith.constant 0 : index
    %c0_4 = arith.constant 0 : index
    %3 = vector.load %arg3[%c0_3, %c0_4] : memref<1x64xf32, #tpu.memory_space<vmem>>, vector<1x64xf32>
    %4 = vector.extract_strided_slice %0 {offsets = [0, 0], sizes = [128, 1], strides = [1, 1]} : vector<128x4xf32> to vector<128x1xf32>
    %5 = vector.extract_strided_slice %2 {offsets = [0, 0], sizes = [1, 64], strides = [1, 1]} : vector<4x64xf32> to vector<1x64xf32>
    %6 = vector.broadcast %4 : vector<128x1xf32> to vector<128x64xf32>
    %7 = vector.broadcast %5 : vector<1x64xf32> to vector<128x64xf32>
    %8 = arith.mulf %6, %7 : vector<128x64xf32>
    %9 = vector.broadcast %3 : vector<1x64xf32> to vector<128x64xf32>
    %10 = arith.addf %9, %8 : vector<128x64xf32>
    %11 = vector.extract_strided_slice %0 {offsets = [0, 1], sizes = [128, 1], strides = [1, 1]} : vector<128x4xf32> to vector<128x1xf32>
    %12 = vector.extract_strided_slice %2 {offsets = [1, 0], sizes = [1, 64], strides = [1, 1]} : vector<4x64xf32> to vector<1x64xf32>
    %13 = vector.broadcast %11 : vector<128x1xf32> to vector<128x64xf32>
    %14 = vector.broadcast %12 : vector<1x64xf32> to vector<128x64xf32>
    %15 = arith.mulf %13, %14 : vector<128x64xf32>
    %16 = arith.addf %10, %15 : vector<128x64xf32>
    %17 = vector.extract_strided_slice %0 {offsets = [0, 2], sizes = [128, 1], strides = [1, 1]} : vector<128x4xf32> to vector<128x1xf32>
    %18 = vector.extract_strided_slice %2 {offsets = [2, 0], sizes = [1, 64], strides = [1, 1]} : vector<4x64xf32> to vector<1x64xf32>
    %19 = vector.broadcast %17 : vector<128x1xf32> to vector<128x64xf32>
    %20 = vector.broadcast %18 : vector<1x64xf32> to vector<128x64xf32>
    %21 = arith.mulf %19, %20 : vector<128x64xf32>
    %22 = arith.addf %16, %21 : vector<128x64xf32>
    %23 = vector.extract_strided_slice %0 {offsets = [0, 3], sizes = [128, 1], strides = [1, 1]} : vector<128x4xf32> to vector<128x1xf32>
    %24 = vector.extract_strided_slice %2 {offsets = [3, 0], sizes = [1, 64], strides = [1, 1]} : vector<4x64xf32> to vector<1x64xf32>
    %25 = vector.broadcast %23 : vector<128x1xf32> to vector<128x64xf32>
    %26 = vector.broadcast %24 : vector<1x64xf32> to vector<128x64xf32>
    %27 = arith.mulf %25, %26 : vector<128x64xf32>
    %28 = arith.addf %22, %27 : vector<128x64xf32>
    %29 = math.sin %28 : vector<128x64xf32>
    %30 = arith.truncf %0 : vector<128x4xf32> to vector<128x4xbf16>
    %c0_5 = arith.constant 0 : index
    %c0_6 = arith.constant 0 : index
    %31 = vector.load %arg4[%c0_5, %c0_6] : memref<4x128xbf16, #tpu.memory_space<vmem>>, vector<4x128xbf16>
    %cst = arith.constant dense<0.000000e+00> : vector<128x128xf32>
    %32 = tpu.matmul %30, %31, %cst {dimension_numbers = #tpu.dot_dimension_numbers<[1], [0], [0], [1], [0, 0, 1, 1], [], []>} : vector<128x4xbf16>, vector<4x128xbf16>, vector<128x128xf32> -> vector<128x128xf32>
    %33 = arith.truncf %29 : vector<128x64xf32> to vector<128x64xbf16>
    %c0_7 = arith.constant 0 : index
    %c0_8 = arith.constant 0 : index
    %34 = vector.load %arg5[%c0_7, %c0_8] : memref<64x128xbf16, #tpu.memory_space<vmem>>, vector<64x128xbf16>
    %cst_9 = arith.constant dense<0.000000e+00> : vector<128x128xf32>
    %35 = tpu.matmul %33, %34, %cst_9 {dimension_numbers = #tpu.dot_dimension_numbers<[1], [0], [0], [1], [0, 0, 1, 1], [], []>} : vector<128x64xbf16>, vector<64x128xbf16>, vector<128x128xf32> -> vector<128x128xf32>
    %36 = arith.addf %32, %35 : vector<128x128xf32>
    %c0_10 = arith.constant 0 : index
    %c0_11 = arith.constant 0 : index
    %37 = vector.load %arg6[%c0_10, %c0_11] : memref<1x128xf32, #tpu.memory_space<vmem>>, vector<1x128xf32>
    %38 = vector.broadcast %37 : vector<1x128xf32> to vector<128x128xf32>
    %39 = arith.addf %36, %38 : vector<128x128xf32>
    %40 = arith.truncf %39 : vector<128x128xf32> to vector<128x128xbf16>
    %c0_12 = arith.constant 0 : index
    %c0_13 = arith.constant 0 : index
    %41 = vector.load %arg7[%c0_12, %c0_13] : memref<128x128xbf16, #tpu.memory_space<vmem>>, vector<128x128xbf16>
    %cst_14 = arith.constant dense<0.000000e+00> : vector<128x128xf32>
    %42 = tpu.matmul %40, %41, %cst_14 {dimension_numbers = #tpu.dot_dimension_numbers<[1], [0], [0], [1], [0, 0, 1, 1], [], []>} : vector<128x128xbf16>, vector<128x128xbf16>, vector<128x128xf32> -> vector<128x128xf32>
    %c0_15 = arith.constant 0 : index
    %c0_16 = arith.constant 0 : index
    %43 = vector.load %arg8[%c0_15, %c0_16] : memref<1x128xf32, #tpu.memory_space<vmem>>, vector<1x128xf32>
    %44 = vector.broadcast %43 : vector<1x128xf32> to vector<128x128xf32>
    %45 = arith.addf %42, %44 : vector<128x128xf32>
    %46 = math.tanh %45 : vector<128x128xf32>
    %47 = arith.truncf %46 : vector<128x128xf32> to vector<128x128xbf16>
    %c0_17 = arith.constant 0 : index
    %c0_18 = arith.constant 0 : index
    %48 = vector.load %arg9[%c0_17, %c0_18] : memref<128x128xbf16, #tpu.memory_space<vmem>>, vector<128x128xbf16>
    %cst_19 = arith.constant dense<0.000000e+00> : vector<128x128xf32>
    %49 = tpu.matmul %47, %48, %cst_19 {dimension_numbers = #tpu.dot_dimension_numbers<[1], [0], [0], [1], [0, 0, 1, 1], [], []>} : vector<128x128xbf16>, vector<128x128xbf16>, vector<128x128xf32> -> vector<128x128xf32>
    %c0_20 = arith.constant 0 : index
    %c0_21 = arith.constant 0 : index
    %50 = vector.load %arg10[%c0_20, %c0_21] : memref<1x128xf32, #tpu.memory_space<vmem>>, vector<1x128xf32>
    %51 = vector.broadcast %50 : vector<1x128xf32> to vector<128x128xf32>
    %52 = arith.addf %49, %51 : vector<128x128xf32>
    %53 = math.tanh %52 : vector<128x128xf32>
    %54 = arith.truncf %53 : vector<128x128xf32> to vector<128x128xbf16>
    %c0_22 = arith.constant 0 : index
    %c0_23 = arith.constant 0 : index
    %55 = vector.load %arg11[%c0_22, %c0_23] : memref<128x128xbf16, #tpu.memory_space<vmem>>, vector<128x128xbf16>
    %cst_24 = arith.constant dense<0.000000e+00> : vector<128x128xf32>
    %56 = tpu.matmul %54, %55, %cst_24 {dimension_numbers = #tpu.dot_dimension_numbers<[1], [0], [0], [1], [0, 0, 1, 1], [], []>} : vector<128x128xbf16>, vector<128x128xbf16>, vector<128x128xf32> -> vector<128x128xf32>
    %c0_25 = arith.constant 0 : index
    %c0_26 = arith.constant 0 : index
    %57 = vector.load %arg12[%c0_25, %c0_26] : memref<1x128xf32, #tpu.memory_space<vmem>>, vector<1x128xf32>
    %58 = vector.broadcast %57 : vector<1x128xf32> to vector<128x128xf32>
    %59 = arith.addf %56, %58 : vector<128x128xf32>
    %60 = math.tanh %59 : vector<128x128xf32>
    %61 = arith.truncf %60 : vector<128x128xf32> to vector<128x128xbf16>
    %c0_27 = arith.constant 0 : index
    %c0_28 = arith.constant 0 : index
    %62 = vector.load %arg13[%c0_27, %c0_28] : memref<128x2xbf16, #tpu.memory_space<vmem>>, vector<128x2xbf16>
    %cst_29 = arith.constant dense<0.000000e+00> : vector<128x2xf32>
    %63 = tpu.matmul %61, %62, %cst_29 {dimension_numbers = #tpu.dot_dimension_numbers<[1], [0], [0], [1], [0, 0, 1, 1], [], []>} : vector<128x128xbf16>, vector<128x2xbf16>, vector<128x2xf32> -> vector<128x2xf32>
    %c0_30 = arith.constant 0 : index
    %c0_31 = arith.constant 0 : index
    %64 = vector.load %arg14[%c0_30, %c0_31] : memref<1x2xf32, #tpu.memory_space<vmem>>, vector<1x2xf32>
    %65 = vector.broadcast %64 : vector<1x2xf32> to vector<128x2xf32>
    %66 = arith.addf %63, %65 : vector<128x2xf32>
    %67 = arith.mulf %1, %66 : vector<128x2xf32>
    %68 = arith.addf %1, %67 : vector<128x2xf32>
    %c0_32 = arith.constant 0 : index
    %c0_33 = arith.constant 0 : index
    %69 = vector.load %arg15[%c0_32, %c0_33] : memref<128x2xf32, #tpu.memory_space<vmem>>, vector<128x2xf32>
    tpu.vector_store %arg15[%c0_32, %c0_33], %68 {strides = array<i32>} : memref<128x2xf32, #tpu.memory_space<vmem>>, vector<128x2xf32>,
    return
  }
  func.func @transform_0(%arg0: i32) -> (i32, i32) {
    %c0_i32 = arith.constant 0 : i32
    %c0_i32_0 = arith.constant 0 : i32
    return %arg0, %c0_i32 : i32, i32
  }
  func.func @transform_1(%arg0: i32) -> (i32, i32) {
    %c0_i32 = arith.constant 0 : i32
    %c0_i32_0 = arith.constant 0 : i32
    %c0_i32_1 = arith.constant 0 : i32
    return %c0_i32, %c0_i32_0 : i32, i32
  }
  func.func @transform_2(%arg0: i32) -> (i32, i32) {
    %c0_i32 = arith.constant 0 : i32
    %c0_i32_0 = arith.constant 0 : i32
    %c0_i32_1 = arith.constant 0 : i32
    return %c0_i32, %c0_i32_0 : i32, i32
  }
  func.func @transform_3(%arg0: i32) -> (i32, i32) {
    %c0_i32 = arith.constant 0 : i32
    %c0_i32_0 = arith.constant 0 : i32
    %c0_i32_1 = arith.constant 0 : i32
    return %c0_i32, %c0_i32_0 : i32, i32
  }
  func.func @transform_4(%arg0: i32) -> (i32, i32) {
    %c0_i32 = arith.constant 0 : i32
    %c0_i32_0 = arith.constant 0 : i32
    %c0_i32_1 = arith.constant 0 : i32
    return %c0_i32, %c0_i32_0 : i32, i32
  }
  func.func @transform_5(%arg0: i32) -> (i32, i32) {
    %c0_i32 = arith.constant 0 : i32
    %c0_i32_0 = arith.constant 0 : i32
    %c0_i32_1 = arith.constant 0 : i32
    return %c0_i32, %c0_i32_0 : i32, i32
  }
  func.func @transform_6(%arg0: i32) -> (i32, i32) {
    %c0_i32 = arith.constant 0 : i32
    %c0_i32_0 = arith.constant 0 : i32
    %c0_i32_1 = arith.constant 0 : i32
    return %c0_i32, %c0_i32_0 : i32, i32
  }
  func.func @transform_7(%arg0: i32) -> (i32, i32) {
    %c0_i32 = arith.constant 0 : i32
    %c0_i32_0 = arith.constant 0 : i32
    %c0_i32_1 = arith.constant 0 : i32
    return %c0_i32, %c0_i32_0 : i32, i32
  }
  func.func @transform_8(%arg0: i32) -> (i32, i32) {
    %c0_i32 = arith.constant 0 : i32
    %c0_i32_0 = arith.constant 0 : i32
    %c0_i32_1 = arith.constant 0 : i32
    return %c0_i32, %c0_i32_0 : i32, i32
  }
  func.func @transform_9(%arg0: i32) -> (i32, i32) {
    %c0_i32 = arith.constant 0 : i32
    %c0_i32_0 = arith.constant 0 : i32
    %c0_i32_1 = arith.constant 0 : i32
    return %c0_i32, %c0_i32_0 : i32, i32
  }
  func.func @transform_10(%arg0: i32) -> (i32, i32) {
    %c0_i32 = arith.constant 0 : i32
    %c0_i32_0 = arith.constant 0 : i32
    %c0_i32_1 = arith.constant 0 : i32
    return %c0_i32, %c0_i32_0 : i32, i32
  }
  func.func @transform_11(%arg0: i32) -> (i32, i32) {
    %c0_i32 = arith.constant 0 : i32
    %c0_i32_0 = arith.constant 0 : i32
    %c0_i32_1 = arith.constant 0 : i32
    return %c0_i32, %c0_i32_0 : i32, i32
  }
  func.func @transform_12(%arg0: i32) -> (i32, i32) {
    %c0_i32 = arith.constant 0 : i32
    %c0_i32_0 = arith.constant 0 : i32
    %c0_i32_1 = arith.constant 0 : i32
    return %c0_i32, %c0_i32_0 : i32, i32
  }
  func.func @transform_13(%arg0: i32) -> (i32, i32) {
    %c0_i32 = arith.constant 0 : i32
    %c0_i32_0 = arith.constant 0 : i32
    %c0_i32_1 = arith.constant 0 : i32
    return %c0_i32, %c0_i32_0 : i32, i32
  }
  func.func @transform_14(%arg0: i32) -> (i32, i32) {
    %c0_i32 = arith.constant 0 : i32
    %c0_i32_0 = arith.constant 0 : i32
    return %arg0, %c0_i32 : i32, i32
  }
}

</mosaic_0001>

<llo_original>
// kernel: _iphi_forward_jit.1
$region0: #{_iphi_forward_jit.1}
  #allocation0 [shape = 'u32[]', space=smem, size = 0x4, offset = 0x4, fixed_abs, tag = 'smem constant byte address 0x4 - core index']
  #allocation1 [shape = 'u32[144,128]{1,0:T(1,128)}', space=vmem, size = 0x12000, scoped, tag = 'internal scratch']
  %s0 = inlined_call_operand.vmem [shape: f32[128,4], index: 0, kind: input, shape index: {}]
  %s1 = inlined_call_operand.vmem [shape: f32[4,64], index: 1, kind: input, shape index: {}]
  %s2 = inlined_call_operand.vmem [shape: f32[1,64], index: 2, kind: input, shape index: {}]
  %s3 = inlined_call_operand.vmem [shape: bf16[4,128], index: 3, kind: input, shape index: {}]
  %s4 = inlined_call_operand.vmem [shape: bf16[64,128], index: 4, kind: input, shape index: {}]
  %s5 = inlined_call_operand.vmem [shape: f32[1,128], index: 5, kind: input, shape index: {}]
  %s6 = inlined_call_operand.vmem [shape: bf16[128,128], index: 6, kind: input, shape index: {}]
  %s7 = inlined_call_operand.vmem [shape: f32[1,128], index: 7, kind: input, shape index: {}]
  %s8 = inlined_call_operand.vmem [shape: bf16[128,128], index: 8, kind: input, shape index: {}]
  %s9 = inlined_call_operand.vmem [shape: f32[1,128], index: 9, kind: input, shape index: {}]
  %s10 = inlined_call_operand.vmem [shape: bf16[128,128], index: 10, kind: input, shape index: {}]
  %s11 = inlined_call_operand.vmem [shape: f32[1,128], index: 11, kind: input, shape index: {}]
  %s12 = inlined_call_operand.vmem [shape: bf16[128,2], index: 12, kind: input, shape index: {}]
  %s13 = inlined_call_operand.vmem [shape: f32[1,2], index: 13, kind: input, shape index: {}]
  %s14 = inlined_call_operand.vmem [shape: f32[128,2], index: 14, kind: output, shape index: {}]
  %s15 = sld [smem:[#allocation0]]
  $region66: #{_iphi_forward_jit.1} parent=0
    _
  %s17 = ssub.s32 1, %s15
  %s18 = scalar_select 0, %s17, %s15
  // Predicated region
  $region2: #{_iphi_forward_jit.1} parent=0 // pred_check
    _
  $region3: #{_iphi_forward_jit.1} parent=0 // pred_check_branch
    %20 = sbr.rel (0) target = $region5
  $region4: #{_iphi_forward_jit.1} parent=0 // pred_region
    _
  $region5: #{_iphi_forward_jit.1} parent=0 // pred_fallthru
    _
  // Predicated region
  $region6: #{_iphi_forward_jit.1} parent=0 // pred_check
    _
  $region7: #{_iphi_forward_jit.1} parent=0 // pred_check_branch
    %22 = sbr.rel (0) target = $region9
  $region8: #{_iphi_forward_jit.1} parent=0 // pred_region
    _
  $region9: #{_iphi_forward_jit.1} parent=0 // pred_fallthru
    _
  // Predicated region
  $region10: #{_iphi_forward_jit.1} parent=0 // pred_check
    _
  $region11: #{_iphi_forward_jit.1} parent=0 // pred_check_branch
    %24 = sbr.rel (0) target = $region13
  $region12: #{_iphi_forward_jit.1} parent=0 // pred_region
    _
  $region13: #{_iphi_forward_jit.1} parent=0 // pred_fallthru
    _
  // Predicated region
  $region14: #{_iphi_forward_jit.1} parent=0 // pred_check
    _
  $region15: #{_iphi_forward_jit.1} parent=0 // pred_check_branch
    %26 = sbr.rel (0) target = $region17
  $region16: #{_iphi_forward_jit.1} parent=0 // pred_region
    _
  $region17: #{_iphi_forward_jit.1} parent=0 // pred_fallthru
    _
  // Predicated region
  $region18: #{_iphi_forward_jit.1} parent=0 // pred_check
    _
  $region19: #{_iphi_forward_jit.1} parent=0 // pred_check_branch
    %28 = sbr.rel (0) target = $region21
  $region20: #{_iphi_forward_jit.1} parent=0 // pred_region
    _
  $region21: #{_iphi_forward_jit.1} parent=0 // pred_fallthru
    _
  // Predicated region
  $region22: #{_iphi_forward_jit.1} parent=0 // pred_check
    _
  $region23: #{_iphi_forward_jit.1} parent=0 // pred_check_branch
    %30 = sbr.rel (0) target = $region25
  $region24: #{_iphi_forward_jit.1} parent=0 // pred_region
    _
  $region25: #{_iphi_forward_jit.1} parent=0 // pred_fallthru
    _
  // Predicated region
  $region26: #{_iphi_forward_jit.1} parent=0 // pred_check
    _
  $region27: #{_iphi_forward_jit.1} parent=0 // pred_check_branch
    %32 = sbr.rel (0) target = $region29
  $region28: #{_iphi_forward_jit.1} parent=0 // pred_region
    _
  $region29: #{_iphi_forward_jit.1} parent=0 // pred_fallthru
    _
  // Predicated region
  $region30: #{_iphi_forward_jit.1} parent=0 // pred_check
    _
  $region31: #{_iphi_forward_jit.1} parent=0 // pred_check_branch
    %34 = sbr.rel (0) target = $region33
  $region32: #{_iphi_forward_jit.1} parent=0 // pred_region
    _
  $region33: #{_iphi_forward_jit.1} parent=0 // pred_fallthru
    _
  // Predicated region
  $region34: #{_iphi_forward_jit.1} parent=0 // pred_check
    _
  $region35: #{_iphi_forward_jit.1} parent=0 // pred_check_branch
    %36 = sbr.rel (0) target = $region37
  $region36: #{_iphi_forward_jit.1} parent=0 // pred_region
    _
  $region37: #{_iphi_forward_jit.1} parent=0 // pred_fallthru
    _
  // Predicated region
  $region38: #{_iphi_forward_jit.1} parent=0 // pred_check
    _
  $region39: #{_iphi_forward_jit.1} parent=0 // pred_check_branch
    %38 = sbr.rel (0) target = $region41
  $region40: #{_iphi_forward_jit.1} parent=0 // pred_region
    _
  $region41: #{_iphi_forward_jit.1} parent=0 // pred_fallthru
    _
  // Predicated region
  $region42: #{_iphi_forward_jit.1} parent=0 // pred_check
    _
  $region43: #{_iphi_forward_jit.1} parent=0 // pred_check_branch
    %40 = sbr.rel (0) target = $region45
  $region44: #{_iphi_forward_jit.1} parent=0 // pred_region
    _
  $region45: #{_iphi_forward_jit.1} parent=0 // pred_fallthru
    _
  // Predicated region
  $region46: #{_iphi_forward_jit.1} parent=0 // pred_check
    _
  $region47: #{_iphi_forward_jit.1} parent=0 // pred_check_branch
    %42 = sbr.rel (0) target = $region49
  $region48: #{_iphi_forward_jit.1} parent=0 // pred_region
    _
  $region49: #{_iphi_forward_jit.1} parent=0 // pred_fallthru
    _
  // Predicated region
  $region50: #{_iphi_forward_jit.1} parent=0 // pred_check
    _
  $region51: #{_iphi_forward_jit.1} parent=0 // pred_check_branch
    %44 = sbr.rel (0) target = $region53
  $region52: #{_iphi_forward_jit.1} parent=0 // pred_region
    _
  $region53: #{_iphi_forward_jit.1} parent=0 // pred_fallthru
    _
  // Predicated region
  $region54: #{_iphi_forward_jit.1} parent=0 // pred_check
    _
  $region55: #{_iphi_forward_jit.1} parent=0 // pred_check_branch
    %46 = sbr.rel (0) target = $region57
  $region56: #{_iphi_forward_jit.1} parent=0 // pred_region
    _
  $region57: #{_iphi_forward_jit.1} parent=0 // pred_fallthru
    _
  %v48 = vld [vmem:[%s0] sm:$0xff]
  %v49 = vld [vmem:[%s0 + $0x8] sm:$0xff]
  %v50 = vld [vmem:[%s0 + $0x10] sm:$0xff]
  %v51 = vld [vmem:[%s0 + $0x18] sm:$0xff]
  %v52 = vld [vmem:[%s0 + $0x20] sm:$0xff]
  %v53 = vld [vmem:[%s0 + $0x28] sm:$0xff]
  %v54 = vld [vmem:[%s0 + $0x30] sm:$0xff]
  %v55 = vld [vmem:[%s0 + $0x38] sm:$0xff]
  %v56 = vld [vmem:[%s0 + $0x40] sm:$0xff]
  %v57 = vld [vmem:[%s0 + $0x48] sm:$0xff]
  %v58 = vld [vmem:[%s0 + $0x50] sm:$0xff]
  %v59 = vld [vmem:[%s0 + $0x58] sm:$0xff]
  %v60 = vld [vmem:[%s0 + $0x60] sm:$0xff]
  %v61 = vld [vmem:[%s0 + $0x68] sm:$0xff]
  %v62 = vld [vmem:[%s0 + $0x70] sm:$0xff]
  %v63 = vld [vmem:[%s0 + $0x78] sm:$0xff]
  %v64 = vld [vmem:[%s1] sm:$0xf]
  %v65 = vld [vmem:[%s2] sm:$0x1]
  %67 = vset.pattern.permute.xlu0 0
  %68 = vperm.xlu0 %67, %v48
  %v69 = vpop.permute.xlu0 %68
  %72 = vset.pattern.permute.xlu0 0
  %73 = vperm.xlu0 %72, %v49
  %v74 = vpop.permute.xlu0 %73
  %77 = vset.pattern.permute.xlu0 0
  %78 = vperm.xlu0 %77, %v50
  %v79 = vpop.permute.xlu0 %78
  %82 = vset.pattern.permute.xlu0 0
  %83 = vperm.xlu0 %82, %v51
  %v84 = vpop.permute.xlu0 %83
  %87 = vset.pattern.permute.xlu0 0
  %88 = vperm.xlu0 %87, %v52
  %v89 = vpop.permute.xlu0 %88
  %92 = vset.pattern.permute.xlu0 0
  %93 = vperm.xlu0 %92, %v53
  %v94 = vpop.permute.xlu0 %93
  %97 = vset.pattern.permute.xlu0 0
  %98 = vperm.xlu0 %97, %v54
  %v99 = vpop.permute.xlu0 %98
  %102 = vset.pattern.permute.xlu0 0
  %103 = vperm.xlu0 %102, %v55
  %v104 = vpop.permute.xlu0 %103
  %107 = vset.pattern.permute.xlu0 0
  %108 = vperm.xlu0 %107, %v56
  %v109 = vpop.permute.xlu0 %108
  %112 = vset.pattern.permute.xlu0 0
  %113 = vperm.xlu0 %112, %v57
  %v114 = vpop.permute.xlu0 %113
  %117 = vset.pattern.permute.xlu0 0
  %118 = vperm.xlu0 %117, %v58
  %v119 = vpop.permute.xlu0 %118
  %122 = vset.pattern.permute.xlu0 0
  %123 = vperm.xlu0 %122, %v59
  %v124 = vpop.permute.xlu0 %123
  %127 = vset.pattern.permute.xlu0 0
  %128 = vperm.xlu0 %127, %v60
  %v129 = vpop.permute.xlu0 %128
  %132 = vset.pattern.permute.xlu0 0
  %133 = vperm.xlu0 %132, %v61
  %v134 = vpop.permute.xlu0 %133
  %137 = vset.pattern.permute.xlu0 0
  %138 = vperm.xlu0 %137, %v62
  %v139 = vpop.permute.xlu0 %138
  %142 = vset.pattern.permute.xlu0 0
  %143 = vperm.xlu0 %142, %v63
  %v144 = vpop.permute.xlu0 %143
  %v146 = vlaneseq
  %v147 = vshrl.u32 %v146, 7
  %v148 = vsub.s32 0, %v147
  %v149 = vrot.slane %v64, %v148
  %v150 = vmul.f32 %v69, %v149
  %v151 = vmul.f32 %v74, %v149
  %v152 = vmul.f32 %v79, %v149
  %v153 = vmul.f32 %v84, %v149
  %v154 = vmul.f32 %v89, %v149
  %v155 = vmul.f32 %v94, %v149
  %v156 = vmul.f32 %v99, %v149
  %v157 = vmul.f32 %v104, %v149
  %v158 = vmul.f32 %v109, %v149
  %v159 = vmul.f32 %v114, %v149
  %v160 = vmul.f32 %v119, %v149
  %v161 = vmul.f32 %v124, %v149
  %v162 = vmul.f32 %v129, %v149
  %v163 = vmul.f32 %v134, %v149
  %v164 = vmul.f32 %v139, %v149
  %v165 = vmul.f32 %v144, %v149
  %v167 = vlaneseq
  %v168 = vshrl.u32 %v167, 7
  %v169 = vsub.s32 0, %v168
  %v170 = vrot.slane %v65, %v169
  %v172 = vadd.f32 %v170, %v150
  %v173 = vadd.f32 %v170, %v151
  %v174 = vadd.f32 %v170, %v152
  %v175 = vadd.f32 %v170, %v153
  %v176 = vadd.f32 %v170, %v154
  %v177 = vadd.f32 %v170, %v155
  %v178 = vadd.f32 %v170, %v156
  %v179 = vadd.f32 %v170, %v157
  %v180 = vadd.f32 %v170, %v158
  %v181 = vadd.f32 %v170, %v159
  %v182 = vadd.f32 %v170, %v160
  %v183 = vadd.f32 %v170, %v161
  %v184 = vadd.f32 %v170, %v162
  %v185 = vadd.f32 %v170, %v163
  %v186 = vadd.f32 %v170, %v164
  %v187 = vadd.f32 %v170, %v165
  %188 = vset.pattern.permute.xlu0 1
  %189 = vperm.xlu0 %188, %v48
  %v190 = vpop.permute.xlu0 %189
  %192 = vset.pattern.permute.xlu0 1
  %193 = vperm.xlu0 %192, %v49
  %v194 = vpop.permute.xlu0 %193
  %196 = vset.pattern.permute.xlu0 1
  %197 = vperm.xlu0 %196, %v50
  %v198 = vpop.permute.xlu0 %197
  %200 = vset.pattern.permute.xlu0 1
  %201 = vperm.xlu0 %200, %v51
  %v202 = vpop.permute.xlu0 %201
  %204 = vset.pattern.permute.xlu0 1
  %205 = vperm.xlu0 %204, %v52
  %v206 = vpop.permute.xlu0 %205
  %208 = vset.pattern.permute.xlu0 1
  %209 = vperm.xlu0 %208, %v53
  %v210 = vpop.permute.xlu0 %209
  %212 = vset.pattern.permute.xlu0 1
  %213 = vperm.xlu0 %212, %v54
  %v214 = vpop.permute.xlu0 %213
  %216 = vset.pattern.permute.xlu0 1
  %217 = vperm.xlu0 %216, %v55
  %v218 = vpop.permute.xlu0 %217
  %220 = vset.pattern.permute.xlu0 1
  %221 = vperm.xlu0 %220, %v56
  %v222 = vpop.permute.xlu0 %221
  %224 = vset.pattern.permute.xlu0 1
  %225 = vperm.xlu0 %224, %v57
  %v226 = vpop.permute.xlu0 %225
  %228 = vset.pattern.permute.xlu0 1
  %229 = vperm.xlu0 %228, %v58
  %v230 = vpop.permute.xlu0 %229
  %232 = vset.pattern.permute.xlu0 1
  %233 = vperm.xlu0 %232, %v59
  %v234 = vpop.permute.xlu0 %233
  %236 = vset.pattern.permute.xlu0 1
  %237 = vperm.xlu0 %236, %v60
  %v238 = vpop.permute.xlu0 %237
  %240 = vset.pattern.permute.xlu0 1
  %241 = vperm.xlu0 %240, %v61
  %v242 = vpop.permute.xlu0 %241
  %244 = vset.pattern.permute.xlu0 1
  %245 = vperm.xlu0 %244, %v62
  %v246 = vpop.permute.xlu0 %245
  %248 = vset.pattern.permute.xlu0 1
  %249 = vperm.xlu0 %248, %v63
  %v250 = vpop.permute.xlu0 %249
  %v252 = vlaneseq
  %v253 = vshrl.u32 %v252, 7
  %v254 = vsub.s32 1, %v253
  %v255 = vrot.slane %v64, %v254
  %v256 = vmul.f32 %v190, %v255
  %v257 = vmul.f32 %v194, %v255
  %v258 = vmul.f32 %v198, %v255
  %v259 = vmul.f32 %v202, %v255
  %v260 = vmul.f32 %v206, %v255
  %v261 = vmul.f32 %v210, %v255
  %v262 = vmul.f32 %v214, %v255
  %v263 = vmul.f32 %v218, %v255
  %v264 = vmul.f32 %v222, %v255
  %v265 = vmul.f32 %v226, %v255
  %v266 = vmul.f32 %v230, %v255
  %v267 = vmul.f32 %v234, %v255
  %v268 = vmul.f32 %v238, %v255
  %v269 = vmul.f32 %v242, %v255
  %v270 = vmul.f32 %v246, %v255
  %v271 = vmul.f32 %v250, %v255
  %v272 = vadd.f32 %v172, %v256
  %v273 = vadd.f32 %v173, %v257
  %v274 = vadd.f32 %v174, %v258
  %v275 = vadd.f32 %v175, %v259
  %v276 = vadd.f32 %v176, %v260
  %v277 = vadd.f32 %v177, %v261
  %v278 = vadd.f32 %v178, %v262
  %v279 = vadd.f32 %v179, %v263
  %v280 = vadd.f32 %v180, %v264
  %v281 = vadd.f32 %v181, %v265
  %v282 = vadd.f32 %v182, %v266
  %v283 = vadd.f32 %v183, %v267
  %v284 = vadd.f32 %v184, %v268
  %v285 = vadd.f32 %v185, %v269
  %v286 = vadd.f32 %v186, %v270
  %v287 = vadd.f32 %v187, %v271
  %288 = vset.pattern.permute.xlu0 2
  %289 = vperm.xlu0 %288, %v48
  %v290 = vpop.permute.xlu0 %289
  %292 = vset.pattern.permute.xlu0 2
  %293 = vperm.xlu0 %292, %v49
  %v294 = vpop.permute.xlu0 %293
  %296 = vset.pattern.permute.xlu0 2
  %297 = vperm.xlu0 %296, %v50
  %v298 = vpop.permute.xlu0 %297
  %300 = vset.pattern.permute.xlu0 2
  %301 = vperm.xlu0 %300, %v51
  %v302 = vpop.permute.xlu0 %301
  %304 = vset.pattern.permute.xlu0 2
  %305 = vperm.xlu0 %304, %v52
  %v306 = vpop.permute.xlu0 %305
  %308 = vset.pattern.permute.xlu0 2
  %309 = vperm.xlu0 %308, %v53
  %v310 = vpop.permute.xlu0 %309
  %312 = vset.pattern.permute.xlu0 2
  %313 = vperm.xlu0 %312, %v54
  %v314 = vpop.permute.xlu0 %313
  %316 = vset.pattern.permute.xlu0 2
  %317 = vperm.xlu0 %316, %v55
  %v318 = vpop.permute.xlu0 %317
  %320 = vset.pattern.permute.xlu0 2
  %321 = vperm.xlu0 %320, %v56
  %v322 = vpop.permute.xlu0 %321
  %324 = vset.pattern.permute.xlu0 2
  %325 = vperm.xlu0 %324, %v57
  %v326 = vpop.permute.xlu0 %325
  %328 = vset.pattern.permute.xlu0 2
  %329 = vperm.xlu0 %328, %v58
  %v330 = vpop.permute.xlu0 %329
  %332 = vset.pattern.permute.xlu0 2
  %333 = vperm.xlu0 %332, %v59
  %v334 = vpop.permute.xlu0 %333
  %336 = vset.pattern.permute.xlu0 2
  %337 = vperm.xlu0 %336, %v60
  %v338 = vpop.permute.xlu0 %337
  %340 = vset.pattern.permute.xlu0 2
  %341 = vperm.xlu0 %340, %v61
  %v342 = vpop.permute.xlu0 %341
  %344 = vset.pattern.permute.xlu0 2
  %345 = vperm.xlu0 %344, %v62
  %v346 = vpop.permute.xlu0 %345
  %348 = vset.pattern.permute.xlu0 2
  %349 = vperm.xlu0 %348, %v63
  %v350 = vpop.permute.xlu0 %349
  %v352 = vlaneseq
  %v353 = vshrl.u32 %v352, 7
  %v354 = vsub.s32 2, %v353
  %v355 = vrot.slane %v64, %v354
  %v356 = vmul.f32 %v290, %v355
  %v357 = vmul.f32 %v294, %v355
  %v358 = vmul.f32 %v298, %v355
  %v359 = vmul.f32 %v302, %v355
  %v360 = vmul.f32 %v306, %v355
  %v361 = vmul.f32 %v310, %v355
  %v362 = vmul.f32 %v314, %v355
  %v363 = vmul.f32 %v318, %v355
  %v364 = vmul.f32 %v322, %v355
  %v365 = vmul.f32 %v326, %v355
  %v366 = vmul.f32 %v330, %v355
  %v367 = vmul.f32 %v334, %v355
  %v368 = vmul.f32 %v338, %v355
  %v369 = vmul.f32 %v342, %v355
  %v370 = vmul.f32 %v346, %v355
  %v371 = vmul.f32 %v350, %v355
  %v372 = vadd.f32 %v272, %v356
  %v373 = vadd.f32 %v273, %v357
  %v374 = vadd.f32 %v274, %v358
  %v375 = vadd.f32 %v275, %v359
  %v376 = vadd.f32 %v276, %v360
  %v377 = vadd.f32 %v277, %v361
  %v378 = vadd.f32 %v278, %v362
  %v379 = vadd.f32 %v279, %v363
  %v380 = vadd.f32 %v280, %v364
  %v381 = vadd.f32 %v281, %v365
  %v382 = vadd.f32 %v282, %v366
  %v383 = vadd.f32 %v283, %v367
  %v384 = vadd.f32 %v284, %v368
  %v385 = vadd.f32 %v285, %v369
  %v386 = vadd.f32 %v286, %v370
  %v387 = vadd.f32 %v287, %v371
  %388 = vset.pattern.permute.xlu0 3
  %389 = vperm.xlu0 %388, %v48
  %v390 = vpop.permute.xlu0 %389
  %392 = vset.pattern.permute.xlu0 3
  %393 = vperm.xlu0 %392, %v49
  %v394 = vpop.permute.xlu0 %393
  %396 = vset.pattern.permute.xlu0 3
  %397 = vperm.xlu0 %396, %v50
  %v398 = vpop.permute.xlu0 %397
  %400 = vset.pattern.permute.xlu0 3
  %401 = vperm.xlu0 %400, %v51
  %v402 = vpop.permute.xlu0 %401
  %404 = vset.pattern.permute.xlu0 3
  %405 = vperm.xlu0 %404, %v52
  %v406 = vpop.permute.xlu0 %405
  %408 = vset.pattern.permute.xlu0 3
  %409 = vperm.xlu0 %408, %v53
  %v410 = vpop.permute.xlu0 %409
  %412 = vset.pattern.permute.xlu0 3
  %413 = vperm.xlu0 %412, %v54
  %v414 = vpop.permute.xlu0 %413
  %416 = vset.pattern.permute.xlu0 3
  %417 = vperm.xlu0 %416, %v55
  %v418 = vpop.permute.xlu0 %417
  %420 = vset.pattern.permute.xlu0 3
  %421 = vperm.xlu0 %420, %v56
  %v422 = vpop.permute.xlu0 %421
  %424 = vset.pattern.permute.xlu0 3
  %425 = vperm.xlu0 %424, %v57
  %v426 = vpop.permute.xlu0 %425
  %428 = vset.pattern.permute.xlu0 3
  %429 = vperm.xlu0 %428, %v58
  %v430 = vpop.permute.xlu0 %429
  %432 = vset.pattern.permute.xlu0 3
  %433 = vperm.xlu0 %432, %v59
  %v434 = vpop.permute.xlu0 %433
  %436 = vset.pattern.permute.xlu0 3
  %437 = vperm.xlu0 %436, %v60
  %v438 = vpop.permute.xlu0 %437
  %440 = vset.pattern.permute.xlu0 3
  %441 = vperm.xlu0 %440, %v61
  %v442 = vpop.permute.xlu0 %441
  %444 = vset.pattern.permute.xlu0 3
  %445 = vperm.xlu0 %444, %v62
  %v446 = vpop.permute.xlu0 %445
  %448 = vset.pattern.permute.xlu0 3
  %449 = vperm.xlu0 %448, %v63
  %v450 = vpop.permute.xlu0 %449
  %v452 = vlaneseq
  %v453 = vshrl.u32 %v452, 7
  %v454 = vsub.s32 3, %v453
  %v455 = vrot.slane %v64, %v454
  %v456 = vmul.f32 %v390, %v455
  %v457 = vmul.f32 %v394, %v455
  %v458 = vmul.f32 %v398, %v455
  %v459 = vmul.f32 %v402, %v455
  %v460 = vmul.f32 %v406, %v455
  %v461 = vmul.f32 %v410, %v455
  %v462 = vmul.f32 %v414, %v455
  %v463 = vmul.f32 %v418, %v455
  %v464 = vmul.f32 %v422, %v455
  %v465 = vmul.f32 %v426, %v455
  %v466 = vmul.f32 %v430, %v455
  %v467 = vmul.f32 %v434, %v455
  %v468 = vmul.f32 %v438, %v455
  %v469 = vmul.f32 %v442, %v455
  %v470 = vmul.f32 %v446, %v455
  %v471 = vmul.f32 %v450, %v455
  %v472 = vadd.f32 %v372, %v456
  %v473 = vadd.f32 %v373, %v457
  %v474 = vadd.f32 %v374, %v458
  %v475 = vadd.f32 %v375, %v459
  %v476 = vadd.f32 %v376, %v460
  %v477 = vadd.f32 %v377, %v461
  %v478 = vadd.f32 %v378, %v462
  %v479 = vadd.f32 %v379, %v463
  %v480 = vadd.f32 %v380, %v464
  %v481 = vadd.f32 %v381, %v465
  %v482 = vadd.f32 %v382, %v466
  %v483 = vadd.f32 %v383, %v467
  %v484 = vadd.f32 %v384, %v468
  %v485 = vadd.f32 %v385, %v469
  %v486 = vadd.f32 %v386, %v470
  %v487 = vadd.f32 %v387, %v471
  %v488 = vand.u32 2147483647, %v472
  %vm489 = vcmp.le.f32.partialorder %v488, 0.7853982
  %vm490 = vcmp.lt.s32.totalorder %v472, 0
  %v491 = vand.u32 %v472, 2139095040
  %v492 = vshrl.u32 %v491, 23
  %v493 = vsub.s32 %v492, 127
  %v494 = vand.u32 2147483647, %v472
  %v495 = vand.u32 %v494, 8388607
  %v496 = vor.u32 %v495, 8388608
  %v497 = vsub.s32 0, %v496
  %v498 = vadd.s32 %v493, 1
  %vm499 = vcmp.gt.s32.totalorder %v498, 0
  %v500 = vsel %vm499, %v498, 0
  %v501 = vshrl.u32 %v500, 5
  %v502 = vand.u32 %v500, 31
  %v503 = vsub.s32 32, %v502
  %v504 = vshrl.u32 683565275, %v503
  %v505 = vshll.u32 683565275, %v502
  %v506 = vshrl.u32 2475754826, %v503
  %v507 = vor.u32 %v505, %v506
  %v508 = vshll.u32 2475754826, %v502
  %v509 = vshrl.u32 2131351028, %v503
  %v510 = vor.u32 %v508, %v509
  %v511 = vshll.u32 2131351028, %v502
  %v512 = vshrl.u32 2102212464, %v503
  %v513 = vor.u32 %v511, %v512
  %v514 = vshll.u32 2102212464, %v502
  %v515 = vshrl.u32 920167782, %v503
  %v516 = vor.u32 %v514, %v515
  %v517 = vshll.u32 920167782, %v502
  %v518 = vshrl.u32 1326507024, %v503
  %v519 = vor.u32 %v517, %v518
  %vm520 = vcmp.lt.s32.totalorder %v501, 1
  %vm521 = vcmp.lt.s32.totalorder %v501, 2
  %vm522 = vcmp.lt.s32.totalorder %v501, 3
  %vm523 = vcmp.lt.s32.totalorder %v501, 4
  %v524 = vsel %vm520, %v504, %v507
  %v525 = vsel %vm523, %v513, 2102212464
  %v526 = vsel %vm522, %v510, %v525
  %v527 = vsel %vm521, %v524, %v526
  %v528 = vsel %vm520, %v507, %v510
  %v529 = vsel %vm523, %v516, 920167782
  %v530 = vsel %vm522, %v513, %v529
  %v531 = vsel %vm521, %v528, %v530
  %v532 = vsel %vm520, %v510, %v513
  %v533 = vsel %vm523, %v519, 1326507024
  %v534 = vsel %vm522, %v516, %v533
  %v535 = vsel %vm521, %v532, %v534
  %v536 = vshll.u32 %v496, 8
  %v537 = vmul.u32.u64.compose %v536, %v535
  %v538 = vextract.low.u32 %v537
  %v539 = vextract.high.u32 %v537
  %v540 = vmul.u32.u64.compose %v536, %v531
  %v541 = vextract.low.u32 %v540
  %v542 = vextract.high.u32 %v540
  %v543 = vmul.u32 %v536, %v527
  %v544 = vadd.s32 %v539, %v541
  %vm545 = vc.u32 %v539, %v541
  %v546 = vadd.s32 %v542, 1
  %v547 = vsel %vm545, %v546, %v542
  %v548 = vadd.s32 %v543, %v547
  %v549 = vadd.s32 %v548, 536870912
  %v550 = vshrl.u32 %v549, 30
  %v551 = vshll.u32 %v550, 30
  %v552 = vsub.s32 %v548, %v551
  %vm553 = vcmp.lt.s32.totalorder %v552, 0
  %v554 = vsub.s32 0, %v552
  %v555 = vsel %vm553, %v554, %v552
  %v556 = vclz %v555
  %v557 = vsub.s32 %v556, 2
  %vm558 = vcmp.gt.s32.totalorder 0, %v557
  %v559 = vsel %vm558, 0, %v557
  %v560 = vsub.s32 32, %v559
  %v561 = vshll.u32 %v552, %v559
  %v562 = vshrl.u32 %v544, %v560
  %v563 = vor.u32 %v561, %v562
  %v564 = vsub.s32 4294967266, %v559
  %v565 = vadd.s32 %v564, 127
  %v566 = vshll.u32 %v565, 23
  %v567 = vor.u32 4788187, %v566
  %v568 = vand.u32 2147483647, %v567
  %v570 = vcvt.s32.f32 %v563
  %v571 = vmul.f32 %v570, %v568
  %v572 = vxor.u32 %v571, 2147483648
  %v573 = vsel %vm490, %v572, %v571
  %v574 = vsub.s32 4, %v550
  %v575 = vsel %vm490, %v574, %v550
  %v576 = vsel %vm489, %v472, %v573
  %v577 = vsel %vm489, 0, %v575
  %v578 = vcosq.f32.pop %v576
  %v579 = vsinq.f32.pop %v576
  %vm580 = vweird.f32 %v472
  %v581 = vadd.s32 %v577, 3
  %v582 = vand.u32 %v581, 3
  %vm583 = vcmp.lt.s32.totalorder %v582, 2
  %vm584 = vcmp.eq.s32.totalorder %v582, 0
  %v585 = vxor.u32 %v579, 2147483648
  %v586 = vsel %vm584, %v578, %v585
  %vm587 = vcmp.eq.s32.totalorder %v582, 2
  %v588 = vxor.u32 %v578, 2147483648
  %v589 = vsel %vm587, %v588, %v579
  %v590 = vsel %vm583, %v586, %v589
  %v591 = vsel %vm580, nan, %v590
  %v592 = vand.u32 2147483647, %v473
  %vm593 = vcmp.le.f32.partialorder %v592, 0.7853982
  %vm594 = vcmp.lt.s32.totalorder %v473, 0
  %v595 = vand.u32 %v473, 2139095040
  %v596 = vshrl.u32 %v595, 23
  %v597 = vsub.s32 %v596, 127
  %v598 = vand.u32 2147483647, %v473
  %v599 = vand.u32 %v598, 8388607
  %v600 = vor.u32 %v599, 8388608
  %v601 = vsub.s32 0, %v600
  %v602 = vadd.s32 %v597, 1
  %vm603 = vcmp.gt.s32.totalorder %v602, 0
  %v604 = vsel %vm603, %v602, 0
  %v605 = vshrl.u32 %v604, 5
  %v606 = vand.u32 %v604, 31
  %v607 = vsub.s32 32, %v606
  %v608 = vshrl.u32 683565275, %v607
  %v609 = vshll.u32 683565275, %v606
  %v610 = vshrl.u32 2475754826, %v607
  %v611 = vor.u32 %v609, %v610
  %v612 = vshll.u32 2475754826, %v606
  %v613 = vshrl.u32 2131351028, %v607
  %v614 = vor.u32 %v612, %v613
  %v615 = vshll.u32 2131351028, %v606
  %v616 = vshrl.u32 2102212464, %v607
  %v617 = vor.u32 %v615, %v616
  %v618 = vshll.u32 2102212464, %v606
  %v619 = vshrl.u32 920167782, %v607
  %v620 = vor.u32 %v618, %v619
  %v621 = vshll.u32 920167782, %v606
  %v622 = vshrl.u32 1326507024, %v607
  %v623 = vor.u32 %v621, %v622
  %vm624 = vcmp.lt.s32.totalorder %v605, 1
  %vm625 = vcmp.lt.s32.totalorder %v605, 2
  %vm626 = vcmp.lt.s32.totalorder %v605, 3
  %vm627 = vcmp.lt.s32.totalorder %v605, 4
  %v628 = vsel %vm624, %v608, %v611
  %v629 = vsel %vm627, %v617, 2102212464
  %v630 = vsel %vm626, %v614, %v629
  %v631 = vsel %vm625, %v628, %v630
  %v632 = vsel %vm624, %v611, %v614
  %v633 = vsel %vm627, %v620, 920167782
  %v634 = vsel %vm626, %v617, %v633
  %v635 = vsel %vm625, %v632, %v634
  %v636 = vsel %vm624, %v614, %v617
  %v637 = vsel %vm627, %v623, 1326507024
  %v638 = vsel %vm626, %v620, %v637
  %v639 = vsel %vm625, %v636, %v638
  %v640 = vshll.u32 %v600, 8
  %v641 = vmul.u32.u64.compose %v640, %v639
  %v642 = vextract.low.u32 %v641
  %v643 = vextract.high.u32 %v641
  %v644 = vmul.u32.u64.compose %v640, %v635
  %v645 = vextract.low.u32 %v644
  %v646 = vextract.high.u32 %v644
  %v647 = vmul.u32 %v640, %v631
  %v648 = vadd.s32 %v643, %v645
  %vm649 = vc.u32 %v643, %v645
  %v650 = vadd.s32 %v646, 1
  %v651 = vsel %vm649, %v650, %v646
  %v652 = vadd.s32 %v647, %v651
  %v653 = vadd.s32 %v652, 536870912
  %v654 = vshrl.u32 %v653, 30
  %v655 = vshll.u32 %v654, 30
  %v656 = vsub.s32 %v652, %v655
  %vm657 = vcmp.lt.s32.totalorder %v656, 0
  %v658 = vsub.s32 0, %v656
  %v659 = vsel %vm657, %v658, %v656
  %v660 = vclz %v659
  %v661 = vsub.s32 %v660, 2
  %vm662 = vcmp.gt.s32.totalorder 0, %v661
  %v663 = vsel %vm662, 0, %v661
  %v664 = vsub.s32 32, %v663
  %v665 = vshll.u32 %v656, %v663
  %v666 = vshrl.u32 %v648, %v664
  %v667 = vor.u32 %v665, %v666
  %v668 = vsub.s32 4294967266, %v663
  %v669 = vadd.s32 %v668, 127
  %v670 = vshll.u32 %v669, 23
  %v671 = vor.u32 4788187, %v670
  %v672 = vand.u32 2147483647, %v671
  %v674 = vcvt.s32.f32 %v667
  %v675 = vmul.f32 %v674, %v672
  %v676 = vxor.u32 %v675, 2147483648
  %v677 = vsel %vm594, %v676, %v675
  %v678 = vsub.s32 4, %v654
  %v679 = vsel %vm594, %v678, %v654
  %v680 = vsel %vm593, %v473, %v677
  %v681 = vsel %vm593, 0, %v679
  %v682 = vcosq.f32.pop %v680
  %v683 = vsinq.f32.pop %v680
  %vm684 = vweird.f32 %v473
  %v685 = vadd.s32 %v681, 3
  %v686 = vand.u32 %v685, 3
  %vm687 = vcmp.lt.s32.totalorder %v686, 2
  %vm688 = vcmp.eq.s32.totalorder %v686, 0
  %v689 = vxor.u32 %v683, 2147483648
  %v690 = vsel %vm688, %v682, %v689
  %vm691 = vcmp.eq.s32.totalorder %v686, 2
  %v692 = vxor.u32 %v682, 2147483648
  %v693 = vsel %vm691, %v692, %v683
  %v694 = vsel %vm687, %v690, %v693
  %v695 = vsel %vm684, nan, %v694
  %v696 = vand.u32 2147483647, %v474
  %vm697 = vcmp.le.f32.partialorder %v696, 0.7853982
  %vm698 = vcmp.lt.s32.totalorder %v474, 0
  %v699 = vand.u32 %v474, 2139095040
  %v700 = vshrl.u32 %v699, 23
  %v701 = vsub.s32 %v700, 127
  %v702 = vand.u32 2147483647, %v474
  %v703 = vand.u32 %v702, 8388607
  %v704 = vor.u32 %v703, 8388608
  %v705 = vsub.s32 0, %v704
  %v706 = vadd.s32 %v701, 1
  %vm707 = vcmp.gt.s32.totalorder %v706, 0
  %v708 = vsel %vm707, %v706, 0
  %v709 = vshrl.u32 %v708, 5
  %v710 = vand.u32 %v708, 31
  %v711 = vsub.s32 32, %v710
  %v712 = vshrl.u32 683565275, %v711
  %v713 = vshll.u32 683565275, %v710
  %v714 = vshrl.u32 2475754826, %v711
  %v715 = vor.u32 %v713, %v714
  %v716 = vshll.u32 2475754826, %v710
  %v717 = vshrl.u32 2131351028, %v711
  %v718 = vor.u32 %v716, %v717
  %v719 = vshll.u32 2131351028, %v710
  %v720 = vshrl.u32 2102212464, %v711
  %v721 = vor.u32 %v719, %v720
  %v722 = vshll.u32 2102212464, %v710
  %v723 = vshrl.u32 920167782, %v711
  %v724 = vor.u32 %v722, %v723
  %v725 = vshll.u32 920167782, %v710
  %v726 = vshrl.u32 1326507024, %v711
  %v727 = vor.u32 %v725, %v726
  %vm728 = vcmp.lt.s32.totalorder %v709, 1
  %vm729 = vcmp.lt.s32.totalorder %v709, 2
  %vm730 = vcmp.lt.s32.totalorder %v709, 3
  %vm731 = vcmp.lt.s32.totalorder %v709, 4
  %v732 = vsel %vm728, %v712, %v715
  %v733 = vsel %vm731, %v721, 2102212464
  %v734 = vsel %vm730, %v718, %v733
  %v735 = vsel %vm729, %v732, %v734
  %v736 = vsel %vm728, %v715, %v718
  %v737 = vsel %vm731, %v724, 920167782
  %v738 = vsel %vm730, %v721, %v737
  %v739 = vsel %vm729, %v736, %v738
  %v740 = vsel %vm728, %v718, %v721
  %v741 = vsel %vm731, %v727, 1326507024
  %v742 = vsel %vm730, %v724, %v741
  %v743 = vsel %vm729, %v740, %v742
  %v744 = vshll.u32 %v704, 8
  %v745 = vmul.u32.u64.compose %v744, %v743
  %v746 = vextract.low.u32 %v745
  %v747 = vextract.high.u32 %v745
  %v748 = vmul.u32.u64.compose %v744, %v739
  %v749 = vextract.low.u32 %v748
  %v750 = vextract.high.u32 %v748
  %v751 = vmul.u32 %v744, %v735
  %v752 = vadd.s32 %v747, %v749
  %vm753 = vc.u32 %v747, %v749
  %v754 = vadd.s32 %v750, 1
  %v755 = vsel %vm753, %v754, %v750
  %v756 = vadd.s32 %v751, %v755
  %v757 = vadd.s32 %v756, 536870912
  %v758 = vshrl.u32 %v757, 30
  %v759 = vshll.u32 %v758, 30
  %v760 = vsub.s32 %v756, %v759
  %vm761 = vcmp.lt.s32.totalorder %v760, 0
  %v762 = vsub.s32 0, %v760
  %v763 = vsel %vm761, %v762, %v760
  %v764 = vclz %v763
  %v765 = vsub.s32 %v764, 2
  %vm766 = vcmp.gt.s32.totalorder 0, %v765
  %v767 = vsel %vm766, 0, %v765
  %v768 = vsub.s32 32, %v767
  %v769 = vshll.u32 %v760, %v767
  %v770 = vshrl.u32 %v752, %v768
  %v771 = vor.u32 %v769, %v770
  %v772 = vsub.s32 4294967266, %v767
  %v773 = vadd.s32 %v772, 127
  %v774 = vshll.u32 %v773, 23
  %v775 = vor.u32 4788187, %v774
  %v776 = vand.u32 2147483647, %v775
  %v778 = vcvt.s32.f32 %v771
  %v779 = vmul.f32 %v778, %v776
  %v780 = vxor.u32 %v779, 2147483648
  %v781 = vsel %vm698, %v780, %v779
  %v782 = vsub.s32 4, %v758
  %v783 = vsel %vm698, %v782, %v758
  %v784 = vsel %vm697, %v474, %v781
  %v785 = vsel %vm697, 0, %v783
  %v786 = vcosq.f32.pop %v784
  %v787 = vsinq.f32.pop %v784
  %vm788 = vweird.f32 %v474
  %v789 = vadd.s32 %v785, 3
  %v790 = vand.u32 %v789, 3
  %vm791 = vcmp.lt.s32.totalorder %v790, 2
  %vm792 = vcmp.eq.s32.totalorder %v790, 0
  %v793 = vxor.u32 %v787, 2147483648
  %v794 = vsel %vm792, %v786, %v793
  %vm795 = vcmp.eq.s32.totalorder %v790, 2
  %v796 = vxor.u32 %v786, 2147483648
  %v797 = vsel %vm795, %v796, %v787
  %v798 = vsel %vm791, %v794, %v797
  %v799 = vsel %vm788, nan, %v798
  %v800 = vand.u32 2147483647, %v475
  %vm801 = vcmp.le.f32.partialorder %v800, 0.7853982
  %vm802 = vcmp.lt.s32.totalorder %v475, 0
  %v803 = vand.u32 %v475, 2139095040
  %v804 = vshrl.u32 %v803, 23
  %v805 = vsub.s32 %v804, 127
  %v806 = vand.u32 2147483647, %v475
  %v807 = vand.u32 %v806, 8388607
  %v808 = vor.u32 %v807, 8388608
  %v809 = vsub.s32 0, %v808
  %v810 = vadd.s32 %v805, 1
  %vm811 = vcmp.gt.s32.totalorder %v810, 0
  %v812 = vsel %vm811, %v810, 0
  %v813 = vshrl.u32 %v812, 5
  %v814 = vand.u32 %v812, 31
  %v815 = vsub.s32 32, %v814
  %v816 = vshrl.u32 683565275, %v815
  %v817 = vshll.u32 683565275, %v814
  %v818 = vshrl.u32 2475754826, %v815
  %v819 = vor.u32 %v817, %v818
  %v820 = vshll.u32 2475754826, %v814
  %v821 = vshrl.u32 2131351028, %v815
  %v822 = vor.u32 %v820, %v821
  %v823 = vshll.u32 2131351028, %v814
  %v824 = vshrl.u32 2102212464, %v815
  %v825 = vor.u32 %v823, %v824
  %v826 = vshll.u32 2102212464, %v814
  %v827 = vshrl.u32 920167782, %v815
  %v828 = vor.u32 %v826, %v827
  %v829 = vshll.u32 920167782, %v814
  %v830 = vshrl.u32 1326507024, %v815
  %v831 = vor.u32 %v829, %v830
  %vm832 = vcmp.lt.s32.totalorder %v813, 1
  %vm833 = vcmp.lt.s32.totalorder %v813, 2
  %vm834 = vcmp.lt.s32.totalorder %v813, 3
  %vm835 = vcmp.lt.s32.totalorder %v813, 4
  %v836 = vsel %vm832, %v816, %v819
  %v837 = vsel %vm835, %v825, 2102212464
  %v838 = vsel %vm834, %v822, %v837
  %v839 = vsel %vm833, %v836, %v838
  %v840 = vsel %vm832, %v819, %v822
  %v841 = vsel %vm835, %v828, 920167782
  %v842 = vsel %vm834, %v825, %v841
  %v843 = vsel %vm833, %v840, %v842
  %v844 = vsel %vm832, %v822, %v825
  %v845 = vsel %vm835, %v831, 1326507024
  %v846 = vsel %vm834, %v828, %v845
  %v847 = vsel %vm833, %v844, %v846
  %v848 = vshll.u32 %v808, 8
  %v849 = vmul.u32.u64.compose %v848, %v847
  %v850 = vextract.low.u32 %v849
  %v851 = vextract.high.u32 %v849
  %v852 = vmul.u32.u64.compose %v848, %v843
  %v853 = vextract.low.u32 %v852
  %v854 = vextract.high.u32 %v852
  %v855 = vmul.u32 %v848, %v839
  %v856 = vadd.s32 %v851, %v853
  %vm857 = vc.u32 %v851, %v853
  %v858 = vadd.s32 %v854, 1
  %v859 = vsel %vm857, %v858, %v854
  %v860 = vadd.s32 %v855, %v859
  %v861 = vadd.s32 %v860, 536870912
  %v862 = vshrl.u32 %v861, 30
  %v863 = vshll.u32 %v862, 30
  %v864 = vsub.s32 %v860, %v863
  %vm865 = vcmp.lt.s32.totalorder %v864, 0
  %v866 = vsub.s32 0, %v864
  %v867 = vsel %vm865, %v866, %v864
  %v868 = vclz %v867
  %v869 = vsub.s32 %v868, 2
  %vm870 = vcmp.gt.s32.totalorder 0, %v869
  %v871 = vsel %vm870, 0, %v869
  %v872 = vsub.s32 32, %v871
  %v873 = vshll.u32 %v864, %v871
  %v874 = vshrl.u32 %v856, %v872
  %v875 = vor.u32 %v873, %v874
  %v876 = vsub.s32 4294967266, %v871
  %v877 = vadd.s32 %v876, 127
  %v878 = vshll.u32 %v877, 23
  %v879 = vor.u32 4788187, %v878
  %v880 = vand.u32 2147483647, %v879
  %v882 = vcvt.s32.f32 %v875
  %v883 = vmul.f32 %v882, %v880
  %v884 = vxor.u32 %v883, 2147483648
  %v885 = vsel %vm802, %v884, %v883
  %v886 = vsub.s32 4, %v862
  %v887 = vsel %vm802, %v886, %v862
  %v888 = vsel %vm801, %v475, %v885
  %v889 = vsel %vm801, 0, %v887
  %v890 = vcosq.f32.pop %v888
  %v891 = vsinq.f32.pop %v888
  %vm892 = vweird.f32 %v475
  %v893 = vadd.s32 %v889, 3
  %v894 = vand.u32 %v893, 3
  %vm895 = vcmp.lt.s32.totalorder %v894, 2
  %vm896 = vcmp.eq.s32.totalorder %v894, 0
  %v897 = vxor.u32 %v891, 2147483648
  %v898 = vsel %vm896, %v890, %v897
  %vm899 = vcmp.eq.s32.totalorder %v894, 2
  %v900 = vxor.u32 %v890, 2147483648
  %v901 = vsel %vm899, %v900, %v891
  %v902 = vsel %vm895, %v898, %v901
  %v903 = vsel %vm892, nan, %v902
  %v904 = vand.u32 2147483647, %v476
  %vm905 = vcmp.le.f32.partialorder %v904, 0.7853982
  %vm906 = vcmp.lt.s32.totalorder %v476, 0
  %v907 = vand.u32 %v476, 2139095040
  %v908 = vshrl.u32 %v907, 23
  %v909 = vsub.s32 %v908, 127
  %v910 = vand.u32 2147483647, %v476
  %v911 = vand.u32 %v910, 8388607
  %v912 = vor.u32 %v911, 8388608
  %v913 = vsub.s32 0, %v912
  %v914 = vadd.s32 %v909, 1
  %vm915 = vcmp.gt.s32.totalorder %v914, 0
  %v916 = vsel %vm915, %v914, 0
  %v917 = vshrl.u32 %v916, 5
  %v918 = vand.u32 %v916, 31
  %v919 = vsub.s32 32, %v918
  %v920 = vshrl.u32 683565275, %v919
  %v921 = vshll.u32 683565275, %v918
  %v922 = vshrl.u32 2475754826, %v919
  %v923 = vor.u32 %v921, %v922
  %v924 = vshll.u32 2475754826, %v918
  %v925 = vshrl.u32 2131351028, %v919
  %v926 = vor.u32 %v924, %v925
  %v927 = vshll.u32 2131351028, %v918
  %v928 = vshrl.u32 2102212464, %v919
  %v929 = vor.u32 %v927, %v928
  %v930 = vshll.u32 2102212464, %v918
  %v931 = vshrl.u32 920167782, %v919
  %v932 = vor.u32 %v930, %v931
  %v933 = vshll.u32 920167782, %v918
  %v934 = vshrl.u32 1326507024, %v919
  %v935 = vor.u32 %v933, %v934
  %vm936 = vcmp.lt.s32.totalorder %v917, 1
  %vm937 = vcmp.lt.s32.totalorder %v917, 2
  %vm938 = vcmp.lt.s32.totalorder %v917, 3
  %vm939 = vcmp.lt.s32.totalorder %v917, 4
  %v940 = vsel %vm936, %v920, %v923
  %v941 = vsel %vm939, %v929, 2102212464
  %v942 = vsel %vm938, %v926, %v941
  %v943 = vsel %vm937, %v940, %v942
  %v944 = vsel %vm936, %v923, %v926
  %v945 = vsel %vm939, %v932, 920167782
  %v946 = vsel %vm938, %v929, %v945
  %v947 = vsel %vm937, %v944, %v946
  %v948 = vsel %vm936, %v926, %v929
  %v949 = vsel %vm939, %v935, 1326507024
  %v950 = vsel %vm938, %v932, %v949
  %v951 = vsel %vm937, %v948, %v950
  %v952 = vshll.u32 %v912, 8
  %v953 = vmul.u32.u64.compose %v952, %v951
  %v954 = vextract.low.u32 %v953
  %v955 = vextract.high.u32 %v953
  %v956 = vmul.u32.u64.compose %v952, %v947
  %v957 = vextract.low.u32 %v956
  %v958 = vextract.high.u32 %v956
  %v959 = vmul.u32 %v952, %v943
  %v960 = vadd.s32 %v955, %v957
  %vm961 = vc.u32 %v955, %v957
  %v962 = vadd.s32 %v958, 1
  %v963 = vsel %vm961, %v962, %v958
  %v964 = vadd.s32 %v959, %v963
  %v965 = vadd.s32 %v964, 536870912
  %v966 = vshrl.u32 %v965, 30
  %v967 = vshll.u32 %v966, 30
  %v968 = vsub.s32 %v964, %v967
  %vm969 = vcmp.lt.s32.totalorder %v968, 0
  %v970 = vsub.s32 0, %v968
  %v971 = vsel %vm969, %v970, %v968
  %v972 = vclz %v971
  %v973 = vsub.s32 %v972, 2
  %vm974 = vcmp.gt.s32.totalorder 0, %v973
  %v975 = vsel %vm974, 0, %v973
  %v976 = vsub.s32 32, %v975
  %v977 = vshll.u32 %v968, %v975
  %v978 = vshrl.u32 %v960, %v976
  %v979 = vor.u32 %v977, %v978
  %v980 = vsub.s32 4294967266, %v975
  %v981 = vadd.s32 %v980, 127
  %v982 = vshll.u32 %v981, 23
  %v983 = vor.u32 4788187, %v982
  %v984 = vand.u32 2147483647, %v983
  %v986 = vcvt.s32.f32 %v979
  %v987 = vmul.f32 %v986, %v984
  %v988 = vxor.u32 %v987, 2147483648
  %v989 = vsel %vm906, %v988, %v987
  %v990 = vsub.s32 4, %v966
  %v991 = vsel %vm906, %v990, %v966
  %v992 = vsel %vm905, %v476, %v989
  %v993 = vsel %vm905, 0, %v991
  %v994 = vcosq.f32.pop %v992
  %v995 = vsinq.f32.pop %v992
  %vm996 = vweird.f32 %v476
  %v997 = vadd.s32 %v993, 3
  %v998 = vand.u32 %v997, 3
  %vm999 = vcmp.lt.s32.totalorder %v998, 2
  %vm1000 = vcmp.eq.s32.totalorder %v998, 0
  %v1001 = vxor.u32 %v995, 2147483648
  %v1002 = vsel %vm1000, %v994, %v1001
  %vm1003 = vcmp.eq.s32.totalorder %v998, 2
  %v1004 = vxor.u32 %v994, 2147483648
  %v1005 = vsel %vm1003, %v1004, %v995
  %v1006 = vsel %vm999, %v1002, %v1005
  %v1007 = vsel %vm996, nan, %v1006
  %v1008 = vand.u32 2147483647, %v477
  %vm1009 = vcmp.le.f32.partialorder %v1008, 0.7853982
  %vm1010 = vcmp.lt.s32.totalorder %v477, 0
  %v1011 = vand.u32 %v477, 2139095040
  %v1012 = vshrl.u32 %v1011, 23
  %v1013 = vsub.s32 %v1012, 127
  %v1014 = vand.u32 2147483647, %v477
  %v1015 = vand.u32 %v1014, 8388607
  %v1016 = vor.u32 %v1015, 8388608
  %v1017 = vsub.s32 0, %v1016
  %v1018 = vadd.s32 %v1013, 1
  %vm1019 = vcmp.gt.s32.totalorder %v1018, 0
  %v1020 = vsel %vm1019, %v1018, 0
  %v1021 = vshrl.u32 %v1020, 5
  %v1022 = vand.u32 %v1020, 31
  %v1023 = vsub.s32 32, %v1022
  %v1024 = vshrl.u32 683565275, %v1023
  %v1025 = vshll.u32 683565275, %v1022
  %v1026 = vshrl.u32 2475754826, %v1023
  %v1027 = vor.u32 %v1025, %v1026
  %v1028 = vshll.u32 2475754826, %v1022
  %v1029 = vshrl.u32 2131351028, %v1023
  %v1030 = vor.u32 %v1028, %v1029
  %v1031 = vshll.u32 2131351028, %v1022
  %v1032 = vshrl.u32 2102212464, %v1023
  %v1033 = vor.u32 %v1031, %v1032
  %v1034 = vshll.u32 2102212464, %v1022
  %v1035 = vshrl.u32 920167782, %v1023
  %v1036 = vor.u32 %v1034, %v1035
  %v1037 = vshll.u32 920167782, %v1022
  %v1038 = vshrl.u32 1326507024, %v1023
  %v1039 = vor.u32 %v1037, %v1038
  %vm1040 = vcmp.lt.s32.totalorder %v1021, 1
  %vm1041 = vcmp.lt.s32.totalorder %v1021, 2
  %vm1042 = vcmp.lt.s32.totalorder %v1021, 3
  %vm1043 = vcmp.lt.s32.totalorder %v1021, 4
  %v1044 = vsel %vm1040, %v1024, %v1027
  %v1045 = vsel %vm1043, %v1033, 2102212464
  %v1046 = vsel %vm1042, %v1030, %v1045
  %v1047 = vsel %vm1041, %v1044, %v1046
  %v1048 = vsel %vm1040, %v1027, %v1030
  %v1049 = vsel %vm1043, %v1036, 920167782
  %v1050 = vsel %vm1042, %v1033, %v1049
  %v1051 = vsel %vm1041, %v1048, %v1050
  %v1052 = vsel %vm1040, %v1030, %v1033
  %v1053 = vsel %vm1043, %v1039, 1326507024
  %v1054 = vsel %vm1042, %v1036, %v1053
  %v1055 = vsel %vm1041, %v1052, %v1054
  %v1056 = vshll.u32 %v1016, 8
  %v1057 = vmul.u32.u64.compose %v1056, %v1055
  %v1058 = vextract.low.u32 %v1057
  %v1059 = vextract.high.u32 %v1057
  %v1060 = vmul.u32.u64.compose %v1056, %v1051
  %v1061 = vextract.low.u32 %v1060
  %v1062 = vextract.high.u32 %v1060
  %v1063 = vmul.u32 %v1056, %v1047
  %v1064 = vadd.s32 %v1059, %v1061
  %vm1065 = vc.u32 %v1059, %v1061
  %v1066 = vadd.s32 %v1062, 1
  %v1067 = vsel %vm1065, %v1066, %v1062
  %v1068 = vadd.s32 %v1063, %v1067
  %v1069 = vadd.s32 %v1068, 536870912
  %v1070 = vshrl.u32 %v1069, 30
  %v1071 = vshll.u32 %v1070, 30
  %v1072 = vsub.s32 %v1068, %v1071
  %vm1073 = vcmp.lt.s32.totalorder %v1072, 0
  %v1074 = vsub.s32 0, %v1072
  %v1075 = vsel %vm1073, %v1074, %v1072
  %v1076 = vclz %v1075
  %v1077 = vsub.s32 %v1076, 2
  %vm1078 = vcmp.gt.s32.totalorder 0, %v1077
  %v1079 = vsel %vm1078, 0, %v1077
  %v1080 = vsub.s32 32, %v1079
  %v1081 = vshll.u32 %v1072, %v1079
  %v1082 = vshrl.u32 %v1064, %v1080
  %v1083 = vor.u32 %v1081, %v1082
  %v1084 = vsub.s32 4294967266, %v1079
  %v1085 = vadd.s32 %v1084, 127
  %v1086 = vshll.u32 %v1085, 23
  %v1087 = vor.u32 4788187, %v1086
  %v1088 = vand.u32 2147483647, %v1087
  %v1090 = vcvt.s32.f32 %v1083
  %v1091 = vmul.f32 %v1090, %v1088
  %v1092 = vxor.u32 %v1091, 2147483648
  %v1093 = vsel %vm1010, %v1092, %v1091
  %v1094 = vsub.s32 4, %v1070
  %v1095 = vsel %vm1010, %v1094, %v1070
  %v1096 = vsel %vm1009, %v477, %v1093
  %v1097 = vsel %vm1009, 0, %v1095
  %v1098 = vcosq.f32.pop %v1096
  %v1099 = vsinq.f32.pop %v1096
  %vm1100 = vweird.f32 %v477
  %v1101 = vadd.s32 %v1097, 3
  %v1102 = vand.u32 %v1101, 3
  %vm1103 = vcmp.lt.s32.totalorder %v1102, 2
  %vm1104 = vcmp.eq.s32.totalorder %v1102, 0
  %v1105 = vxor.u32 %v1099, 2147483648
  %v1106 = vsel %vm1104, %v1098, %v1105
  %vm1107 = vcmp.eq.s32.totalorder %v1102, 2
  %v1108 = vxor.u32 %v1098, 2147483648
  %v1109 = vsel %vm1107, %v1108, %v1099
  %v1110 = vsel %vm1103, %v1106, %v1109
  %v1111 = vsel %vm1100, nan, %v1110
  %v1112 = vand.u32 2147483647, %v478
  %vm1113 = vcmp.le.f32.partialorder %v1112, 0.7853982
  %vm1114 = vcmp.lt.s32.totalorder %v478, 0
  %v1115 = vand.u32 %v478, 2139095040
  %v1116 = vshrl.u32 %v1115, 23
  %v1117 = vsub.s32 %v1116, 127
  %v1118 = vand.u32 2147483647, %v478
  %v1119 = vand.u32 %v1118, 8388607
  %v1120 = vor.u32 %v1119, 8388608
  %v1121 = vsub.s32 0, %v1120
  %v1122 = vadd.s32 %v1117, 1
  %vm1123 = vcmp.gt.s32.totalorder %v1122, 0
  %v1124 = vsel %vm1123, %v1122, 0
  %v1125 = vshrl.u32 %v1124, 5
  %v1126 = vand.u32 %v1124, 31
  %v1127 = vsub.s32 32, %v1126
  %v1128 = vshrl.u32 683565275, %v1127
  %v1129 = vshll.u32 683565275, %v1126
  %v1130 = vshrl.u32 2475754826, %v1127
  %v1131 = vor.u32 %v1129, %v1130
  %v1132 = vshll.u32 2475754826, %v1126
  %v1133 = vshrl.u32 2131351028, %v1127
  %v1134 = vor.u32 %v1132, %v1133
  %v1135 = vshll.u32 2131351028, %v1126
  %v1136 = vshrl.u32 2102212464, %v1127
  %v1137 = vor.u32 %v1135, %v1136
  %v1138 = vshll.u32 2102212464, %v1126
  %v1139 = vshrl.u32 920167782, %v1127
  %v1140 = vor.u32 %v1138, %v1139
  %v1141 = vshll.u32 920167782, %v1126
  %v1142 = vshrl.u32 1326507024, %v1127
  %v1143 = vor.u32 %v1141, %v1142
  %vm1144 = vcmp.lt.s32.totalorder %v1125, 1
  %vm1145 = vcmp.lt.s32.totalorder %v1125, 2
  %vm1146 = vcmp.lt.s32.totalorder %v1125, 3
  %vm1147 = vcmp.lt.s32.totalorder %v1125, 4
  %v1148 = vsel %vm1144, %v1128, %v1131
  %v1149 = vsel %vm1147, %v1137, 2102212464
  %v1150 = vsel %vm1146, %v1134, %v1149
  %v1151 = vsel %vm1145, %v1148, %v1150
  %v1152 = vsel %vm1144, %v1131, %v1134
  %v1153 = vsel %vm1147, %v1140, 920167782
  %v1154 = vsel %vm1146, %v1137, %v1153
  %v1155 = vsel %vm1145, %v1152, %v1154
  %v1156 = vsel %vm1144, %v1134, %v1137
  %v1157 = vsel %vm1147, %v1143, 1326507024
  %v1158 = vsel %vm1146, %v1140, %v1157
  %v1159 = vsel %vm1145, %v1156, %v1158
  %v1160 = vshll.u32 %v1120, 8
  %v1161 = vmul.u32.u64.compose %v1160, %v1159
  %v1162 = vextract.low.u32 %v1161
  %v1163 = vextract.high.u32 %v1161
  %v1164 = vmul.u32.u64.compose %v1160, %v1155
  %v1165 = vextract.low.u32 %v1164
  %v1166 = vextract.high.u32 %v1164
  %v1167 = vmul.u32 %v1160, %v1151
  %v1168 = vadd.s32 %v1163, %v1165
  %vm1169 = vc.u32 %v1163, %v1165
  %v1170 = vadd.s32 %v1166, 1
  %v1171 = vsel %vm1169, %v1170, %v1166
  %v1172 = vadd.s32 %v1167, %v1171
  %v1173 = vadd.s32 %v1172, 536870912
  %v1174 = vshrl.u32 %v1173, 30
  %v1175 = vshll.u32 %v1174, 30
  %v1176 = vsub.s32 %v1172, %v1175
  %vm1177 = vcmp.lt.s32.totalorder %v1176, 0
  %v1178 = vsub.s32 0, %v1176
  %v1179 = vsel %vm1177, %v1178, %v1176
  %v1180 = vclz %v1179
  %v1181 = vsub.s32 %v1180, 2
  %vm1182 = vcmp.gt.s32.totalorder 0, %v1181
  %v1183 = vsel %vm1182, 0, %v1181
  %v1184 = vsub.s32 32, %v1183
  %v1185 = vshll.u32 %v1176, %v1183
  %v1186 = vshrl.u32 %v1168, %v1184
  %v1187 = vor.u32 %v1185, %v1186
  %v1188 = vsub.s32 4294967266, %v1183
  %v1189 = vadd.s32 %v1188, 127
  %v1190 = vshll.u32 %v1189, 23
  %v1191 = vor.u32 4788187, %v1190
  %v1192 = vand.u32 2147483647, %v1191
  %v1194 = vcvt.s32.f32 %v1187
  %v1195 = vmul.f32 %v1194, %v1192
  %v1196 = vxor.u32 %v1195, 2147483648
  %v1197 = vsel %vm1114, %v1196, %v1195
  %v1198 = vsub.s32 4, %v1174
  %v1199 = vsel %vm1114, %v1198, %v1174
  %v1200 = vsel %vm1113, %v478, %v1197
  %v1201 = vsel %vm1113, 0, %v1199
  %v1202 = vcosq.f32.pop %v1200
  %v1203 = vsinq.f32.pop %v1200
  %vm1204 = vweird.f32 %v478
  %v1205 = vadd.s32 %v1201, 3
  %v1206 = vand.u32 %v1205, 3
  %vm1207 = vcmp.lt.s32.totalorder %v1206, 2
  %vm1208 = vcmp.eq.s32.totalorder %v1206, 0
  %v1209 = vxor.u32 %v1203, 2147483648
  %v1210 = vsel %vm1208, %v1202, %v1209
  %vm1211 = vcmp.eq.s32.totalorder %v1206, 2
  %v1212 = vxor.u32 %v1202, 2147483648
  %v1213 = vsel %vm1211, %v1212, %v1203
  %v1214 = vsel %vm1207, %v1210, %v1213
  %v1215 = vsel %vm1204, nan, %v1214
  %v1216 = vand.u32 2147483647, %v479
  %vm1217 = vcmp.le.f32.partialorder %v1216, 0.7853982
  %vm1218 = vcmp.lt.s32.totalorder %v479, 0
  %v1219 = vand.u32 %v479, 2139095040
  %v1220 = vshrl.u32 %v1219, 23
  %v1221 = vsub.s32 %v1220, 127
  %v1222 = vand.u32 2147483647, %v479
  %v1223 = vand.u32 %v1222, 8388607
  %v1224 = vor.u32 %v1223, 8388608
  %v1225 = vsub.s32 0, %v1224
  %v1226 = vadd.s32 %v1221, 1
  %vm1227 = vcmp.gt.s32.totalorder %v1226, 0
  %v1228 = vsel %vm1227, %v1226, 0
  %v1229 = vshrl.u32 %v1228, 5
  %v1230 = vand.u32 %v1228, 31
  %v1231 = vsub.s32 32, %v1230
  %v1232 = vshrl.u32 683565275, %v1231
  %v1233 = vshll.u32 683565275, %v1230
  %v1234 = vshrl.u32 2475754826, %v1231
  %v1235 = vor.u32 %v1233, %v1234
  %v1236 = vshll.u32 2475754826, %v1230
  %v1237 = vshrl.u32 2131351028, %v1231
  %v1238 = vor.u32 %v1236, %v1237
  %v1239 = vshll.u32 2131351028, %v1230
  %v1240 = vshrl.u32 2102212464, %v1231
  %v1241 = vor.u32 %v1239, %v1240
  %v1242 = vshll.u32 2102212464, %v1230
  %v1243 = vshrl.u32 920167782, %v1231
  %v1244 = vor.u32 %v1242, %v1243
  %v1245 = vshll.u32 920167782, %v1230
  %v1246 = vshrl.u32 1326507024, %v1231
  %v1247 = vor.u32 %v1245, %v1246
  %vm1248 = vcmp.lt.s32.totalorder %v1229, 1
  %vm1249 = vcmp.lt.s32.totalorder %v1229, 2
  %vm1250 = vcmp.lt.s32.totalorder %v1229, 3
  %vm1251 = vcmp.lt.s32.totalorder %v1229, 4
  %v1252 = vsel %vm1248, %v1232, %v1235
  %v1253 = vsel %vm1251, %v1241, 2102212464
  %v1254 = vsel %vm1250, %v1238, %v1253
  %v1255 = vsel %vm1249, %v1252, %v1254
  %v1256 = vsel %vm1248, %v1235, %v1238
  %v1257 = vsel %vm1251, %v1244, 920167782
  %v1258 = vsel %vm1250, %v1241, %v1257
  %v1259 = vsel %vm1249, %v1256, %v1258
  %v1260 = vsel %vm1248, %v1238, %v1241
  %v1261 = vsel %vm1251, %v1247, 1326507024
  %v1262 = vsel %vm1250, %v1244, %v1261
  %v1263 = vsel %vm1249, %v1260, %v1262
  %v1264 = vshll.u32 %v1224, 8
  %v1265 = vmul.u32.u64.compose %v1264, %v1263
  %v1266 = vextract.low.u32 %v1265
  %v1267 = vextract.high.u32 %v1265
  %v1268 = vmul.u32.u64.compose %v1264, %v1259
  %v1269 = vextract.low.u32 %v1268
  %v1270 = vextract.high.u32 %v1268
  %v1271 = vmul.u32 %v1264, %v1255
  %v1272 = vadd.s32 %v1267, %v1269
  %vm1273 = vc.u32 %v1267, %v1269
  %v1274 = vadd.s32 %v1270, 1
  %v1275 = vsel %vm1273, %v1274, %v1270
  %v1276 = vadd.s32 %v1271, %v1275
  %v1277 = vadd.s32 %v1276, 536870912
  %v1278 = vshrl.u32 %v1277, 30
  %v1279 = vshll.u32 %v1278, 30
  %v1280 = vsub.s32 %v1276, %v1279
  %vm1281 = vcmp.lt.s32.totalorder %v1280, 0
  %v1282 = vsub.s32 0, %v1280
  %v1283 = vsel %vm1281, %v1282, %v1280
  %v1284 = vclz %v1283
  %v1285 = vsub.s32 %v1284, 2
  %vm1286 = vcmp.gt.s32.totalorder 0, %v1285
  %v1287 = vsel %vm1286, 0, %v1285
  %v1288 = vsub.s32 32, %v1287
  %v1289 = vshll.u32 %v1280, %v1287
  %v1290 = vshrl.u32 %v1272, %v1288
  %v1291 = vor.u32 %v1289, %v1290
  %v1292 = vsub.s32 4294967266, %v1287
  %v1293 = vadd.s32 %v1292, 127
  %v1294 = vshll.u32 %v1293, 23
  %v1295 = vor.u32 4788187, %v1294
  %v1296 = vand.u32 2147483647, %v1295
  %v1298 = vcvt.s32.f32 %v1291
  %v1299 = vmul.f32 %v1298, %v1296
  %v1300 = vxor.u32 %v1299, 2147483648
  %v1301 = vsel %vm1218, %v1300, %v1299
  %v1302 = vsub.s32 4, %v1278
  %v1303 = vsel %vm1218, %v1302, %v1278
  %v1304 = vsel %vm1217, %v479, %v1301
  %v1305 = vsel %vm1217, 0, %v1303
  %v1306 = vcosq.f32.pop %v1304
  %v1307 = vsinq.f32.pop %v1304
  %vm1308 = vweird.f32 %v479
  %v1309 = vadd.s32 %v1305, 3
  %v1310 = vand.u32 %v1309, 3
  %vm1311 = vcmp.lt.s32.totalorder %v1310, 2
  %vm1312 = vcmp.eq.s32.totalorder %v1310, 0
  %v1313 = vxor.u32 %v1307, 2147483648
  %v1314 = vsel %vm1312, %v1306, %v1313
  %vm1315 = vcmp.eq.s32.totalorder %v1310, 2
  %v1316 = vxor.u32 %v1306, 2147483648
  %v1317 = vsel %vm1315, %v1316, %v1307
  %v1318 = vsel %vm1311, %v1314, %v1317
  %v1319 = vsel %vm1308, nan, %v1318
  %v1320 = vand.u32 2147483647, %v480
  %vm1321 = vcmp.le.f32.partialorder %v1320, 0.7853982
  %vm1322 = vcmp.lt.s32.totalorder %v480, 0
  %v1323 = vand.u32 %v480, 2139095040
  %v1324 = vshrl.u32 %v1323, 23
  %v1325 = vsub.s32 %v1324, 127
  %v1326 = vand.u32 2147483647, %v480
  %v1327 = vand.u32 %v1326, 8388607
  %v1328 = vor.u32 %v1327, 8388608
  %v1329 = vsub.s32 0, %v1328
  %v1330 = vadd.s32 %v1325, 1
  %vm1331 = vcmp.gt.s32.totalorder %v1330, 0
  %v1332 = vsel %vm1331, %v1330, 0
  %v1333 = vshrl.u32 %v1332, 5
  %v1334 = vand.u32 %v1332, 31
  %v1335 = vsub.s32 32, %v1334
  %v1336 = vshrl.u32 683565275, %v1335
  %v1337 = vshll.u32 683565275, %v1334
  %v1338 = vshrl.u32 2475754826, %v1335
  %v1339 = vor.u32 %v1337, %v1338
  %v1340 = vshll.u32 2475754826, %v1334
  %v1341 = vshrl.u32 2131351028, %v1335
  %v1342 = vor.u32 %v1340, %v1341
  %v1343 = vshll.u32 2131351028, %v1334
  %v1344 = vshrl.u32 2102212464, %v1335
  %v1345 = vor.u32 %v1343, %v1344
  %v1346 = vshll.u32 2102212464, %v1334
  %v1347 = vshrl.u32 920167782, %v1335
  %v1348 = vor.u32 %v1346, %v1347
  %v1349 = vshll.u32 920167782, %v1334
  %v1350 = vshrl.u32 1326507024, %v1335
  %v1351 = vor.u32 %v1349, %v1350
  %vm1352 = vcmp.lt.s32.totalorder %v1333, 1
  %vm1353 = vcmp.lt.s32.totalorder %v1333, 2
  %vm1354 = vcmp.lt.s32.totalorder %v1333, 3
  %vm1355 = vcmp.lt.s32.totalorder %v1333, 4
  %v1356 = vsel %vm1352, %v1336, %v1339
  %v1357 = vsel %vm1355, %v1345, 2102212464
  %v1358 = vsel %vm1354, %v1342, %v1357
  %v1359 = vsel %vm1353, %v1356, %v1358
  %v1360 = vsel %vm1352, %v1339, %v1342
  %v1361 = vsel %vm1355, %v1348, 920167782
  %v1362 = vsel %vm1354, %v1345, %v1361
  %v1363 = vsel %vm1353, %v1360, %v1362
  %v1364 = vsel %vm1352, %v1342, %v1345
  %v1365 = vsel %vm1355, %v1351, 1326507024
  %v1366 = vsel %vm1354, %v1348, %v1365
  %v1367 = vsel %vm1353, %v1364, %v1366
  %v1368 = vshll.u32 %v1328, 8
  %v1369 = vmul.u32.u64.compose %v1368, %v1367
  %v1370 = vextract.low.u32 %v1369
  %v1371 = vextract.high.u32 %v1369
  %v1372 = vmul.u32.u64.compose %v1368, %v1363
  %v1373 = vextract.low.u32 %v1372
  %v1374 = vextract.high.u32 %v1372
  %v1375 = vmul.u32 %v1368, %v1359
  %v1376 = vadd.s32 %v1371, %v1373
  %vm1377 = vc.u32 %v1371, %v1373
  %v1378 = vadd.s32 %v1374, 1
  %v1379 = vsel %vm1377, %v1378, %v1374
  %v1380 = vadd.s32 %v1375, %v1379
  %v1381 = vadd.s32 %v1380, 536870912
  %v1382 = vshrl.u32 %v1381, 30
  %v1383 = vshll.u32 %v1382, 30
  %v1384 = vsub.s32 %v1380, %v1383
  %vm1385 = vcmp.lt.s32.totalorder %v1384, 0
  %v1386 = vsub.s32 0, %v1384
  %v1387 = vsel %vm1385, %v1386, %v1384
  %v1388 = vclz %v1387
  %v1389 = vsub.s32 %v1388, 2
  %vm1390 = vcmp.gt.s32.totalorder 0, %v1389
  %v1391 = vsel %vm1390, 0, %v1389
  %v1392 = vsub.s32 32, %v1391
  %v1393 = vshll.u32 %v1384, %v1391
  %v1394 = vshrl.u32 %v1376, %v1392
  %v1395 = vor.u32 %v1393, %v1394
  %v1396 = vsub.s32 4294967266, %v1391
  %v1397 = vadd.s32 %v1396, 127
  %v1398 = vshll.u32 %v1397, 23
  %v1399 = vor.u32 4788187, %v1398
  %v1400 = vand.u32 2147483647, %v1399
  %v1402 = vcvt.s32.f32 %v1395
  %v1403 = vmul.f32 %v1402, %v1400
  %v1404 = vxor.u32 %v1403, 2147483648
  %v1405 = vsel %vm1322, %v1404, %v1403
  %v1406 = vsub.s32 4, %v1382
  %v1407 = vsel %vm1322, %v1406, %v1382
  %v1408 = vsel %vm1321, %v480, %v1405
  %v1409 = vsel %vm1321, 0, %v1407
  %v1410 = vcosq.f32.pop %v1408
  %v1411 = vsinq.f32.pop %v1408
  %vm1412 = vweird.f32 %v480
  %v1413 = vadd.s32 %v1409, 3
  %v1414 = vand.u32 %v1413, 3
  %vm1415 = vcmp.lt.s32.totalorder %v1414, 2
  %vm1416 = vcmp.eq.s32.totalorder %v1414, 0
  %v1417 = vxor.u32 %v1411, 2147483648
  %v1418 = vsel %vm1416, %v1410, %v1417
  %vm1419 = vcmp.eq.s32.totalorder %v1414, 2
  %v1420 = vxor.u32 %v1410, 2147483648
  %v1421 = vsel %vm1419, %v1420, %v1411
  %v1422 = vsel %vm1415, %v1418, %v1421
  %v1423 = vsel %vm1412, nan, %v1422
  %v1424 = vand.u32 2147483647, %v481
  %vm1425 = vcmp.le.f32.partialorder %v1424, 0.7853982
  %vm1426 = vcmp.lt.s32.totalorder %v481, 0
  %v1427 = vand.u32 %v481, 2139095040
  %v1428 = vshrl.u32 %v1427, 23
  %v1429 = vsub.s32 %v1428, 127
  %v1430 = vand.u32 2147483647, %v481
  %v1431 = vand.u32 %v1430, 8388607
  %v1432 = vor.u32 %v1431, 8388608
  %v1433 = vsub.s32 0, %v1432
  %v1434 = vadd.s32 %v1429, 1
  %vm1435 = vcmp.gt.s32.totalorder %v1434, 0
  %v1436 = vsel %vm1435, %v1434, 0
  %v1437 = vshrl.u32 %v1436, 5
  %v1438 = vand.u32 %v1436, 31
  %v1439 = vsub.s32 32, %v1438
  %v1440 = vshrl.u32 683565275, %v1439
  %v1441 = vshll.u32 683565275, %v1438
  %v1442 = vshrl.u32 2475754826, %v1439
  %v1443 = vor.u32 %v1441, %v1442
  %v1444 = vshll.u32 2475754826, %v1438
  %v1445 = vshrl.u32 2131351028, %v1439
  %v1446 = vor.u32 %v1444, %v1445
  %v1447 = vshll.u32 2131351028, %v1438
  %v1448 = vshrl.u32 2102212464, %v1439
  %v1449 = vor.u32 %v1447, %v1448
  %v1450 = vshll.u32 2102212464, %v1438
  %v1451 = vshrl.u32 920167782, %v1439
  %v1452 = vor.u32 %v1450, %v1451
  %v1453 = vshll.u32 920167782, %v1438
  %v1454 = vshrl.u32 1326507024, %v1439
  %v1455 = vor.u32 %v1453, %v1454
  %vm1456 = vcmp.lt.s32.totalorder %v1437, 1
  %vm1457 = vcmp.lt.s32.totalorder %v1437, 2
  %vm1458 = vcmp.lt.s32.totalorder %v1437, 3
  %vm1459 = vcmp.lt.s32.totalorder %v1437, 4
  %v1460 = vsel %vm1456, %v1440, %v1443
  %v1461 = vsel %vm1459, %v1449, 2102212464
  %v1462 = vsel %vm1458, %v1446, %v1461
  %v1463 = vsel %vm1457, %v1460, %v1462
  %v1464 = vsel %vm1456, %v1443, %v1446
  %v1465 = vsel %vm1459, %v1452, 920167782
  %v1466 = vsel %vm1458, %v1449, %v1465
  %v1467 = vsel %vm1457, %v1464, %v1466
  %v1468 = vsel %vm1456, %v1446, %v1449
  %v1469 = vsel %vm1459, %v1455, 1326507024
  %v1470 = vsel %vm1458, %v1452, %v1469
  %v1471 = vsel %vm1457, %v1468, %v1470
  %v1472 = vshll.u32 %v1432, 8
  %v1473 = vmul.u32.u64.compose %v1472, %v1471
  %v1474 = vextract.low.u32 %v1473
  %v1475 = vextract.high.u32 %v1473
  %v1476 = vmul.u32.u64.compose %v1472, %v1467
  %v1477 = vextract.low.u32 %v1476
  %v1478 = vextract.high.u32 %v1476
  %v1479 = vmul.u32 %v1472, %v1463
  %v1480 = vadd.s32 %v1475, %v1477
  %vm1481 = vc.u32 %v1475, %v1477
  %v1482 = vadd.s32 %v1478, 1
  %v1483 = vsel %vm1481, %v1482, %v1478
  %v1484 = vadd.s32 %v1479, %v1483
  %v1485 = vadd.s32 %v1484, 536870912
  %v1486 = vshrl.u32 %v1485, 30
  %v1487 = vshll.u32 %v1486, 30
  %v1488 = vsub.s32 %v1484, %v1487
  %vm1489 = vcmp.lt.s32.totalorder %v1488, 0
  %v1490 = vsub.s32 0, %v1488
  %v1491 = vsel %vm1489, %v1490, %v1488
  %v1492 = vclz %v1491
  %v1493 = vsub.s32 %v1492, 2
  %vm1494 = vcmp.gt.s32.totalorder 0, %v1493
  %v1495 = vsel %vm1494, 0, %v1493
  %v1496 = vsub.s32 32, %v1495
  %v1497 = vshll.u32 %v1488, %v1495
  %v1498 = vshrl.u32 %v1480, %v1496
  %v1499 = vor.u32 %v1497, %v1498
  %v1500 = vsub.s32 4294967266, %v1495
  %v1501 = vadd.s32 %v1500, 127
  %v1502 = vshll.u32 %v1501, 23
  %v1503 = vor.u32 4788187, %v1502
  %v1504 = vand.u32 2147483647, %v1503
  %v1506 = vcvt.s32.f32 %v1499
  %v1507 = vmul.f32 %v1506, %v1504
  %v1508 = vxor.u32 %v1507, 2147483648
  %v1509 = vsel %vm1426, %v1508, %v1507
  %v1510 = vsub.s32 4, %v1486
  %v1511 = vsel %vm1426, %v1510, %v1486
  %v1512 = vsel %vm1425, %v481, %v1509
  %v1513 = vsel %vm1425, 0, %v1511
  %v1514 = vcosq.f32.pop %v1512
  %v1515 = vsinq.f32.pop %v1512
  %vm1516 = vweird.f32 %v481
  %v1517 = vadd.s32 %v1513, 3
  %v1518 = vand.u32 %v1517, 3
  %vm1519 = vcmp.lt.s32.totalorder %v1518, 2
  %vm1520 = vcmp.eq.s32.totalorder %v1518, 0
  %v1521 = vxor.u32 %v1515, 2147483648
  %v1522 = vsel %vm1520, %v1514, %v1521
  %vm1523 = vcmp.eq.s32.totalorder %v1518, 2
  %v1524 = vxor.u32 %v1514, 2147483648
  %v1525 = vsel %vm1523, %v1524, %v1515
  %v1526 = vsel %vm1519, %v1522, %v1525
  %v1527 = vsel %vm1516, nan, %v1526
  %v1528 = vand.u32 2147483647, %v482
  %vm1529 = vcmp.le.f32.partialorder %v1528, 0.7853982
  %vm1530 = vcmp.lt.s32.totalorder %v482, 0
  %v1531 = vand.u32 %v482, 2139095040
  %v1532 = vshrl.u32 %v1531, 23
  %v1533 = vsub.s32 %v1532, 127
  %v1534 = vand.u32 2147483647, %v482
  %v1535 = vand.u32 %v1534, 8388607
  %v1536 = vor.u32 %v1535, 8388608
  %v1537 = vsub.s32 0, %v1536
  %v1538 = vadd.s32 %v1533, 1
  %vm1539 = vcmp.gt.s32.totalorder %v1538, 0
  %v1540 = vsel %vm1539, %v1538, 0
  %v1541 = vshrl.u32 %v1540, 5
  %v1542 = vand.u32 %v1540, 31
  %v1543 = vsub.s32 32, %v1542
  %v1544 = vshrl.u32 683565275, %v1543
  %v1545 = vshll.u32 683565275, %v1542
  %v1546 = vshrl.u32 2475754826, %v1543
  %v1547 = vor.u32 %v1545, %v1546
  %v1548 = vshll.u32 2475754826, %v1542
  %v1549 = vshrl.u32 2131351028, %v1543
  %v1550 = vor.u32 %v1548, %v1549
  %v1551 = vshll.u32 2131351028, %v1542
  %v1552 = vshrl.u32 2102212464, %v1543
  %v1553 = vor.u32 %v1551, %v1552
  %v1554 = vshll.u32 2102212464, %v1542
  %v1555 = vshrl.u32 920167782, %v1543
  %v1556 = vor.u32 %v1554, %v1555
  %v1557 = vshll.u32 920167782, %v1542
  %v1558 = vshrl.u32 1326507024, %v1543
  %v1559 = vor.u32 %v1557, %v1558
  %vm1560 = vcmp.lt.s32.totalorder %v1541, 1
  %vm1561 = vcmp.lt.s32.totalorder %v1541, 2
  %vm1562 = vcmp.lt.s32.totalorder %v1541, 3
  %vm1563 = vcmp.lt.s32.totalorder %v1541, 4
  %v1564 = vsel %vm1560, %v1544, %v1547
  %v1565 = vsel %vm1563, %v1553, 2102212464
  %v1566 = vsel %vm1562, %v1550, %v1565
  %v1567 = vsel %vm1561, %v1564, %v1566
  %v1568 = vsel %vm1560, %v1547, %v1550
  %v1569 = vsel %vm1563, %v1556, 920167782
  %v1570 = vsel %vm1562, %v1553, %v1569
  %v1571 = vsel %vm1561, %v1568, %v1570
  %v1572 = vsel %vm1560, %v1550, %v1553
  %v1573 = vsel %vm1563, %v1559, 1326507024
  %v1574 = vsel %vm1562, %v1556, %v1573
  %v1575 = vsel %vm1561, %v1572, %v1574
  %v1576 = vshll.u32 %v1536, 8
  %v1577 = vmul.u32.u64.compose %v1576, %v1575
  %v1578 = vextract.low.u32 %v1577
  %v1579 = vextract.high.u32 %v1577
  %v1580 = vmul.u32.u64.compose %v1576, %v1571
  %v1581 = vextract.low.u32 %v1580
  %v1582 = vextract.high.u32 %v1580
  %v1583 = vmul.u32 %v1576, %v1567
  %v1584 = vadd.s32 %v1579, %v1581
  %vm1585 = vc.u32 %v1579, %v1581
  %v1586 = vadd.s32 %v1582, 1
  %v1587 = vsel %vm1585, %v1586, %v1582
  %v1588 = vadd.s32 %v1583, %v1587
  %v1589 = vadd.s32 %v1588, 536870912
  %v1590 = vshrl.u32 %v1589, 30
  %v1591 = vshll.u32 %v1590, 30
  %v1592 = vsub.s32 %v1588, %v1591
  %vm1593 = vcmp.lt.s32.totalorder %v1592, 0
  %v1594 = vsub.s32 0, %v1592
  %v1595 = vsel %vm1593, %v1594, %v1592
  %v1596 = vclz %v1595
  %v1597 = vsub.s32 %v1596, 2
  %vm1598 = vcmp.gt.s32.totalorder 0, %v1597
  %v1599 = vsel %vm1598, 0, %v1597
  %v1600 = vsub.s32 32, %v1599
  %v1601 = vshll.u32 %v1592, %v1599
  %v1602 = vshrl.u32 %v1584, %v1600
  %v1603 = vor.u32 %v1601, %v1602
  %v1604 = vsub.s32 4294967266, %v1599
  %v1605 = vadd.s32 %v1604, 127
  %v1606 = vshll.u32 %v1605, 23
  %v1607 = vor.u32 4788187, %v1606
  %v1608 = vand.u32 2147483647, %v1607
  %v1610 = vcvt.s32.f32 %v1603
  %v1611 = vmul.f32 %v1610, %v1608
  %v1612 = vxor.u32 %v1611, 2147483648
  %v1613 = vsel %vm1530, %v1612, %v1611
  %v1614 = vsub.s32 4, %v1590
  %v1615 = vsel %vm1530, %v1614, %v1590
  %v1616 = vsel %vm1529, %v482, %v1613
  %v1617 = vsel %vm1529, 0, %v1615
  %v1618 = vcosq.f32.pop %v1616
  %v1619 = vsinq.f32.pop %v1616
  %vm1620 = vweird.f32 %v482
  %v1621 = vadd.s32 %v1617, 3
  %v1622 = vand.u32 %v1621, 3
  %vm1623 = vcmp.lt.s32.totalorder %v1622, 2
  %vm1624 = vcmp.eq.s32.totalorder %v1622, 0
  %v1625 = vxor.u32 %v1619, 2147483648
  %v1626 = vsel %vm1624, %v1618, %v1625
  %vm1627 = vcmp.eq.s32.totalorder %v1622, 2
  %v1628 = vxor.u32 %v1618, 2147483648
  %v1629 = vsel %vm1627, %v1628, %v1619
  %v1630 = vsel %vm1623, %v1626, %v1629
  %v1631 = vsel %vm1620, nan, %v1630
  %v1632 = vand.u32 2147483647, %v483
  %vm1633 = vcmp.le.f32.partialorder %v1632, 0.7853982
  %vm1634 = vcmp.lt.s32.totalorder %v483, 0
  %v1635 = vand.u32 %v483, 2139095040
  %v1636 = vshrl.u32 %v1635, 23
  %v1637 = vsub.s32 %v1636, 127
  %v1638 = vand.u32 2147483647, %v483
  %v1639 = vand.u32 %v1638, 8388607
  %v1640 = vor.u32 %v1639, 8388608
  %v1641 = vsub.s32 0, %v1640
  %v1642 = vadd.s32 %v1637, 1
  %vm1643 = vcmp.gt.s32.totalorder %v1642, 0
  %v1644 = vsel %vm1643, %v1642, 0
  %v1645 = vshrl.u32 %v1644, 5
  %v1646 = vand.u32 %v1644, 31
  %v1647 = vsub.s32 32, %v1646
  %v1648 = vshrl.u32 683565275, %v1647
  %v1649 = vshll.u32 683565275, %v1646
  %v1650 = vshrl.u32 2475754826, %v1647
  %v1651 = vor.u32 %v1649, %v1650
  %v1652 = vshll.u32 2475754826, %v1646
  %v1653 = vshrl.u32 2131351028, %v1647
  %v1654 = vor.u32 %v1652, %v1653
  %v1655 = vshll.u32 2131351028, %v1646
  %v1656 = vshrl.u32 2102212464, %v1647
  %v1657 = vor.u32 %v1655, %v1656
  %v1658 = vshll.u32 2102212464, %v1646
  %v1659 = vshrl.u32 920167782, %v1647
  %v1660 = vor.u32 %v1658, %v1659
  %v1661 = vshll.u32 920167782, %v1646
  %v1662 = vshrl.u32 1326507024, %v1647
  %v1663 = vor.u32 %v1661, %v1662
  %vm1664 = vcmp.lt.s32.totalorder %v1645, 1
  %vm1665 = vcmp.lt.s32.totalorder %v1645, 2
  %vm1666 = vcmp.lt.s32.totalorder %v1645, 3
  %vm1667 = vcmp.lt.s32.totalorder %v1645, 4
  %v1668 = vsel %vm1664, %v1648, %v1651
  %v1669 = vsel %vm1667, %v1657, 2102212464
  %v1670 = vsel %vm1666, %v1654, %v1669
  %v1671 = vsel %vm1665, %v1668, %v1670
  %v1672 = vsel %vm1664, %v1651, %v1654
  %v1673 = vsel %vm1667, %v1660, 920167782
  %v1674 = vsel %vm1666, %v1657, %v1673
  %v1675 = vsel %vm1665, %v1672, %v1674
  %v1676 = vsel %vm1664, %v1654, %v1657
  %v1677 = vsel %vm1667, %v1663, 1326507024
  %v1678 = vsel %vm1666, %v1660, %v1677
  %v1679 = vsel %vm1665, %v1676, %v1678
  %v1680 = vshll.u32 %v1640, 8
  %v1681 = vmul.u32.u64.compose %v1680, %v1679
  %v1682 = vextract.low.u32 %v1681
  %v1683 = vextract.high.u32 %v1681
  %v1684 = vmul.u32.u64.compose %v1680, %v1675
  %v1685 = vextract.low.u32 %v1684
  %v1686 = vextract.high.u32 %v1684
  %v1687 = vmul.u32 %v1680, %v1671
  %v1688 = vadd.s32 %v1683, %v1685
  %vm1689 = vc.u32 %v1683, %v1685
  %v1690 = vadd.s32 %v1686, 1
  %v1691 = vsel %vm1689, %v1690, %v1686
  %v1692 = vadd.s32 %v1687, %v1691
  %v1693 = vadd.s32 %v1692, 536870912
  %v1694 = vshrl.u32 %v1693, 30
  %v1695 = vshll.u32 %v1694, 30
  %v1696 = vsub.s32 %v1692, %v1695
  %vm1697 = vcmp.lt.s32.totalorder %v1696, 0
  %v1698 = vsub.s32 0, %v1696
  %v1699 = vsel %vm1697, %v1698, %v1696
  %v1700 = vclz %v1699
  %v1701 = vsub.s32 %v1700, 2
  %vm1702 = vcmp.gt.s32.totalorder 0, %v1701
  %v1703 = vsel %vm1702, 0, %v1701
  %v1704 = vsub.s32 32, %v1703
  %v1705 = vshll.u32 %v1696, %v1703
  %v1706 = vshrl.u32 %v1688, %v1704
  %v1707 = vor.u32 %v1705, %v1706
  %v1708 = vsub.s32 4294967266, %v1703
  %v1709 = vadd.s32 %v1708, 127
  %v1710 = vshll.u32 %v1709, 23
  %v1711 = vor.u32 4788187, %v1710
  %v1712 = vand.u32 2147483647, %v1711
  %v1714 = vcvt.s32.f32 %v1707
  %v1715 = vmul.f32 %v1714, %v1712
  %v1716 = vxor.u32 %v1715, 2147483648
  %v1717 = vsel %vm1634, %v1716, %v1715
  %v1718 = vsub.s32 4, %v1694
  %v1719 = vsel %vm1634, %v1718, %v1694
  %v1720 = vsel %vm1633, %v483, %v1717
  %v1721 = vsel %vm1633, 0, %v1719
  %v1722 = vcosq.f32.pop %v1720
  %v1723 = vsinq.f32.pop %v1720
  %vm1724 = vweird.f32 %v483
  %v1725 = vadd.s32 %v1721, 3
  %v1726 = vand.u32 %v1725, 3
  %vm1727 = vcmp.lt.s32.totalorder %v1726, 2
  %vm1728 = vcmp.eq.s32.totalorder %v1726, 0
  %v1729 = vxor.u32 %v1723, 2147483648
  %v1730 = vsel %vm1728, %v1722, %v1729
  %vm1731 = vcmp.eq.s32.totalorder %v1726, 2
  %v1732 = vxor.u32 %v1722, 2147483648
  %v1733 = vsel %vm1731, %v1732, %v1723
  %v1734 = vsel %vm1727, %v1730, %v1733
  %v1735 = vsel %vm1724, nan, %v1734
  %v1736 = vand.u32 2147483647, %v484
  %vm1737 = vcmp.le.f32.partialorder %v1736, 0.7853982
  %vm1738 = vcmp.lt.s32.totalorder %v484, 0
  %v1739 = vand.u32 %v484, 2139095040
  %v1740 = vshrl.u32 %v1739, 23
  %v1741 = vsub.s32 %v1740, 127
  %v1742 = vand.u32 2147483647, %v484
  %v1743 = vand.u32 %v1742, 8388607
  %v1744 = vor.u32 %v1743, 8388608
  %v1745 = vsub.s32 0, %v1744
  %v1746 = vadd.s32 %v1741, 1
  %vm1747 = vcmp.gt.s32.totalorder %v1746, 0
  %v1748 = vsel %vm1747, %v1746, 0
  %v1749 = vshrl.u32 %v1748, 5
  %v1750 = vand.u32 %v1748, 31
  %v1751 = vsub.s32 32, %v1750
  %v1752 = vshrl.u32 683565275, %v1751
  %v1753 = vshll.u32 683565275, %v1750
  %v1754 = vshrl.u32 2475754826, %v1751
  %v1755 = vor.u32 %v1753, %v1754
  %v1756 = vshll.u32 2475754826, %v1750
  %v1757 = vshrl.u32 2131351028, %v1751
  %v1758 = vor.u32 %v1756, %v1757
  %v1759 = vshll.u32 2131351028, %v1750
  %v1760 = vshrl.u32 2102212464, %v1751
  %v1761 = vor.u32 %v1759, %v1760
  %v1762 = vshll.u32 2102212464, %v1750
  %v1763 = vshrl.u32 920167782, %v1751
  %v1764 = vor.u32 %v1762, %v1763
  %v1765 = vshll.u32 920167782, %v1750
  %v1766 = vshrl.u32 1326507024, %v1751
  %v1767 = vor.u32 %v1765, %v1766
  %vm1768 = vcmp.lt.s32.totalorder %v1749, 1
  %vm1769 = vcmp.lt.s32.totalorder %v1749, 2
  %vm1770 = vcmp.lt.s32.totalorder %v1749, 3
  %vm1771 = vcmp.lt.s32.totalorder %v1749, 4
  %v1772 = vsel %vm1768, %v1752, %v1755
  %v1773 = vsel %vm1771, %v1761, 2102212464
  %v1774 = vsel %vm1770, %v1758, %v1773
  %v1775 = vsel %vm1769, %v1772, %v1774
  %v1776 = vsel %vm1768, %v1755, %v1758
  %v1777 = vsel %vm1771, %v1764, 920167782
  %v1778 = vsel %vm1770, %v1761, %v1777
  %v1779 = vsel %vm1769, %v1776, %v1778
  %v1780 = vsel %vm1768, %v1758, %v1761
  %v1781 = vsel %vm1771, %v1767, 1326507024
  %v1782 = vsel %vm1770, %v1764, %v1781
  %v1783 = vsel %vm1769, %v1780, %v1782
  %v1784 = vshll.u32 %v1744, 8
  %v1785 = vmul.u32.u64.compose %v1784, %v1783
  %v1786 = vextract.low.u32 %v1785
  %v1787 = vextract.high.u32 %v1785
  %v1788 = vmul.u32.u64.compose %v1784, %v1779
  %v1789 = vextract.low.u32 %v1788
  %v1790 = vextract.high.u32 %v1788
  %v1791 = vmul.u32 %v1784, %v1775
  %v1792 = vadd.s32 %v1787, %v1789
  %vm1793 = vc.u32 %v1787, %v1789
  %v1794 = vadd.s32 %v1790, 1
  %v1795 = vsel %vm1793, %v1794, %v1790
  %v1796 = vadd.s32 %v1791, %v1795
  %v1797 = vadd.s32 %v1796, 536870912
  %v1798 = vshrl.u32 %v1797, 30
  %v1799 = vshll.u32 %v1798, 30
  %v1800 = vsub.s32 %v1796, %v1799
  %vm1801 = vcmp.lt.s32.totalorder %v1800, 0
  %v1802 = vsub.s32 0, %v1800
  %v1803 = vsel %vm1801, %v1802, %v1800
  %v1804 = vclz %v1803
  %v1805 = vsub.s32 %v1804, 2
  %vm1806 = vcmp.gt.s32.totalorder 0, %v1805
  %v1807 = vsel %vm1806, 0, %v1805
  %v1808 = vsub.s32 32, %v1807
  %v1809 = vshll.u32 %v1800, %v1807
  %v1810 = vshrl.u32 %v1792, %v1808
  %v1811 = vor.u32 %v1809, %v1810
  %v1812 = vsub.s32 4294967266, %v1807
  %v1813 = vadd.s32 %v1812, 127
  %v1814 = vshll.u32 %v1813, 23
  %v1815 = vor.u32 4788187, %v1814
  %v1816 = vand.u32 2147483647, %v1815
  %v1818 = vcvt.s32.f32 %v1811
  %v1819 = vmul.f32 %v1818, %v1816
  %v1820 = vxor.u32 %v1819, 2147483648
  %v1821 = vsel %vm1738, %v1820, %v1819
  %v1822 = vsub.s32 4, %v1798
  %v1823 = vsel %vm1738, %v1822, %v1798
  %v1824 = vsel %vm1737, %v484, %v1821
  %v1825 = vsel %vm1737, 0, %v1823
  %v1826 = vcosq.f32.pop %v1824
  %v1827 = vsinq.f32.pop %v1824
  %vm1828 = vweird.f32 %v484
  %v1829 = vadd.s32 %v1825, 3
  %v1830 = vand.u32 %v1829, 3
  %vm1831 = vcmp.lt.s32.totalorder %v1830, 2
  %vm1832 = vcmp.eq.s32.totalorder %v1830, 0
  %v1833 = vxor.u32 %v1827, 2147483648
  %v1834 = vsel %vm1832, %v1826, %v1833
  %vm1835 = vcmp.eq.s32.totalorder %v1830, 2
  %v1836 = vxor.u32 %v1826, 2147483648
  %v1837 = vsel %vm1835, %v1836, %v1827
  %v1838 = vsel %vm1831, %v1834, %v1837
  %v1839 = vsel %vm1828, nan, %v1838
  %v1840 = vand.u32 2147483647, %v485
  %vm1841 = vcmp.le.f32.partialorder %v1840, 0.7853982
  %vm1842 = vcmp.lt.s32.totalorder %v485, 0
  %v1843 = vand.u32 %v485, 2139095040
  %v1844 = vshrl.u32 %v1843, 23
  %v1845 = vsub.s32 %v1844, 127
  %v1846 = vand.u32 2147483647, %v485
  %v1847 = vand.u32 %v1846, 8388607
  %v1848 = vor.u32 %v1847, 8388608
  %v1849 = vsub.s32 0, %v1848
  %v1850 = vadd.s32 %v1845, 1
  %vm1851 = vcmp.gt.s32.totalorder %v1850, 0
  %v1852 = vsel %vm1851, %v1850, 0
  %v1853 = vshrl.u32 %v1852, 5
  %v1854 = vand.u32 %v1852, 31
  %v1855 = vsub.s32 32, %v1854
  %v1856 = vshrl.u32 683565275, %v1855
  %v1857 = vshll.u32 683565275, %v1854
  %v1858 = vshrl.u32 2475754826, %v1855
  %v1859 = vor.u32 %v1857, %v1858
  %v1860 = vshll.u32 2475754826, %v1854
  %v1861 = vshrl.u32 2131351028, %v1855
  %v1862 = vor.u32 %v1860, %v1861
  %v1863 = vshll.u32 2131351028, %v1854
  %v1864 = vshrl.u32 2102212464, %v1855
  %v1865 = vor.u32 %v1863, %v1864
  %v1866 = vshll.u32 2102212464, %v1854
  %v1867 = vshrl.u32 920167782, %v1855
  %v1868 = vor.u32 %v1866, %v1867
  %v1869 = vshll.u32 920167782, %v1854
  %v1870 = vshrl.u32 1326507024, %v1855
  %v1871 = vor.u32 %v1869, %v1870
  %vm1872 = vcmp.lt.s32.totalorder %v1853, 1
  %vm1873 = vcmp.lt.s32.totalorder %v1853, 2
  %vm1874 = vcmp.lt.s32.totalorder %v1853, 3
  %vm1875 = vcmp.lt.s32.totalorder %v1853, 4
  %v1876 = vsel %vm1872, %v1856, %v1859
  %v1877 = vsel %vm1875, %v1865, 2102212464
  %v1878 = vsel %vm1874, %v1862, %v1877
  %v1879 = vsel %vm1873, %v1876, %v1878
  %v1880 = vsel %vm1872, %v1859, %v1862
  %v1881 = vsel %vm1875, %v1868, 920167782
  %v1882 = vsel %vm1874, %v1865, %v1881
  %v1883 = vsel %vm1873, %v1880, %v1882
  %v1884 = vsel %vm1872, %v1862, %v1865
  %v1885 = vsel %vm1875, %v1871, 1326507024
  %v1886 = vsel %vm1874, %v1868, %v1885
  %v1887 = vsel %vm1873, %v1884, %v1886
  %v1888 = vshll.u32 %v1848, 8
  %v1889 = vmul.u32.u64.compose %v1888, %v1887
  %v1890 = vextract.low.u32 %v1889
  %v1891 = vextract.high.u32 %v1889
  %v1892 = vmul.u32.u64.compose %v1888, %v1883
  %v1893 = vextract.low.u32 %v1892
  %v1894 = vextract.high.u32 %v1892
  %v1895 = vmul.u32 %v1888, %v1879
  %v1896 = vadd.s32 %v1891, %v1893
  %vm1897 = vc.u32 %v1891, %v1893
  %v1898 = vadd.s32 %v1894, 1
  %v1899 = vsel %vm1897, %v1898, %v1894
  %v1900 = vadd.s32 %v1895, %v1899
  %v1901 = vadd.s32 %v1900, 536870912
  %v1902 = vshrl.u32 %v1901, 30
  %v1903 = vshll.u32 %v1902, 30
  %v1904 = vsub.s32 %v1900, %v1903
  %vm1905 = vcmp.lt.s32.totalorder %v1904, 0
  %v1906 = vsub.s32 0, %v1904
  %v1907 = vsel %vm1905, %v1906, %v1904
  %v1908 = vclz %v1907
  %v1909 = vsub.s32 %v1908, 2
  %vm1910 = vcmp.gt.s32.totalorder 0, %v1909
  %v1911 = vsel %vm1910, 0, %v1909
  %v1912 = vsub.s32 32, %v1911
  %v1913 = vshll.u32 %v1904, %v1911
  %v1914 = vshrl.u32 %v1896, %v1912
  %v1915 = vor.u32 %v1913, %v1914
  %v1916 = vsub.s32 4294967266, %v1911
  %v1917 = vadd.s32 %v1916, 127
  %v1918 = vshll.u32 %v1917, 23
  %v1919 = vor.u32 4788187, %v1918
  %v1920 = vand.u32 2147483647, %v1919
  %v1922 = vcvt.s32.f32 %v1915
  %v1923 = vmul.f32 %v1922, %v1920
  %v1924 = vxor.u32 %v1923, 2147483648
  %v1925 = vsel %vm1842, %v1924, %v1923
  %v1926 = vsub.s32 4, %v1902
  %v1927 = vsel %vm1842, %v1926, %v1902
  %v1928 = vsel %vm1841, %v485, %v1925
  %v1929 = vsel %vm1841, 0, %v1927
  %v1930 = vcosq.f32.pop %v1928
  %v1931 = vsinq.f32.pop %v1928
  %vm1932 = vweird.f32 %v485
  %v1933 = vadd.s32 %v1929, 3
  %v1934 = vand.u32 %v1933, 3
  %vm1935 = vcmp.lt.s32.totalorder %v1934, 2
  %vm1936 = vcmp.eq.s32.totalorder %v1934, 0
  %v1937 = vxor.u32 %v1931, 2147483648
  %v1938 = vsel %vm1936, %v1930, %v1937
  %vm1939 = vcmp.eq.s32.totalorder %v1934, 2
  %v1940 = vxor.u32 %v1930, 2147483648
  %v1941 = vsel %vm1939, %v1940, %v1931
  %v1942 = vsel %vm1935, %v1938, %v1941
  %v1943 = vsel %vm1932, nan, %v1942
  %v1944 = vand.u32 2147483647, %v486
  %vm1945 = vcmp.le.f32.partialorder %v1944, 0.7853982
  %vm1946 = vcmp.lt.s32.totalorder %v486, 0
  %v1947 = vand.u32 %v486, 2139095040
  %v1948 = vshrl.u32 %v1947, 23
  %v1949 = vsub.s32 %v1948, 127
  %v1950 = vand.u32 2147483647, %v486
  %v1951 = vand.u32 %v1950, 8388607
  %v1952 = vor.u32 %v1951, 8388608
  %v1953 = vsub.s32 0, %v1952
  %v1954 = vadd.s32 %v1949, 1
  %vm1955 = vcmp.gt.s32.totalorder %v1954, 0
  %v1956 = vsel %vm1955, %v1954, 0
  %v1957 = vshrl.u32 %v1956, 5
  %v1958 = vand.u32 %v1956, 31
  %v1959 = vsub.s32 32, %v1958
  %v1960 = vshrl.u32 683565275, %v1959
  %v1961 = vshll.u32 683565275, %v1958
  %v1962 = vshrl.u32 2475754826, %v1959
  %v1963 = vor.u32 %v1961, %v1962
  %v1964 = vshll.u32 2475754826, %v1958
  %v1965 = vshrl.u32 2131351028, %v1959
  %v1966 = vor.u32 %v1964, %v1965
  %v1967 = vshll.u32 2131351028, %v1958
  %v1968 = vshrl.u32 2102212464, %v1959
  %v1969 = vor.u32 %v1967, %v1968
  %v1970 = vshll.u32 2102212464, %v1958
  %v1971 = vshrl.u32 920167782, %v1959
  %v1972 = vor.u32 %v1970, %v1971
  %v1973 = vshll.u32 920167782, %v1958
  %v1974 = vshrl.u32 1326507024, %v1959
  %v1975 = vor.u32 %v1973, %v1974
  %vm1976 = vcmp.lt.s32.totalorder %v1957, 1
  %vm1977 = vcmp.lt.s32.totalorder %v1957, 2
  %vm1978 = vcmp.lt.s32.totalorder %v1957, 3
  %vm1979 = vcmp.lt.s32.totalorder %v1957, 4
  %v1980 = vsel %vm1976, %v1960, %v1963
  %v1981 = vsel %vm1979, %v1969, 2102212464
  %v1982 = vsel %vm1978, %v1966, %v1981
  %v1983 = vsel %vm1977, %v1980, %v1982
  %v1984 = vsel %vm1976, %v1963, %v1966
  %v1985 = vsel %vm1979, %v1972, 920167782
  %v1986 = vsel %vm1978, %v1969, %v1985
  %v1987 = vsel %vm1977, %v1984, %v1986
  %v1988 = vsel %vm1976, %v1966, %v1969
  %v1989 = vsel %vm1979, %v1975, 1326507024
  %v1990 = vsel %vm1978, %v1972, %v1989
  %v1991 = vsel %vm1977, %v1988, %v1990
  %v1992 = vshll.u32 %v1952, 8
  %v1993 = vmul.u32.u64.compose %v1992, %v1991
  %v1994 = vextract.low.u32 %v1993
  %v1995 = vextract.high.u32 %v1993
  %v1996 = vmul.u32.u64.compose %v1992, %v1987
  %v1997 = vextract.low.u32 %v1996
  %v1998 = vextract.high.u32 %v1996
  %v1999 = vmul.u32 %v1992, %v1983
  %v2000 = vadd.s32 %v1995, %v1997
  %vm2001 = vc.u32 %v1995, %v1997
  %v2002 = vadd.s32 %v1998, 1
  %v2003 = vsel %vm2001, %v2002, %v1998
  %v2004 = vadd.s32 %v1999, %v2003
  %v2005 = vadd.s32 %v2004, 536870912
  %v2006 = vshrl.u32 %v2005, 30
  %v2007 = vshll.u32 %v2006, 30
  %v2008 = vsub.s32 %v2004, %v2007
  %vm2009 = vcmp.lt.s32.totalorder %v2008, 0
  %v2010 = vsub.s32 0, %v2008
  %v2011 = vsel %vm2009, %v2010, %v2008
  %v2012 = vclz %v2011
  %v2013 = vsub.s32 %v2012, 2
  %vm2014 = vcmp.gt.s32.totalorder 0, %v2013
  %v2015 = vsel %vm2014, 0, %v2013
  %v2016 = vsub.s32 32, %v2015
  %v2017 = vshll.u32 %v2008, %v2015
  %v2018 = vshrl.u32 %v2000, %v2016
  %v2019 = vor.u32 %v2017, %v2018
  %v2020 = vsub.s32 4294967266, %v2015
  %v2021 = vadd.s32 %v2020, 127
  %v2022 = vshll.u32 %v2021, 23
  %v2023 = vor.u32 4788187, %v2022
  %v2024 = vand.u32 2147483647, %v2023
  %v2026 = vcvt.s32.f32 %v2019
  %v2027 = vmul.f32 %v2026, %v2024
  %v2028 = vxor.u32 %v2027, 2147483648
  %v2029 = vsel %vm1946, %v2028, %v2027
  %v2030 = vsub.s32 4, %v2006
  %v2031 = vsel %vm1946, %v2030, %v2006
  %v2032 = vsel %vm1945, %v486, %v2029
  %v2033 = vsel %vm1945, 0, %v2031
  %v2034 = vcosq.f32.pop %v2032
  %v2035 = vsinq.f32.pop %v2032
  %vm2036 = vweird.f32 %v486
  %v2037 = vadd.s32 %v2033, 3
  %v2038 = vand.u32 %v2037, 3
  %vm2039 = vcmp.lt.s32.totalorder %v2038, 2
  %vm2040 = vcmp.eq.s32.totalorder %v2038, 0
  %v2041 = vxor.u32 %v2035, 2147483648
  %v2042 = vsel %vm2040, %v2034, %v2041
  %vm2043 = vcmp.eq.s32.totalorder %v2038, 2
  %v2044 = vxor.u32 %v2034, 2147483648
  %v2045 = vsel %vm2043, %v2044, %v2035
  %v2046 = vsel %vm2039, %v2042, %v2045
  %v2047 = vsel %vm2036, nan, %v2046
  %v2048 = vand.u32 2147483647, %v487
  %vm2049 = vcmp.le.f32.partialorder %v2048, 0.7853982
  %vm2050 = vcmp.lt.s32.totalorder %v487, 0
  %v2051 = vand.u32 %v487, 2139095040
  %v2052 = vshrl.u32 %v2051, 23
  %v2053 = vsub.s32 %v2052, 127
  %v2054 = vand.u32 2147483647, %v487
  %v2055 = vand.u32 %v2054, 8388607
  %v2056 = vor.u32 %v2055, 8388608
  %v2057 = vsub.s32 0, %v2056
  %v2058 = vadd.s32 %v2053, 1
  %vm2059 = vcmp.gt.s32.totalorder %v2058, 0
  %v2060 = vsel %vm2059, %v2058, 0
  %v2061 = vshrl.u32 %v2060, 5
  %v2062 = vand.u32 %v2060, 31
  %v2063 = vsub.s32 32, %v2062
  %v2064 = vshrl.u32 683565275, %v2063
  %v2065 = vshll.u32 683565275, %v2062
  %v2066 = vshrl.u32 2475754826, %v2063
  %v2067 = vor.u32 %v2065, %v2066
  %v2068 = vshll.u32 2475754826, %v2062
  %v2069 = vshrl.u32 2131351028, %v2063
  %v2070 = vor.u32 %v2068, %v2069
  %v2071 = vshll.u32 2131351028, %v2062
  %v2072 = vshrl.u32 2102212464, %v2063
  %v2073 = vor.u32 %v2071, %v2072
  %v2074 = vshll.u32 2102212464, %v2062
  %v2075 = vshrl.u32 920167782, %v2063
  %v2076 = vor.u32 %v2074, %v2075
  %v2077 = vshll.u32 920167782, %v2062
  %v2078 = vshrl.u32 1326507024, %v2063
  %v2079 = vor.u32 %v2077, %v2078
  %vm2080 = vcmp.lt.s32.totalorder %v2061, 1
  %vm2081 = vcmp.lt.s32.totalorder %v2061, 2
  %vm2082 = vcmp.lt.s32.totalorder %v2061, 3
  %vm2083 = vcmp.lt.s32.totalorder %v2061, 4
  %v2084 = vsel %vm2080, %v2064, %v2067
  %v2085 = vsel %vm2083, %v2073, 2102212464
  %v2086 = vsel %vm2082, %v2070, %v2085
  %v2087 = vsel %vm2081, %v2084, %v2086
  %v2088 = vsel %vm2080, %v2067, %v2070
  %v2089 = vsel %vm2083, %v2076, 920167782
  %v2090 = vsel %vm2082, %v2073, %v2089
  %v2091 = vsel %vm2081, %v2088, %v2090
  %v2092 = vsel %vm2080, %v2070, %v2073
  %v2093 = vsel %vm2083, %v2079, 1326507024
  %v2094 = vsel %vm2082, %v2076, %v2093
  %v2095 = vsel %vm2081, %v2092, %v2094
  %v2096 = vshll.u32 %v2056, 8
  %v2097 = vmul.u32.u64.compose %v2096, %v2095
  %v2098 = vextract.low.u32 %v2097
  %v2099 = vextract.high.u32 %v2097
  %v2100 = vmul.u32.u64.compose %v2096, %v2091
  %v2101 = vextract.low.u32 %v2100
  %v2102 = vextract.high.u32 %v2100
  %v2103 = vmul.u32 %v2096, %v2087
  %v2104 = vadd.s32 %v2099, %v2101
  %vm2105 = vc.u32 %v2099, %v2101
  %v2106 = vadd.s32 %v2102, 1
  %v2107 = vsel %vm2105, %v2106, %v2102
  %v2108 = vadd.s32 %v2103, %v2107
  %v2109 = vadd.s32 %v2108, 536870912
  %v2110 = vshrl.u32 %v2109, 30
  %v2111 = vshll.u32 %v2110, 30
  %v2112 = vsub.s32 %v2108, %v2111
  %vm2113 = vcmp.lt.s32.totalorder %v2112, 0
  %v2114 = vsub.s32 0, %v2112
  %v2115 = vsel %vm2113, %v2114, %v2112
  %v2116 = vclz %v2115
  %v2117 = vsub.s32 %v2116, 2
  %vm2118 = vcmp.gt.s32.totalorder 0, %v2117
  %v2119 = vsel %vm2118, 0, %v2117
  %v2120 = vsub.s32 32, %v2119
  %v2121 = vshll.u32 %v2112, %v2119
  %v2122 = vshrl.u32 %v2104, %v2120
  %v2123 = vor.u32 %v2121, %v2122
  %v2124 = vsub.s32 4294967266, %v2119
  %v2125 = vadd.s32 %v2124, 127
  %v2126 = vshll.u32 %v2125, 23
  %v2127 = vor.u32 4788187, %v2126
  %v2128 = vand.u32 2147483647, %v2127
  %v2130 = vcvt.s32.f32 %v2123
  %v2131 = vmul.f32 %v2130, %v2128
  %v2132 = vxor.u32 %v2131, 2147483648
  %v2133 = vsel %vm2050, %v2132, %v2131
  %v2134 = vsub.s32 4, %v2110
  %v2135 = vsel %vm2050, %v2134, %v2110
  %v2136 = vsel %vm2049, %v487, %v2133
  %v2137 = vsel %vm2049, 0, %v2135
  %v2138 = vcosq.f32.pop %v2136
  %v2139 = vsinq.f32.pop %v2136
  %vm2140 = vweird.f32 %v487
  %v2141 = vadd.s32 %v2137, 3
  %v2142 = vand.u32 %v2141, 3
  %vm2143 = vcmp.lt.s32.totalorder %v2142, 2
  %vm2144 = vcmp.eq.s32.totalorder %v2142, 0
  %v2145 = vxor.u32 %v2139, 2147483648
  %v2146 = vsel %vm2144, %v2138, %v2145
  %vm2147 = vcmp.eq.s32.totalorder %v2142, 2
  %v2148 = vxor.u32 %v2138, 2147483648
  %v2149 = vsel %vm2147, %v2148, %v2139
  %v2150 = vsel %vm2143, %v2146, %v2149
  %v2151 = vsel %vm2140, nan, %v2150
  %v2152 = vpack.c.bf16 %v49, %v48
  %v2153 = vpack.c.bf16 %v51, %v50
  %v2154 = vpack.c.bf16 %v53, %v52
  %v2155 = vpack.c.bf16 %v55, %v54
  %v2156 = vpack.c.bf16 %v57, %v56
  %v2157 = vpack.c.bf16 %v59, %v58
  %v2158 = vpack.c.bf16 %v61, %v60
  %v2159 = vpack.c.bf16 %v63, %v62
  %v2160 = vld [vmem:[%s3] sm:$0x3]
  %v2161 = vpack.c.bf16 %v695, %v591
  %v2162 = vpack.c.bf16 %v903, %v799
  %v2163 = vpack.c.bf16 %v1111, %v1007
  %v2164 = vpack.c.bf16 %v1319, %v1215
  %v2165 = vpack.c.bf16 %v1527, %v1423
  %v2166 = vpack.c.bf16 %v1735, %v1631
  %v2167 = vpack.c.bf16 %v1943, %v1839
  %v2168 = vpack.c.bf16 %v2151, %v2047
  %v2169 = vld [vmem:[%s4] sm:$0xf]
  %v2170 = vld [vmem:[%s4 + $0x4] sm:$0xf]
  %v2171 = vld [vmem:[%s4 + $0x8] sm:$0xf]
  %v2172 = vld [vmem:[%s4 + $0xc] sm:$0xf]
  %v2173 = vld [vmem:[%s4 + $0x10] sm:$0xf]
  %v2174 = vld [vmem:[%s4 + $0x14] sm:$0xf]
  %v2175 = vld [vmem:[%s4 + $0x18] sm:$0xf]
  %v2176 = vld [vmem:[%s4 + $0x1c] sm:$0xf]
  %v2185 = vunpack.c.l.b16 %v2169
  %v2186 = vunpack.c.l.b16 %v2170
  %v2187 = vunpack.c.l.b16 %v2171
  %v2188 = vunpack.c.l.b16 %v2172
  %v2189 = vunpack.c.l.b16 %v2173
  %v2190 = vunpack.c.l.b16 %v2174
  %v2191 = vunpack.c.l.b16 %v2175
  %v2192 = vunpack.c.l.b16 %v2176
  %v2193 = vpack.c.b16 %v2186, %v2185
  %v2194 = vpack.c.b16 %v2188, %v2187
  %v2195 = vpack.c.b16 %v2190, %v2189
  %v2196 = vpack.c.b16 %v2192, %v2191
  %vm2201 = vcmask 523264
  %v2203 = vsel %vm2201, %v2161, 0
  %v2206 = vsel %vm2201, %v2162, 0
  %v2209 = vsel %vm2201, %v2163, 0
  %v2212 = vsel %vm2201, %v2164, 0
  %v2215 = vsel %vm2201, %v2165, 0
  %v2218 = vsel %vm2201, %v2166, 0
  %v2221 = vsel %vm2201, %v2167, 0
  %v2224 = vsel %vm2201, %v2168, 0
  %2226 = vmatprep.subr.bf16.mxu0 0
  %2227 = vmatpush1.bf16.msra.mxu0 0
  %2228 = vmatprep.subr.bf16.mxu0 0
  %2229 = vmatpush1.bf16.msra.mxu0 0
  %2230 = vmatprep.subr.bf16.mxu0 0
  %2231 = vmatpush1.bf16.msra.mxu0 0
  %2232 = vmatprep.subr.bf16.mxu0 0
  %2233 = vmatpush1.bf16.msra.mxu0 0
  %2234 = vmatprep.subr.bf16.mxu0 0
  %2235 = vmatpush1.bf16.msra.mxu0 %v2196
  %2236 = vmatprep.subr.bf16.mxu0 0
  %2237 = vmatpush1.bf16.msra.mxu0 %v2195
  %2238 = vmatprep.subr.bf16.mxu0 0
  %2239 = vmatpush1.bf16.msra.mxu0 %v2194
  %2240 = vmatprep.subr.bf16.mxu0 0
  %2241 = vmatpush1.bf16.msra.mxu0 %v2193
  %2242 = vmatprep.subr.bf16.mxu0 0
  %2243 = vmatpush2.bf16.msra.mxu0 0
  %2244 = vmatprep.subr.bf16.mxu0 0
  %2245 = vmatpush2.bf16.msra.mxu0 0
  %2246 = vmatprep.subr.bf16.mxu0 0
  %2247 = vmatpush2.bf16.msra.mxu0 0
  %2248 = vmatprep.subr.bf16.mxu0 0
  %2249 = vmatpush2.bf16.msra.mxu0 0
  %2250 = vmatprep.subr.bf16.mxu0 0
  %2251 = vmatpush2.bf16.msra.mxu0 0
  %2252 = vmatprep.subr.bf16.mxu0 0
  %2253 = vmatpush2.bf16.msra.mxu0 0
  %2254 = vmatprep.subr.bf16.mxu0 0
  %2255 = vmatpush2.bf16.msra.mxu0 0
  %2256 = vmatprep.subr.bf16.mxu0 0
  %2257 = vmatpush2.bf16.msra.mxu0 0
  %2258 = vmatprep.mubr.bf16.mxu0 0
  %2259 = vmatmul.mubr.bf16.gmra.mxu0 %v2203
  %v2260 = vpop.f32.mrf.mxu0
  %v2261 = vadd.f32 0.0, %v2260
  %v2262 = vpop.f32.mrf.mxu0
  %v2263 = vpop.f32.mrf.mxu0
  %v2264 = vadd.f32 0.0, %v2263
  %v2265 = vpop.f32.mrf.mxu0
  %2266 = vmatprep.mubr.bf16.mxu0 0
  %2267 = vmatmul.mubr.bf16.gmra.mxu0 %v2206
  %v2268 = vpop.f32.mrf.mxu0
  %v2269 = vadd.f32 0.0, %v2268
  %v2270 = vpop.f32.mrf.mxu0
  %v2271 = vpop.f32.mrf.mxu0
  %v2272 = vadd.f32 0.0, %v2271
  %v2273 = vpop.f32.mrf.mxu0
  %2274 = vmatprep.mubr.bf16.mxu0 0
  %2275 = vmatmul.mubr.bf16.gmra.mxu0 %v2209
  %v2276 = vpop.f32.mrf.mxu0
  %v2277 = vadd.f32 0.0, %v2276
  %v2278 = vpop.f32.mrf.mxu0
  %v2279 = vpop.f32.mrf.mxu0
  %v2280 = vadd.f32 0.0, %v2279
  %v2281 = vpop.f32.mrf.mxu0
  %2282 = vmatprep.mubr.bf16.mxu0 0
  %2283 = vmatmul.mubr.bf16.gmra.mxu0 %v2212
  %v2284 = vpop.f32.mrf.mxu0
  %v2285 = vadd.f32 0.0, %v2284
  %v2286 = vpop.f32.mrf.mxu0
  %v2287 = vpop.f32.mrf.mxu0
  %v2288 = vadd.f32 0.0, %v2287
  %v2289 = vpop.f32.mrf.mxu0
  %2290 = vmatprep.mubr.bf16.mxu0 0
  %2291 = vmatmul.mubr.bf16.gmra.mxu0 %v2215
  %v2292 = vpop.f32.mrf.mxu0
  %v2293 = vadd.f32 0.0, %v2292
  %v2294 = vpop.f32.mrf.mxu0
  %v2295 = vpop.f32.mrf.mxu0
  %v2296 = vadd.f32 0.0, %v2295
  %v2297 = vpop.f32.mrf.mxu0
  %2298 = vmatprep.mubr.bf16.mxu0 0
  %2299 = vmatmul.mubr.bf16.gmra.mxu0 %v2218
  %v2300 = vpop.f32.mrf.mxu0
  %v2301 = vadd.f32 0.0, %v2300
  %v2302 = vpop.f32.mrf.mxu0
  %v2303 = vpop.f32.mrf.mxu0
  %v2304 = vadd.f32 0.0, %v2303
  %v2305 = vpop.f32.mrf.mxu0
  %2306 = vmatprep.mubr.bf16.mxu0 0
  %2307 = vmatmul.mubr.bf16.gmra.mxu0 %v2221
  %v2308 = vpop.f32.mrf.mxu0
  %v2309 = vadd.f32 0.0, %v2308
  %v2310 = vpop.f32.mrf.mxu0
  %v2311 = vpop.f32.mrf.mxu0
  %v2312 = vadd.f32 0.0, %v2311
  %v2313 = vpop.f32.mrf.mxu0
  %2314 = vmatprep.mubr.bf16.mxu0 0
  %2315 = vmatmul.mubr.bf16.gmra.mxu0 %v2224
  %v2316 = vpop.f32.mrf.mxu0
  %v2317 = vadd.f32 0.0, %v2316
  %v2318 = vpop.f32.mrf.mxu0
  %v2319 = vpop.f32.mrf.mxu0
  %v2320 = vadd.f32 0.0, %v2319
  %v2321 = vpop.f32.mrf.mxu0
  %2322 = vdwg.mxu0
  %vm2323 = vcmask 31744
  %v2325 = vsel %vm2323, %v2152, 0
  %v2328 = vsel %vm2323, %v2153, 0
  %v2331 = vsel %vm2323, %v2154, 0
  %v2334 = vsel %vm2323, %v2155, 0
  %v2337 = vsel %vm2323, %v2156, 0
  %v2340 = vsel %vm2323, %v2157, 0
  %v2343 = vsel %vm2323, %v2158, 0
  %v2346 = vsel %vm2323, %v2159, 0
  %vm2348 = vcmask 1041408
  %v2350 = vsel %vm2348, %v2160, 0
  %2352 = vmatprep.subr.bf16.mxu0 0
  %2353 = vmatpush1.bf16.msra.mxu0 0
  %2354 = vmatprep.subr.bf16.mxu0 0
  %2355 = vmatpush1.bf16.msra.mxu0 0
  %2356 = vmatprep.subr.bf16.mxu0 0
  %2357 = vmatpush1.bf16.msra.mxu0 0
  %2358 = vmatprep.subr.bf16.mxu0 0
  %2359 = vmatpush1.bf16.msra.mxu0 0
  %2360 = vmatprep.subr.bf16.mxu0 0
  %2361 = vmatpush1.bf16.msra.mxu0 0
  %2362 = vmatprep.subr.bf16.mxu0 0
  %2363 = vmatpush1.bf16.msra.mxu0 0
  %2364 = vmatprep.subr.bf16.mxu0 0
  %2365 = vmatpush1.bf16.msra.mxu0 0
  %2366 = vmatprep.subr.bf16.mxu0 0
  %2367 = vmatpush1.bf16.msra.mxu0 %v2350
  %2368 = vmatprep.subr.bf16.mxu0 0
  %2369 = vmatpush2.bf16.msra.mxu0 0
  %2370 = vmatprep.subr.bf16.mxu0 0
  %2371 = vmatpush2.bf16.msra.mxu0 0
  %2372 = vmatprep.subr.bf16.mxu0 0
  %2373 = vmatpush2.bf16.msra.mxu0 0
  %2374 = vmatprep.subr.bf16.mxu0 0
  %2375 = vmatpush2.bf16.msra.mxu0 0
  %2376 = vmatprep.subr.bf16.mxu0 0
  %2377 = vmatpush2.bf16.msra.mxu0 0
  %2378 = vmatprep.subr.bf16.mxu0 0
  %2379 = vmatpush2.bf16.msra.mxu0 0
  %2380 = vmatprep.subr.bf16.mxu0 0
  %2381 = vmatpush2.bf16.msra.mxu0 0
  %2382 = vmatprep.subr.bf16.mxu0 0
  %2383 = vmatpush2.bf16.msra.mxu0 0
  %2384 = vmatprep.mubr.bf16.mxu0 0
  %2385 = vmatmul.mubr.bf16.gmra.mxu0 %v2325
  %v2386 = vpop.f32.mrf.mxu0
  %v2387 = vadd.f32 %v2261, %v2386
  %v2388 = vpop.f32.mrf.mxu0
  %v2389 = vpop.f32.mrf.mxu0
  %v2390 = vadd.f32 %v2264, %v2389
  %v2391 = vpop.f32.mrf.mxu0
  %2392 = vmatprep.mubr.bf16.mxu0 0
  %2393 = vmatmul.mubr.bf16.gmra.mxu0 %v2328
  %v2394 = vpop.f32.mrf.mxu0
  %v2395 = vadd.f32 %v2269, %v2394
  %v2396 = vpop.f32.mrf.mxu0
  %v2397 = vpop.f32.mrf.mxu0
  %v2398 = vadd.f32 %v2272, %v2397
  %v2399 = vpop.f32.mrf.mxu0
  %2400 = vmatprep.mubr.bf16.mxu0 0
  %2401 = vmatmul.mubr.bf16.gmra.mxu0 %v2331
  %v2402 = vpop.f32.mrf.mxu0
  %v2403 = vadd.f32 %v2277, %v2402
  %v2404 = vpop.f32.mrf.mxu0
  %v2405 = vpop.f32.mrf.mxu0
  %v2406 = vadd.f32 %v2280, %v2405
  %v2407 = vpop.f32.mrf.mxu0
  %2408 = vmatprep.mubr.bf16.mxu0 0
  %2409 = vmatmul.mubr.bf16.gmra.mxu0 %v2334
  %v2410 = vpop.f32.mrf.mxu0
  %v2411 = vadd.f32 %v2285, %v2410
  %v2412 = vpop.f32.mrf.mxu0
  %v2413 = vpop.f32.mrf.mxu0
  %v2414 = vadd.f32 %v2288, %v2413
  %v2415 = vpop.f32.mrf.mxu0
  %2416 = vmatprep.mubr.bf16.mxu0 0
  %2417 = vmatmul.mubr.bf16.gmra.mxu0 %v2337
  %v2418 = vpop.f32.mrf.mxu0
  %v2419 = vadd.f32 %v2293, %v2418
  %v2420 = vpop.f32.mrf.mxu0
  %v2421 = vpop.f32.mrf.mxu0
  %v2422 = vadd.f32 %v2296, %v2421
  %v2423 = vpop.f32.mrf.mxu0
  %2424 = vmatprep.mubr.bf16.mxu0 0
  %2425 = vmatmul.mubr.bf16.gmra.mxu0 %v2340
  %v2426 = vpop.f32.mrf.mxu0
  %v2427 = vadd.f32 %v2301, %v2426
  %v2428 = vpop.f32.mrf.mxu0
  %v2429 = vpop.f32.mrf.mxu0
  %v2430 = vadd.f32 %v2304, %v2429
  %v2431 = vpop.f32.mrf.mxu0
  %2432 = vmatprep.mubr.bf16.mxu0 0
  %2433 = vmatmul.mubr.bf16.gmra.mxu0 %v2343
  %v2434 = vpop.f32.mrf.mxu0
  %v2435 = vadd.f32 %v2309, %v2434
  %v2436 = vpop.f32.mrf.mxu0
  %v2437 = vpop.f32.mrf.mxu0
  %v2438 = vadd.f32 %v2312, %v2437
  %v2439 = vpop.f32.mrf.mxu0
  %2440 = vmatprep.mubr.bf16.mxu0 0
  %2441 = vmatmul.mubr.bf16.gmra.mxu0 %v2346
  %v2442 = vpop.f32.mrf.mxu0
  %v2443 = vadd.f32 %v2317, %v2442
  %v2444 = vpop.f32.mrf.mxu0
  %v2445 = vpop.f32.mrf.mxu0
  %v2446 = vadd.f32 %v2320, %v2445
  %v2447 = vpop.f32.mrf.mxu0
  %2448 = vdwg.mxu0
  %v2449 = vld [vmem:[%s5] sm:$0x1]
  %v2451 = vlaneseq
  %v2452 = vshrl.u32 %v2451, 7
  %v2453 = vsub.s32 0, %v2452
  %v2454 = vrot.slane %v2449, %v2453
  %v2456 = vadd.f32 %v2387, %v2454
  %v2457 = vadd.f32 %v2390, %v2454
  %v2458 = vadd.f32 %v2395, %v2454
  %v2459 = vadd.f32 %v2398, %v2454
  %v2460 = vadd.f32 %v2403, %v2454
  %v2461 = vadd.f32 %v2406, %v2454
  %v2462 = vadd.f32 %v2411, %v2454
  %v2463 = vadd.f32 %v2414, %v2454
  %v2464 = vadd.f32 %v2419, %v2454
  %v2465 = vadd.f32 %v2422, %v2454
  %v2466 = vadd.f32 %v2427, %v2454
  %v2467 = vadd.f32 %v2430, %v2454
  %v2468 = vadd.f32 %v2435, %v2454
  %v2469 = vadd.f32 %v2438, %v2454
  %v2470 = vadd.f32 %v2443, %v2454
  %v2471 = vadd.f32 %v2446, %v2454
  %v2472 = vpack.c.bf16 %v2457, %v2456
  %v2473 = vpack.c.bf16 %v2459, %v2458
  %v2474 = vpack.c.bf16 %v2461, %v2460
  %v2475 = vpack.c.bf16 %v2463, %v2462
  %v2476 = vpack.c.bf16 %v2465, %v2464
  %v2477 = vpack.c.bf16 %v2467, %v2466
  %v2478 = vpack.c.bf16 %v2469, %v2468
  %v2479 = vpack.c.bf16 %v2471, %v2470
  %v2480 = vld [vmem:[%s6] sm:$0xf]
  %v2481 = vld [vmem:[%s6 + $0x4] sm:$0xf]
  %v2482 = vld [vmem:[%s6 + $0x8] sm:$0xf]
  %v2483 = vld [vmem:[%s6 + $0xc] sm:$0xf]
  %v2484 = vld [vmem:[%s6 + $0x10] sm:$0xf]
  %v2485 = vld [vmem:[%s6 + $0x14] sm:$0xf]
  %v2486 = vld [vmem:[%s6 + $0x18] sm:$0xf]
  %v2487 = vld [vmem:[%s6 + $0x1c] sm:$0xf]
  %v2488 = vld [vmem:[%s6 + $0x20] sm:$0xf]
  %v2489 = vld [vmem:[%s6 + $0x24] sm:$0xf]
  %v2490 = vld [vmem:[%s6 + $0x28] sm:$0xf]
  %v2491 = vld [vmem:[%s6 + $0x2c] sm:$0xf]
  %v2492 = vld [vmem:[%s6 + $0x30] sm:$0xf]
  %v2493 = vld [vmem:[%s6 + $0x34] sm:$0xf]
  %v2494 = vld [vmem:[%s6 + $0x38] sm:$0xf]
  %v2495 = vld [vmem:[%s6 + $0x3c] sm:$0xf]
  %v2496 = vld [vmem:[%s7] sm:$0x1]
  %v2498 = vlaneseq
  %v2499 = vshrl.u32 %v2498, 7
  %v2500 = vsub.s32 0, %v2499
  %v2501 = vrot.slane %v2496, %v2500
  %v2519 = vunpack.c.l.b16 %v2480
  %v2520 = vunpack.c.l.b16 %v2481
  %v2521 = vunpack.c.l.b16 %v2482
  %v2522 = vunpack.c.l.b16 %v2483
  %v2523 = vunpack.c.l.b16 %v2484
  %v2524 = vunpack.c.l.b16 %v2485
  %v2525 = vunpack.c.l.b16 %v2486
  %v2526 = vunpack.c.l.b16 %v2487
  %v2527 = vunpack.c.l.b16 %v2488
  %v2528 = vunpack.c.l.b16 %v2489
  %v2529 = vunpack.c.l.b16 %v2490
  %v2530 = vunpack.c.l.b16 %v2491
  %v2531 = vunpack.c.l.b16 %v2492
  %v2532 = vunpack.c.l.b16 %v2493
  %v2533 = vunpack.c.l.b16 %v2494
  %v2534 = vunpack.c.l.b16 %v2495
  %v2535 = vpack.c.b16 %v2520, %v2519
  %v2536 = vpack.c.b16 %v2522, %v2521
  %v2537 = vpack.c.b16 %v2524, %v2523
  %v2538 = vpack.c.b16 %v2526, %v2525
  %v2539 = vpack.c.b16 %v2528, %v2527
  %v2540 = vpack.c.b16 %v2530, %v2529
  %v2541 = vpack.c.b16 %v2532, %v2531
  %v2542 = vpack.c.b16 %v2534, %v2533
  %2551 = vmatprep.subr.bf16.mxu0 0
  %2552 = vmatpush1.bf16.msra.mxu0 %v2542
  %2553 = vmatprep.subr.bf16.mxu0 0
  %2554 = vmatpush1.bf16.msra.mxu0 %v2541
  %2555 = vmatprep.subr.bf16.mxu0 0
  %2556 = vmatpush1.bf16.msra.mxu0 %v2540
  %2557 = vmatprep.subr.bf16.mxu0 0
  %2558 = vmatpush1.bf16.msra.mxu0 %v2539
  %2559 = vmatprep.subr.bf16.mxu0 0
  %2560 = vmatpush1.bf16.msra.mxu0 %v2538
  %2561 = vmatprep.subr.bf16.mxu0 0
  %2562 = vmatpush1.bf16.msra.mxu0 %v2537
  %2563 = vmatprep.subr.bf16.mxu0 0
  %2564 = vmatpush1.bf16.msra.mxu0 %v2536
  %2565 = vmatprep.subr.bf16.mxu0 0
  %2566 = vmatpush1.bf16.msra.mxu0 %v2535
  %2567 = vmatprep.subr.bf16.mxu0 0
  %2568 = vmatpush2.bf16.msra.mxu0 0
  %2569 = vmatprep.subr.bf16.mxu0 0
  %2570 = vmatpush2.bf16.msra.mxu0 0
  %2571 = vmatprep.subr.bf16.mxu0 0
  %2572 = vmatpush2.bf16.msra.mxu0 0
  %2573 = vmatprep.subr.bf16.mxu0 0
  %2574 = vmatpush2.bf16.msra.mxu0 0
  %2575 = vmatprep.subr.bf16.mxu0 0
  %2576 = vmatpush2.bf16.msra.mxu0 0
  %2577 = vmatprep.subr.bf16.mxu0 0
  %2578 = vmatpush2.bf16.msra.mxu0 0
  %2579 = vmatprep.subr.bf16.mxu0 0
  %2580 = vmatpush2.bf16.msra.mxu0 0
  %2581 = vmatprep.subr.bf16.mxu0 0
  %2582 = vmatpush2.bf16.msra.mxu0 0
  %2583 = vmatprep.mubr.bf16.mxu0 0
  %2584 = vmatmul.mubr.bf16.gmra.mxu0 %v2472
  %v2585 = vpop.f32.mrf.mxu0
  %v2586 = vadd.f32 %v2501, %v2585
  %v2587 = vpop.f32.mrf.mxu0
  %v2588 = vpop.f32.mrf.mxu0
  %v2589 = vadd.f32 %v2501, %v2588
  %v2590 = vpop.f32.mrf.mxu0
  %2591 = vmatprep.mubr.bf16.mxu0 0
  %2592 = vmatmul.mubr.bf16.gmra.mxu0 %v2473
  %v2593 = vpop.f32.mrf.mxu0
  %v2594 = vadd.f32 %v2501, %v2593
  %v2595 = vpop.f32.mrf.mxu0
  %v2596 = vpop.f32.mrf.mxu0
  %v2597 = vadd.f32 %v2501, %v2596
  %v2598 = vpop.f32.mrf.mxu0
  %2599 = vmatprep.mubr.bf16.mxu0 0
  %2600 = vmatmul.mubr.bf16.gmra.mxu0 %v2474
  %v2601 = vpop.f32.mrf.mxu0
  %v2602 = vadd.f32 %v2501, %v2601
  %v2603 = vpop.f32.mrf.mxu0
  %v2604 = vpop.f32.mrf.mxu0
  %v2605 = vadd.f32 %v2501, %v2604
  %v2606 = vpop.f32.mrf.mxu0
  %2607 = vmatprep.mubr.bf16.mxu0 0
  %2608 = vmatmul.mubr.bf16.gmra.mxu0 %v2475
  %v2609 = vpop.f32.mrf.mxu0
  %v2610 = vadd.f32 %v2501, %v2609
  %v2611 = vpop.f32.mrf.mxu0
  %v2612 = vpop.f32.mrf.mxu0
  %v2613 = vadd.f32 %v2501, %v2612
  %v2614 = vpop.f32.mrf.mxu0
  %2615 = vmatprep.mubr.bf16.mxu0 0
  %2616 = vmatmul.mubr.bf16.gmra.mxu0 %v2476
  %v2617 = vpop.f32.mrf.mxu0
  %v2618 = vadd.f32 %v2501, %v2617
  %v2619 = vpop.f32.mrf.mxu0
  %v2620 = vpop.f32.mrf.mxu0
  %v2621 = vadd.f32 %v2501, %v2620
  %v2622 = vpop.f32.mrf.mxu0
  %2623 = vmatprep.mubr.bf16.mxu0 0
  %2624 = vmatmul.mubr.bf16.gmra.mxu0 %v2477
  %v2625 = vpop.f32.mrf.mxu0
  %v2626 = vadd.f32 %v2501, %v2625
  %v2627 = vpop.f32.mrf.mxu0
  %v2628 = vpop.f32.mrf.mxu0
  %v2629 = vadd.f32 %v2501, %v2628
  %v2630 = vpop.f32.mrf.mxu0
  %2631 = vmatprep.mubr.bf16.mxu0 0
  %2632 = vmatmul.mubr.bf16.gmra.mxu0 %v2478
  %v2633 = vpop.f32.mrf.mxu0
  %v2634 = vadd.f32 %v2501, %v2633
  %v2635 = vpop.f32.mrf.mxu0
  %v2636 = vpop.f32.mrf.mxu0
  %v2637 = vadd.f32 %v2501, %v2636
  %v2638 = vpop.f32.mrf.mxu0
  %2639 = vmatprep.mubr.bf16.mxu0 0
  %2640 = vmatmul.mubr.bf16.gmra.mxu0 %v2479
  %v2641 = vpop.f32.mrf.mxu0
  %v2642 = vadd.f32 %v2501, %v2641
  %v2643 = vpop.f32.mrf.mxu0
  %v2644 = vpop.f32.mrf.mxu0
  %v2645 = vadd.f32 %v2501, %v2644
  %v2646 = vpop.f32.mrf.mxu0
  %2647 = vdwg.mxu0
  %v2648 = vtanh.pop %v2586
  %v2649 = vtanh.pop %v2589
  %v2650 = vtanh.pop %v2594
  %v2651 = vtanh.pop %v2597
  %v2652 = vtanh.pop %v2602
  %v2653 = vtanh.pop %v2605
  %v2654 = vtanh.pop %v2610
  %v2655 = vtanh.pop %v2613
  %v2656 = vtanh.pop %v2618
  %v2657 = vtanh.pop %v2621
  %v2658 = vtanh.pop %v2626
  %v2659 = vtanh.pop %v2629
  %v2660 = vtanh.pop %v2634
  %v2661 = vtanh.pop %v2637
  %v2662 = vtanh.pop %v2642
  %v2663 = vtanh.pop %v2645
  %v2664 = vpack.c.bf16 %v2649, %v2648
  %v2665 = vpack.c.bf16 %v2651, %v2650
  %v2666 = vpack.c.bf16 %v2653, %v2652
  %v2667 = vpack.c.bf16 %v2655, %v2654
  %v2668 = vpack.c.bf16 %v2657, %v2656
  %v2669 = vpack.c.bf16 %v2659, %v2658
  %v2670 = vpack.c.bf16 %v2661, %v2660
  %v2671 = vpack.c.bf16 %v2663, %v2662
  %v2672 = vld [vmem:[%s8] sm:$0xf]
  %v2673 = vld [vmem:[%s8 + $0x4] sm:$0xf]
  %v2674 = vld [vmem:[%s8 + $0x8] sm:$0xf]
  %v2675 = vld [vmem:[%s8 + $0xc] sm:$0xf]
  %v2676 = vld [vmem:[%s8 + $0x10] sm:$0xf]
  %v2677 = vld [vmem:[%s8 + $0x14] sm:$0xf]
  %v2678 = vld [vmem:[%s8 + $0x18] sm:$0xf]
  %v2679 = vld [vmem:[%s8 + $0x1c] sm:$0xf]
  %v2680 = vld [vmem:[%s8 + $0x20] sm:$0xf]
  %v2681 = vld [vmem:[%s8 + $0x24] sm:$0xf]
  %v2682 = vld [vmem:[%s8 + $0x28] sm:$0xf]
  %v2683 = vld [vmem:[%s8 + $0x2c] sm:$0xf]
  %v2684 = vld [vmem:[%s8 + $0x30] sm:$0xf]
  %v2685 = vld [vmem:[%s8 + $0x34] sm:$0xf]
  %v2686 = vld [vmem:[%s8 + $0x38] sm:$0xf]
  %v2687 = vld [vmem:[%s8 + $0x3c] sm:$0xf]
  %v2688 = vld [vmem:[%s9] sm:$0x1]
  %v2690 = vlaneseq
  %v2691 = vshrl.u32 %v2690, 7
  %v2692 = vsub.s32 0, %v2691
  %v2693 = vrot.slane %v2688, %v2692
  %v2711 = vunpack.c.l.b16 %v2672
  %v2712 = vunpack.c.l.b16 %v2673
  %v2713 = vunpack.c.l.b16 %v2674
  %v2714 = vunpack.c.l.b16 %v2675
  %v2715 = vunpack.c.l.b16 %v2676
  %v2716 = vunpack.c.l.b16 %v2677
  %v2717 = vunpack.c.l.b16 %v2678
  %v2718 = vunpack.c.l.b16 %v2679
  %v2719 = vunpack.c.l.b16 %v2680
  %v2720 = vunpack.c.l.b16 %v2681
  %v2721 = vunpack.c.l.b16 %v2682
  %v2722 = vunpack.c.l.b16 %v2683
  %v2723 = vunpack.c.l.b16 %v2684
  %v2724 = vunpack.c.l.b16 %v2685
  %v2725 = vunpack.c.l.b16 %v2686
  %v2726 = vunpack.c.l.b16 %v2687
  %v2727 = vpack.c.b16 %v2712, %v2711
  %v2728 = vpack.c.b16 %v2714, %v2713
  %v2729 = vpack.c.b16 %v2716, %v2715
  %v2730 = vpack.c.b16 %v2718, %v2717
  %v2731 = vpack.c.b16 %v2720, %v2719
  %v2732 = vpack.c.b16 %v2722, %v2721
  %v2733 = vpack.c.b16 %v2724, %v2723
  %v2734 = vpack.c.b16 %v2726, %v2725
  %2743 = vmatprep.subr.bf16.mxu0 0
  %2744 = vmatpush1.bf16.msra.mxu0 %v2734
  %2745 = vmatprep.subr.bf16.mxu0 0
  %2746 = vmatpush1.bf16.msra.mxu0 %v2733
  %2747 = vmatprep.subr.bf16.mxu0 0
  %2748 = vmatpush1.bf16.msra.mxu0 %v2732
  %2749 = vmatprep.subr.bf16.mxu0 0
  %2750 = vmatpush1.bf16.msra.mxu0 %v2731
  %2751 = vmatprep.subr.bf16.mxu0 0
  %2752 = vmatpush1.bf16.msra.mxu0 %v2730
  %2753 = vmatprep.subr.bf16.mxu0 0
  %2754 = vmatpush1.bf16.msra.mxu0 %v2729
  %2755 = vmatprep.subr.bf16.mxu0 0
  %2756 = vmatpush1.bf16.msra.mxu0 %v2728
  %2757 = vmatprep.subr.bf16.mxu0 0
  %2758 = vmatpush1.bf16.msra.mxu0 %v2727
  %2759 = vmatprep.subr.bf16.mxu0 0
  %2760 = vmatpush2.bf16.msra.mxu0 0
  %2761 = vmatprep.subr.bf16.mxu0 0
  %2762 = vmatpush2.bf16.msra.mxu0 0
  %2763 = vmatprep.subr.bf16.mxu0 0
  %2764 = vmatpush2.bf16.msra.mxu0 0
  %2765 = vmatprep.subr.bf16.mxu0 0
  %2766 = vmatpush2.bf16.msra.mxu0 0
  %2767 = vmatprep.subr.bf16.mxu0 0
  %2768 = vmatpush2.bf16.msra.mxu0 0
  %2769 = vmatprep.subr.bf16.mxu0 0
  %2770 = vmatpush2.bf16.msra.mxu0 0
  %2771 = vmatprep.subr.bf16.mxu0 0
  %2772 = vmatpush2.bf16.msra.mxu0 0
  %2773 = vmatprep.subr.bf16.mxu0 0
  %2774 = vmatpush2.bf16.msra.mxu0 0
  %2775 = vmatprep.mubr.bf16.mxu0 0
  %2776 = vmatmul.mubr.bf16.gmra.mxu0 %v2664
  %v2777 = vpop.f32.mrf.mxu0
  %v2778 = vadd.f32 %v2693, %v2777
  %v2779 = vpop.f32.mrf.mxu0
  %v2780 = vpop.f32.mrf.mxu0
  %v2781 = vadd.f32 %v2693, %v2780
  %v2782 = vpop.f32.mrf.mxu0
  %2783 = vmatprep.mubr.bf16.mxu0 0
  %2784 = vmatmul.mubr.bf16.gmra.mxu0 %v2665
  %v2785 = vpop.f32.mrf.mxu0
  %v2786 = vadd.f32 %v2693, %v2785
  %v2787 = vpop.f32.mrf.mxu0
  %v2788 = vpop.f32.mrf.mxu0
  %v2789 = vadd.f32 %v2693, %v2788
  %v2790 = vpop.f32.mrf.mxu0
  %2791 = vmatprep.mubr.bf16.mxu0 0
  %2792 = vmatmul.mubr.bf16.gmra.mxu0 %v2666
  %v2793 = vpop.f32.mrf.mxu0
  %v2794 = vadd.f32 %v2693, %v2793
  %v2795 = vpop.f32.mrf.mxu0
  %v2796 = vpop.f32.mrf.mxu0
  %v2797 = vadd.f32 %v2693, %v2796
  %v2798 = vpop.f32.mrf.mxu0
  %2799 = vmatprep.mubr.bf16.mxu0 0
  %2800 = vmatmul.mubr.bf16.gmra.mxu0 %v2667
  %v2801 = vpop.f32.mrf.mxu0
  %v2802 = vadd.f32 %v2693, %v2801
  %v2803 = vpop.f32.mrf.mxu0
  %v2804 = vpop.f32.mrf.mxu0
  %v2805 = vadd.f32 %v2693, %v2804
  %v2806 = vpop.f32.mrf.mxu0
  %2807 = vmatprep.mubr.bf16.mxu0 0
  %2808 = vmatmul.mubr.bf16.gmra.mxu0 %v2668
  %v2809 = vpop.f32.mrf.mxu0
  %v2810 = vadd.f32 %v2693, %v2809
  %v2811 = vpop.f32.mrf.mxu0
  %v2812 = vpop.f32.mrf.mxu0
  %v2813 = vadd.f32 %v2693, %v2812
  %v2814 = vpop.f32.mrf.mxu0
  %2815 = vmatprep.mubr.bf16.mxu0 0
  %2816 = vmatmul.mubr.bf16.gmra.mxu0 %v2669
  %v2817 = vpop.f32.mrf.mxu0
  %v2818 = vadd.f32 %v2693, %v2817
  %v2819 = vpop.f32.mrf.mxu0
  %v2820 = vpop.f32.mrf.mxu0
  %v2821 = vadd.f32 %v2693, %v2820
  %v2822 = vpop.f32.mrf.mxu0
  %2823 = vmatprep.mubr.bf16.mxu0 0
  %2824 = vmatmul.mubr.bf16.gmra.mxu0 %v2670
  %v2825 = vpop.f32.mrf.mxu0
  %v2826 = vadd.f32 %v2693, %v2825
  %v2827 = vpop.f32.mrf.mxu0
  %v2828 = vpop.f32.mrf.mxu0
  %v2829 = vadd.f32 %v2693, %v2828
  %v2830 = vpop.f32.mrf.mxu0
  %2831 = vmatprep.mubr.bf16.mxu0 0
  %2832 = vmatmul.mubr.bf16.gmra.mxu0 %v2671
  %v2833 = vpop.f32.mrf.mxu0
  %v2834 = vadd.f32 %v2693, %v2833
  %v2835 = vpop.f32.mrf.mxu0
  %v2836 = vpop.f32.mrf.mxu0
  %v2837 = vadd.f32 %v2693, %v2836
  %v2838 = vpop.f32.mrf.mxu0
  %2839 = vdwg.mxu0
  %v2840 = vtanh.pop %v2778
  %v2841 = vtanh.pop %v2781
  %v2842 = vtanh.pop %v2786
  %v2843 = vtanh.pop %v2789
  %v2844 = vtanh.pop %v2794
  %v2845 = vtanh.pop %v2797
  %v2846 = vtanh.pop %v2802
  %v2847 = vtanh.pop %v2805
  %v2848 = vtanh.pop %v2810
  %v2849 = vtanh.pop %v2813
  %v2850 = vtanh.pop %v2818
  %v2851 = vtanh.pop %v2821
  %v2852 = vtanh.pop %v2826
  %v2853 = vtanh.pop %v2829
  %v2854 = vtanh.pop %v2834
  %v2855 = vtanh.pop %v2837
  %v2856 = vpack.c.bf16 %v2841, %v2840
  %v2857 = vpack.c.bf16 %v2843, %v2842
  %v2858 = vpack.c.bf16 %v2845, %v2844
  %v2859 = vpack.c.bf16 %v2847, %v2846
  %v2860 = vpack.c.bf16 %v2849, %v2848
  %v2861 = vpack.c.bf16 %v2851, %v2850
  %v2862 = vpack.c.bf16 %v2853, %v2852
  %v2863 = vpack.c.bf16 %v2855, %v2854
  %v2864 = vld [vmem:[%s10] sm:$0xf]
  %v2865 = vld [vmem:[%s10 + $0x4] sm:$0xf]
  %v2866 = vld [vmem:[%s10 + $0x8] sm:$0xf]
  %v2867 = vld [vmem:[%s10 + $0xc] sm:$0xf]
  %v2868 = vld [vmem:[%s10 + $0x10] sm:$0xf]
  %v2869 = vld [vmem:[%s10 + $0x14] sm:$0xf]
  %v2870 = vld [vmem:[%s10 + $0x18] sm:$0xf]
  %v2871 = vld [vmem:[%s10 + $0x1c] sm:$0xf]
  %v2872 = vld [vmem:[%s10 + $0x20] sm:$0xf]
  %v2873 = vld [vmem:[%s10 + $0x24] sm:$0xf]
  %v2874 = vld [vmem:[%s10 + $0x28] sm:$0xf]
  %v2875 = vld [vmem:[%s10 + $0x2c] sm:$0xf]
  %v2876 = vld [vmem:[%s10 + $0x30] sm:$0xf]
  %v2877 = vld [vmem:[%s10 + $0x34] sm:$0xf]
  %v2878 = vld [vmem:[%s10 + $0x38] sm:$0xf]
  %v2879 = vld [vmem:[%s10 + $0x3c] sm:$0xf]
  %v2880 = vld [vmem:[%s11] sm:$0x1]
  %v2882 = vlaneseq
  %v2883 = vshrl.u32 %v2882, 7
  %v2884 = vsub.s32 0, %v2883
  %v2885 = vrot.slane %v2880, %v2884
  %v2903 = vunpack.c.l.b16 %v2864
  %v2904 = vunpack.c.l.b16 %v2865
  %v2905 = vunpack.c.l.b16 %v2866
  %v2906 = vunpack.c.l.b16 %v2867
  %v2907 = vunpack.c.l.b16 %v2868
  %v2908 = vunpack.c.l.b16 %v2869
  %v2909 = vunpack.c.l.b16 %v2870
  %v2910 = vunpack.c.l.b16 %v2871
  %v2911 = vunpack.c.l.b16 %v2872
  %v2912 = vunpack.c.l.b16 %v2873
  %v2913 = vunpack.c.l.b16 %v2874
  %v2914 = vunpack.c.l.b16 %v2875
  %v2915 = vunpack.c.l.b16 %v2876
  %v2916 = vunpack.c.l.b16 %v2877
  %v2917 = vunpack.c.l.b16 %v2878
  %v2918 = vunpack.c.l.b16 %v2879
  %v2919 = vpack.c.b16 %v2904, %v2903
  %v2920 = vpack.c.b16 %v2906, %v2905
  %v2921 = vpack.c.b16 %v2908, %v2907
  %v2922 = vpack.c.b16 %v2910, %v2909
  %v2923 = vpack.c.b16 %v2912, %v2911
  %v2924 = vpack.c.b16 %v2914, %v2913
  %v2925 = vpack.c.b16 %v2916, %v2915
  %v2926 = vpack.c.b16 %v2918, %v2917
  %2935 = vmatprep.subr.bf16.mxu0 0
  %2936 = vmatpush1.bf16.msra.mxu0 %v2926
  %2937 = vmatprep.subr.bf16.mxu0 0
  %2938 = vmatpush1.bf16.msra.mxu0 %v2925
  %2939 = vmatprep.subr.bf16.mxu0 0
  %2940 = vmatpush1.bf16.msra.mxu0 %v2924
  %2941 = vmatprep.subr.bf16.mxu0 0
  %2942 = vmatpush1.bf16.msra.mxu0 %v2923
  %2943 = vmatprep.subr.bf16.mxu0 0
  %2944 = vmatpush1.bf16.msra.mxu0 %v2922
  %2945 = vmatprep.subr.bf16.mxu0 0
  %2946 = vmatpush1.bf16.msra.mxu0 %v2921
  %2947 = vmatprep.subr.bf16.mxu0 0
  %2948 = vmatpush1.bf16.msra.mxu0 %v2920
  %2949 = vmatprep.subr.bf16.mxu0 0
  %2950 = vmatpush1.bf16.msra.mxu0 %v2919
  %2951 = vmatprep.subr.bf16.mxu0 0
  %2952 = vmatpush2.bf16.msra.mxu0 0
  %2953 = vmatprep.subr.bf16.mxu0 0
  %2954 = vmatpush2.bf16.msra.mxu0 0
  %2955 = vmatprep.subr.bf16.mxu0 0
  %2956 = vmatpush2.bf16.msra.mxu0 0
  %2957 = vmatprep.subr.bf16.mxu0 0
  %2958 = vmatpush2.bf16.msra.mxu0 0
  %2959 = vmatprep.subr.bf16.mxu0 0
  %2960 = vmatpush2.bf16.msra.mxu0 0
  %2961 = vmatprep.subr.bf16.mxu0 0
  %2962 = vmatpush2.bf16.msra.mxu0 0
  %2963 = vmatprep.subr.bf16.mxu0 0
  %2964 = vmatpush2.bf16.msra.mxu0 0
  %2965 = vmatprep.subr.bf16.mxu0 0
  %2966 = vmatpush2.bf16.msra.mxu0 0
  %2967 = vmatprep.mubr.bf16.mxu0 0
  %2968 = vmatmul.mubr.bf16.gmra.mxu0 %v2856
  %v2969 = vpop.f32.mrf.mxu0
  %v2970 = vadd.f32 %v2885, %v2969
  %v2971 = vpop.f32.mrf.mxu0
  %v2972 = vpop.f32.mrf.mxu0
  %v2973 = vadd.f32 %v2885, %v2972
  %v2974 = vpop.f32.mrf.mxu0
  %2975 = vmatprep.mubr.bf16.mxu0 0
  %2976 = vmatmul.mubr.bf16.gmra.mxu0 %v2857
  %v2977 = vpop.f32.mrf.mxu0
  %v2978 = vadd.f32 %v2885, %v2977
  %v2979 = vpop.f32.mrf.mxu0
  %v2980 = vpop.f32.mrf.mxu0
  %v2981 = vadd.f32 %v2885, %v2980
  %v2982 = vpop.f32.mrf.mxu0
  %2983 = vmatprep.mubr.bf16.mxu0 0
  %2984 = vmatmul.mubr.bf16.gmra.mxu0 %v2858
  %v2985 = vpop.f32.mrf.mxu0
  %v2986 = vadd.f32 %v2885, %v2985
  %v2987 = vpop.f32.mrf.mxu0
  %v2988 = vpop.f32.mrf.mxu0
  %v2989 = vadd.f32 %v2885, %v2988
  %v2990 = vpop.f32.mrf.mxu0
  %2991 = vmatprep.mubr.bf16.mxu0 0
  %2992 = vmatmul.mubr.bf16.gmra.mxu0 %v2859
  %v2993 = vpop.f32.mrf.mxu0
  %v2994 = vadd.f32 %v2885, %v2993
  %v2995 = vpop.f32.mrf.mxu0
  %v2996 = vpop.f32.mrf.mxu0
  %v2997 = vadd.f32 %v2885, %v2996
  %v2998 = vpop.f32.mrf.mxu0
  %2999 = vmatprep.mubr.bf16.mxu0 0
  %3000 = vmatmul.mubr.bf16.gmra.mxu0 %v2860
  %v3001 = vpop.f32.mrf.mxu0
  %v3002 = vadd.f32 %v2885, %v3001
  %v3003 = vpop.f32.mrf.mxu0
  %v3004 = vpop.f32.mrf.mxu0
  %v3005 = vadd.f32 %v2885, %v3004
  %v3006 = vpop.f32.mrf.mxu0
  %3007 = vmatprep.mubr.bf16.mxu0 0
  %3008 = vmatmul.mubr.bf16.gmra.mxu0 %v2861
  %v3009 = vpop.f32.mrf.mxu0
  %v3010 = vadd.f32 %v2885, %v3009
  %v3011 = vpop.f32.mrf.mxu0
  %v3012 = vpop.f32.mrf.mxu0
  %v3013 = vadd.f32 %v2885, %v3012
  %v3014 = vpop.f32.mrf.mxu0
  %3015 = vmatprep.mubr.bf16.mxu0 0
  %3016 = vmatmul.mubr.bf16.gmra.mxu0 %v2862
  %v3017 = vpop.f32.mrf.mxu0
  %v3018 = vadd.f32 %v2885, %v3017
  %v3019 = vpop.f32.mrf.mxu0
  %v3020 = vpop.f32.mrf.mxu0
  %v3021 = vadd.f32 %v2885, %v3020
  %v3022 = vpop.f32.mrf.mxu0
  %3023 = vmatprep.mubr.bf16.mxu0 0
  %3024 = vmatmul.mubr.bf16.gmra.mxu0 %v2863
  %v3025 = vpop.f32.mrf.mxu0
  %v3026 = vadd.f32 %v2885, %v3025
  %v3027 = vpop.f32.mrf.mxu0
  %v3028 = vpop.f32.mrf.mxu0
  %v3029 = vadd.f32 %v2885, %v3028
  %v3030 = vpop.f32.mrf.mxu0
  %3031 = vdwg.mxu0
  %v3032 = vtanh.pop %v2970
  %v3033 = vtanh.pop %v2973
  %v3034 = vtanh.pop %v2978
  %v3035 = vtanh.pop %v2981
  %v3036 = vtanh.pop %v2986
  %v3037 = vtanh.pop %v2989
  %v3038 = vtanh.pop %v2994
  %v3039 = vtanh.pop %v2997
  %v3040 = vtanh.pop %v3002
  %v3041 = vtanh.pop %v3005
  %v3042 = vtanh.pop %v3010
  %v3043 = vtanh.pop %v3013
  %v3044 = vtanh.pop %v3018
  %v3045 = vtanh.pop %v3021
  %v3046 = vtanh.pop %v3026
  %v3047 = vtanh.pop %v3029
  %v3048 = vpack.c.bf16 %v3033, %v3032
  %v3049 = vpack.c.bf16 %v3035, %v3034
  %v3050 = vpack.c.bf16 %v3037, %v3036
  %v3051 = vpack.c.bf16 %v3039, %v3038
  %v3052 = vpack.c.bf16 %v3041, %v3040
  %v3053 = vpack.c.bf16 %v3043, %v3042
  %v3054 = vpack.c.bf16 %v3045, %v3044
  %v3055 = vpack.c.bf16 %v3047, %v3046
  %v3056 = vld [vmem:[%s12] sm:$0xf]
  %v3057 = vld [vmem:[%s12 + $0x4] sm:$0xf]
  %v3058 = vld [vmem:[%s12 + $0x8] sm:$0xf]
  %v3059 = vld [vmem:[%s12 + $0xc] sm:$0xf]
  %v3060 = vld [vmem:[%s12 + $0x10] sm:$0xf]
  %v3061 = vld [vmem:[%s12 + $0x14] sm:$0xf]
  %v3062 = vld [vmem:[%s12 + $0x18] sm:$0xf]
  %v3063 = vld [vmem:[%s12 + $0x1c] sm:$0xf]
  %v3064 = vld [vmem:[%s12 + $0x20] sm:$0xf]
  %v3065 = vld [vmem:[%s12 + $0x24] sm:$0xf]
  %v3066 = vld [vmem:[%s12 + $0x28] sm:$0xf]
  %v3067 = vld [vmem:[%s12 + $0x2c] sm:$0xf]
  %v3068 = vld [vmem:[%s12 + $0x30] sm:$0xf]
  %v3069 = vld [vmem:[%s12 + $0x34] sm:$0xf]
  %v3070 = vld [vmem:[%s12 + $0x38] sm:$0xf]
  %v3071 = vld [vmem:[%s12 + $0x3c] sm:$0xf]
  %v3072 = vld [vmem:[%s13] sm:$0x1]
  %v3074 = vlaneseq
  %v3075 = vshrl.u32 %v3074, 7
  %v3076 = vsub.s32 0, %v3075
  %v3077 = vrot.slane %v3072, %v3076
  %v3095 = vunpack.c.l.b16 %v3056
  %v3096 = vunpack.c.l.b16 %v3057
  %v3097 = vunpack.c.l.b16 %v3058
  %v3098 = vunpack.c.l.b16 %v3059
  %v3099 = vunpack.c.l.b16 %v3060
  %v3100 = vunpack.c.l.b16 %v3061
  %v3101 = vunpack.c.l.b16 %v3062
  %v3102 = vunpack.c.l.b16 %v3063
  %v3103 = vunpack.c.l.b16 %v3064
  %v3104 = vunpack.c.l.b16 %v3065
  %v3105 = vunpack.c.l.b16 %v3066
  %v3106 = vunpack.c.l.b16 %v3067
  %v3107 = vunpack.c.l.b16 %v3068
  %v3108 = vunpack.c.l.b16 %v3069
  %v3109 = vunpack.c.l.b16 %v3070
  %v3110 = vunpack.c.l.b16 %v3071
  %v3111 = vpack.c.b16 %v3096, %v3095
  %v3112 = vpack.c.b16 %v3098, %v3097
  %v3113 = vpack.c.b16 %v3100, %v3099
  %v3114 = vpack.c.b16 %v3102, %v3101
  %v3115 = vpack.c.b16 %v3104, %v3103
  %v3116 = vpack.c.b16 %v3106, %v3105
  %v3117 = vpack.c.b16 %v3108, %v3107
  %v3118 = vpack.c.b16 %v3110, %v3109
  %3127 = vmatprep.subr.bf16.mxu0 0
  %3128 = vmatpush1.bf16.msra.mxu0 %v3118
  %3129 = vmatprep.subr.bf16.mxu0 0
  %3130 = vmatpush1.bf16.msra.mxu0 %v3117
  %3131 = vmatprep.subr.bf16.mxu0 0
  %3132 = vmatpush1.bf16.msra.mxu0 %v3116
  %3133 = vmatprep.subr.bf16.mxu0 0
  %3134 = vmatpush1.bf16.msra.mxu0 %v3115
  %3135 = vmatprep.subr.bf16.mxu0 0
  %3136 = vmatpush1.bf16.msra.mxu0 %v3114
  %3137 = vmatprep.subr.bf16.mxu0 0
  %3138 = vmatpush1.bf16.msra.mxu0 %v3113
  %3139 = vmatprep.subr.bf16.mxu0 0
  %3140 = vmatpush1.bf16.msra.mxu0 %v3112
  %3141 = vmatprep.subr.bf16.mxu0 0
  %3142 = vmatpush1.bf16.msra.mxu0 %v3111
  %3143 = vmatprep.subr.bf16.mxu0 0
  %3144 = vmatpush2.bf16.msra.mxu0 0
  %3145 = vmatprep.subr.bf16.mxu0 0
  %3146 = vmatpush2.bf16.msra.mxu0 0
  %3147 = vmatprep.subr.bf16.mxu0 0
  %3148 = vmatpush2.bf16.msra.mxu0 0
  %3149 = vmatprep.subr.bf16.mxu0 0
  %3150 = vmatpush2.bf16.msra.mxu0 0
  %3151 = vmatprep.subr.bf16.mxu0 0
  %3152 = vmatpush2.bf16.msra.mxu0 0
  %3153 = vmatprep.subr.bf16.mxu0 0
  %3154 = vmatpush2.bf16.msra.mxu0 0
  %3155 = vmatprep.subr.bf16.mxu0 0
  %3156 = vmatpush2.bf16.msra.mxu0 0
  %3157 = vmatprep.subr.bf16.mxu0 0
  %3158 = vmatpush2.bf16.msra.mxu0 0
  %3159 = vmatprep.mubr.bf16.mxu0 0
  %3160 = vmatmul.mubr.bf16.gmra.mxu0 %v3048
  %v3161 = vpop.f32.mrf.mxu0
  %v3162 = vadd.f32 %v3077, %v3161
  %v3163 = vpop.f32.mrf.mxu0
  %v3164 = vpop.f32.mrf.mxu0
  %v3165 = vadd.f32 %v3077, %v3164
  %v3166 = vpop.f32.mrf.mxu0
  %3167 = vmatprep.mubr.bf16.mxu0 0
  %3168 = vmatmul.mubr.bf16.gmra.mxu0 %v3049
  %v3169 = vpop.f32.mrf.mxu0
  %v3170 = vadd.f32 %v3077, %v3169
  %v3171 = vpop.f32.mrf.mxu0
  %v3172 = vpop.f32.mrf.mxu0
  %v3173 = vadd.f32 %v3077, %v3172
  %v3174 = vpop.f32.mrf.mxu0
  %3175 = vmatprep.mubr.bf16.mxu0 0
  %3176 = vmatmul.mubr.bf16.gmra.mxu0 %v3050
  %v3177 = vpop.f32.mrf.mxu0
  %v3178 = vadd.f32 %v3077, %v3177
  %v3179 = vpop.f32.mrf.mxu0
  %v3180 = vpop.f32.mrf.mxu0
  %v3181 = vadd.f32 %v3077, %v3180
  %v3182 = vpop.f32.mrf.mxu0
  %3183 = vmatprep.mubr.bf16.mxu0 0
  %3184 = vmatmul.mubr.bf16.gmra.mxu0 %v3051
  %v3185 = vpop.f32.mrf.mxu0
  %v3186 = vadd.f32 %v3077, %v3185
  %v3187 = vpop.f32.mrf.mxu0
  %v3188 = vpop.f32.mrf.mxu0
  %v3189 = vadd.f32 %v3077, %v3188
  %v3190 = vpop.f32.mrf.mxu0
  %3191 = vmatprep.mubr.bf16.mxu0 0
  %3192 = vmatmul.mubr.bf16.gmra.mxu0 %v3052
  %v3193 = vpop.f32.mrf.mxu0
  %v3194 = vadd.f32 %v3077, %v3193
  %v3195 = vpop.f32.mrf.mxu0
  %v3196 = vpop.f32.mrf.mxu0
  %v3197 = vadd.f32 %v3077, %v3196
  %v3198 = vpop.f32.mrf.mxu0
  %3199 = vmatprep.mubr.bf16.mxu0 0
  %3200 = vmatmul.mubr.bf16.gmra.mxu0 %v3053
  %v3201 = vpop.f32.mrf.mxu0
  %v3202 = vadd.f32 %v3077, %v3201
  %v3203 = vpop.f32.mrf.mxu0
  %v3204 = vpop.f32.mrf.mxu0
  %v3205 = vadd.f32 %v3077, %v3204
  %v3206 = vpop.f32.mrf.mxu0
  %3207 = vmatprep.mubr.bf16.mxu0 0
  %3208 = vmatmul.mubr.bf16.gmra.mxu0 %v3054
  %v3209 = vpop.f32.mrf.mxu0
  %v3210 = vadd.f32 %v3077, %v3209
  %v3211 = vpop.f32.mrf.mxu0
  %v3212 = vpop.f32.mrf.mxu0
  %v3213 = vadd.f32 %v3077, %v3212
  %v3214 = vpop.f32.mrf.mxu0
  %3215 = vmatprep.mubr.bf16.mxu0 0
  %3216 = vmatmul.mubr.bf16.gmra.mxu0 %v3055
  %v3217 = vpop.f32.mrf.mxu0
  %v3218 = vadd.f32 %v3077, %v3217
  %v3219 = vpop.f32.mrf.mxu0
  %v3220 = vpop.f32.mrf.mxu0
  %v3221 = vadd.f32 %v3077, %v3220
  %v3222 = vpop.f32.mrf.mxu0
  %3223 = vdwg.mxu0
  %v3224 = vmul.f32 %v48, %v3162
  %v3225 = vmul.f32 %v49, %v3165
  %v3226 = vmul.f32 %v50, %v3170
  %v3227 = vmul.f32 %v51, %v3173
  %v3228 = vmul.f32 %v52, %v3178
  %v3229 = vmul.f32 %v53, %v3181
  %v3230 = vmul.f32 %v54, %v3186
  %v3231 = vmul.f32 %v55, %v3189
  %v3232 = vmul.f32 %v56, %v3194
  %v3233 = vmul.f32 %v57, %v3197
  %v3234 = vmul.f32 %v58, %v3202
  %v3235 = vmul.f32 %v59, %v3205
  %v3236 = vmul.f32 %v60, %v3210
  %v3237 = vmul.f32 %v61, %v3213
  %v3238 = vmul.f32 %v62, %v3218
  %v3239 = vmul.f32 %v63, %v3221
  %v3240 = vadd.f32 %v48, %v3224
  %v3241 = vadd.f32 %v49, %v3225
  %v3242 = vadd.f32 %v50, %v3226
  %v3243 = vadd.f32 %v51, %v3227
  %v3244 = vadd.f32 %v52, %v3228
  %v3245 = vadd.f32 %v53, %v3229
  %v3246 = vadd.f32 %v54, %v3230
  %v3247 = vadd.f32 %v55, %v3231
  %v3248 = vadd.f32 %v56, %v3232
  %v3249 = vadd.f32 %v57, %v3233
  %v3250 = vadd.f32 %v58, %v3234
  %v3251 = vadd.f32 %v59, %v3235
  %v3252 = vadd.f32 %v60, %v3236
  %v3253 = vadd.f32 %v61, %v3237
  %v3254 = vadd.f32 %v62, %v3238
  %v3255 = vadd.f32 %v63, %v3239
  %vm3256 = vcmask 15360
  %3257 = vst.msk [vmem:[%s14] sm:$0xff] %vm3256, %v3240
  %3258 = vst.msk [vmem:[%s14 + $0x8] sm:$0xff] %vm3256, %v3241
  %3259 = vst.msk [vmem:[%s14 + $0x10] sm:$0xff] %vm3256, %v3242
  %3260 = vst.msk [vmem:[%s14 + $0x18] sm:$0xff] %vm3256, %v3243
  %3261 = vst.msk [vmem:[%s14 + $0x20] sm:$0xff] %vm3256, %v3244
  %3262 = vst.msk [vmem:[%s14 + $0x28] sm:$0xff] %vm3256, %v3245
  %3263 = vst.msk [vmem:[%s14 + $0x30] sm:$0xff] %vm3256, %v3246
  %3264 = vst.msk [vmem:[%s14 + $0x38] sm:$0xff] %vm3256, %v3247
  %3265 = vst.msk [vmem:[%s14 + $0x40] sm:$0xff] %vm3256, %v3248
  %3266 = vst.msk [vmem:[%s14 + $0x48] sm:$0xff] %vm3256, %v3249
  %3267 = vst.msk [vmem:[%s14 + $0x50] sm:$0xff] %vm3256, %v3250
  %3268 = vst.msk [vmem:[%s14 + $0x58] sm:$0xff] %vm3256, %v3251
  %3269 = vst.msk [vmem:[%s14 + $0x60] sm:$0xff] %vm3256, %v3252
  %3270 = vst.msk [vmem:[%s14 + $0x68] sm:$0xff] %vm3256, %v3253
  %3271 = vst.msk [vmem:[%s14 + $0x70] sm:$0xff] %vm3256, %v3254
  %3272 = vst.msk [vmem:[%s14 + $0x78] sm:$0xff] %vm3256, %v3255
  // Predicated region
  $region58: #{_iphi_forward_jit.1} parent=0 // pred_check
    _
  $region59: #{_iphi_forward_jit.1} parent=0 // pred_check_branch
    %3274 = sbr.rel (0) target = $region61
  $region60: #{_iphi_forward_jit.1} parent=0 // pred_region
    _
  $region61: #{_iphi_forward_jit.1} parent=0 // pred_fallthru
    _
  // Predicated region
  $region62: #{_iphi_forward_jit.1} parent=0 // pred_check
    _
  $region63: #{_iphi_forward_jit.1} parent=0 // pred_check_branch
    %3276 = sbr.rel (0) target = $region65
  $region64: #{_iphi_forward_jit.1} parent=0 // pred_region
    _
  $region65: #{_iphi_forward_jit.1} parent=0 // pred_fallthru
    _

</llo_original>
